<compile_context>
chip_gen: v7x
topology: tpu7x:2x2x1
jax: 0.10.0
libtpu: 0.0.40
codegen_flags: <defaults>
</compile_context>

<pallas_src>
import functools
import math

import jax
import jax.numpy as jnp
from jax.experimental import pallas as pl
from jax.experimental.pallas import tpu as pltpu

EPS = 1e-6        # LayerNormalization eps in the reference repo
NEG_INF = -1e9    # masked_fill value in the reference repo


# ----------------------------- in-kernel helpers -----------------------------
def _layernorm(x_f32, alpha, bias):
    # Reference uses unbiased std (Bessel correction) and adds eps to the std (not the var).
    d = x_f32.shape[-1]
    mean = jnp.mean(x_f32, axis=-1, keepdims=True)
    var = jnp.sum((x_f32 - mean) ** 2, axis=-1, keepdims=True) * (1.0 / (d - 1))
    inv = pl.reciprocal(jnp.sqrt(var) + EPS, approx=True)   # EUP slot -> ~free
    return alpha * ((x_f32 - mean) * inv) + bias


def _mha_heads(q_scaled, kt_ref, v_ref, bias_f32, attn_ref, num_heads):
    """Scores / softmax / PV per head; head outputs written into attn_ref (TQ, D) bf16.

    q_scaled: (TQ, D) bf16, pre-scaled by 1/sqrt(d_k).
    kt_ref:   (D, Sk) bf16 ref -- K pre-transposed so QK^T is a plain matmul (no XLU
              transpose per head per query tile).
    v_ref:    (Sk, D) bf16 ref.
    """
    d_model = q_scaled.shape[-1]
    d_k = d_model // num_heads
    for h in range(num_heads):  # static unroll; each head's score/prob tile dies once
        sl = slice(h * d_k, (h + 1) * d_k)       # its hv is stored, bounding liveness
        s = jnp.dot(q_scaled[:, sl], kt_ref[sl, :], preferred_element_type=jnp.float32)
        s = s + bias_f32
        s = s - jnp.max(s, axis=-1, keepdims=True)           # stable softmax, f32 stats
        p = jnp.exp(s)
        p = p * pl.reciprocal(jnp.sum(p, axis=-1, keepdims=True), approx=True)
        hv = jnp.dot(p.astype(jnp.bfloat16), v_ref[:, sl],
                     preferred_element_type=jnp.float32)
        attn_ref[:, sl] = hv.astype(jnp.bfloat16)


def decoder_block_kernel(num_heads,
                         x_ref, q1_ref, k1t_ref, v1_ref, k2t_ref, v2_ref,
                         tgt_bias_ref, src_bias_ref,
                         wo1_ref, ln2a_ref, ln2b_ref, wq2_ref, wo2_ref,
                         ln3a_ref, ln3b_ref, w1_ref, b1_ref, w2_ref, b2_ref,
                         o_ref, attn_ref):
    bf16 = jnp.bfloat16
    d_model = wo1_ref.shape[0]
    d_k = d_model // num_heads

    # Residual stream for this query tile stays f32 end-to-end.
    x = x_ref[...].astype(jnp.float32)                                     # (TQ, D)

    # residual_connections[0]: x + Wo1( heads(softmax(Q1 K1^T + tgt_bias) V1) )
    # (LN1 and the Q1/K1/V1 projections are hoisted to the wrapper: q-tile invariant.)
    _mha_heads(q1_ref[...], k1t_ref, v1_ref,
               tgt_bias_ref[...].astype(jnp.float32), attn_ref, num_heads)
    x = x + jnp.dot(attn_ref[...], wo1_ref[...], preferred_element_type=jnp.float32)

    # residual_connections[1]: x + Wo2( heads(softmax(Q2 K2^T + src_bias) V2) )
    h = _layernorm(x, ln2a_ref[...], ln2b_ref[...])
    q2 = (jnp.dot(h.astype(bf16), wq2_ref[...], preferred_element_type=jnp.float32)
          * (1.0 / math.sqrt(d_k))).astype(bf16)
    _mha_heads(q2, k2t_ref, v2_ref,
               src_bias_ref[...].astype(jnp.float32), attn_ref, num_heads)
    x = x + jnp.dot(attn_ref[...], wo2_ref[...], preferred_element_type=jnp.float32)

    # residual_connections[2]: x + FFN(norm(x)) ; FFN = Linear -> ReLU -> Linear
    h = _layernorm(x, ln3a_ref[...], ln3b_ref[...])
    ff = jnp.dot(h.astype(bf16), w1_ref[...],
                 preferred_element_type=jnp.float32) + b1_ref[...]
    ff = jnp.maximum(ff, 0.0)
    ff = jnp.dot(ff.astype(bf16), w2_ref[...],
                 preferred_element_type=jnp.float32) + b2_ref[...]
    x = x + ff

    o_ref[...] = x.astype(o_ref.dtype)


# ----------------------------- wrapper-side helpers -----------------------------
_KERNEL_WEIGHTS = ["wo1", "ln2_a", "ln2_b", "wq2", "wo2",
                   "ln3_a", "ln3_b", "ff_w1", "ff_b1", "ff_w2", "ff_b2"]
_BF16_WEIGHTS = {"wo1", "wq2", "wo2", "ff_w1", "ff_w2"}


def _layernorm_host(x, alpha, bias):
    d = x.shape[-1]
    mean = jnp.mean(x, axis=-1, keepdims=True)
    var = jnp.sum((x - mean) ** 2, axis=-1, keepdims=True) / (d - 1)
    return alpha * (x - mean) / (jnp.sqrt(var) + EPS) + bias


def _vmem_capacity_bytes():
    try:
        return int(pltpu.get_tpu_info().vmem_capacity_bytes)
    except Exception:
        return 64 * 1024 * 1024   # conservative (v7x per-TC physical VMEM)


def _pick_q_tile(s_t, s_k_max, d, d_ff, vmem_cap_bytes):
    """Largest q tile whose per-step intermediates fit ~1/4 of VMEM, leaving room for the
    (single-buffered) resident weights, the per-batch K/V blocks and pipeline buffers.
    v7x (64 MiB) typically lands on 128 at long S_t; v5e/v6e (128 MiB) on 256."""
    budget = vmem_cap_bytes // 4
    for t in (512, 256, 128):
        if s_t % t != 0:
            continue
        per_step = t * (8 * s_k_max      # f32 score + prob tiles of the live head
                        + 4 * s_k_max    # double-buffered bf16 additive-bias blocks
                        + 4 * d_ff       # f32 FFN hidden
                        + 12 * d)        # residual / LN / q / attn-out rows
        if per_step <= budget:
            return t
    return s_t


def decoder_block(x, enc, tgt_mask, src_mask, params, num_heads):
    B, S_t, D = x.shape
    S_s = enc.shape[1]
    D_FF = params["ff_w1"].shape[1]
    d_k = D // num_heads
    bf16 = jnp.bfloat16

    vmem_cap = _vmem_capacity_bytes()
    TQ = _pick_q_tile(S_t, max(S_t, S_s), D, D_FF, vmem_cap)
    NQ = S_t // TQ
    vmem_limit = min(100 * 1024 * 1024, vmem_cap - 8 * 1024 * 1024)

    # Residual stream stays f32; only MXU operands are bf16.
    x32 = x.astype(jnp.float32)
    enc32 = enc.astype(jnp.float32)

    # Hoisted q-tile-invariant projections (one plain XLA matmul each, per batch).
    scale = 1.0 / math.sqrt(d_k)
    h1 = _layernorm_host(x32, params["ln1_a"], params["ln1_b"])
    q1 = (h1 @ params["wq1"] * scale).astype(bf16)                   # (B, S_t, D)
    k1t = jnp.swapaxes(h1 @ params["wk1"], 1, 2).astype(bf16)        # (B, D, S_t)
    v1 = (h1 @ params["wv1"]).astype(bf16)                           # (B, S_t, D)
    k2t = jnp.swapaxes(enc32 @ params["wk2"], 1, 2).astype(bf16)     # (B, D, S_s)
    v2 = (enc32 @ params["wv2"]).astype(bf16)                        # (B, S_s, D)

    # masked_fill(mask == 0, -1e9) -> additive bias (0 keep, -1e9 masked), bf16 in HBM.
    tgt_bias = jnp.broadcast_to(jnp.where(tgt_mask == 0, NEG_INF, 0.0),
                                (B, S_t, S_t)).astype(bf16)
    src_bias = jnp.broadcast_to(jnp.where(src_mask == 0, NEG_INF, 0.0),
                                (B, S_t, S_s)).astype(bf16)

    weights = [params[k].astype(bf16) if k in _BF16_WEIGHTS
               else params[k].astype(jnp.float32) for k in _KERNEL_WEIGHTS]

    # Advisory cost (in-kernel work only; hoisted projections run as plain XLA matmuls).
    flops = 2 * B * (2 * S_t * S_t * D + S_t * D * D                 # self-attn + Wo1
                     + 2 * S_t * D * D + 2 * S_t * S_s * D           # Q2/Wo2 + cross scores/PV
                     + 2 * S_t * D * D_FF)                           # feed-forward
    transcendentals = B * num_heads * (S_t * S_t + S_t * S_s)
    bytes_accessed = int(sum(int(a.size) * a.dtype.itemsize
                             for a in (x32, q1, k1t, v1, k2t, v2, tgt_bias, src_bias))
                         + sum(int(w.size) * w.dtype.itemsize for w in weights)
                         + B * S_t * D * x.dtype.itemsize)
    cost = pl.CostEstimate(flops=int(flops), transcendentals=int(transcendentals),
                           bytes_accessed=bytes_accessed)

    kernel = functools.partial(decoder_block_kernel, num_heads)
    args = (x32, q1, k1t, v1, k2t, v2, tgt_bias, src_bias, *weights)

    def run(single_buffer_weights):
        def per_qtile(last):
            return pl.BlockSpec((None, TQ, last), lambda b, q: (b, q, 0))

        def per_batch(rows, cols):
            return pl.BlockSpec((None, rows, cols), lambda b, q: (b, 0, 0))

        def invariant(shape):
            if single_buffer_weights:
                # Weights never change across the grid: single-buffer them to halve
                # their VMEM footprint (critical on v7x's 64 MiB at production D/D_FF).
                return pl.BlockSpec(shape, lambda b, q: (0,) * len(shape),
                                    pipeline_mode=pl.Buffered(1))
            return pl.BlockSpec(shape, lambda b, q: (0,) * len(shape))

        in_specs = [
            per_qtile(D),             # x residual tile (f32)
            per_qtile(D),             # Q1 tile (bf16, pre-scaled)
            per_batch(D, S_t),        # K1^T (per batch, full keys)
            per_batch(S_t, D),        # V1
            per_batch(D, S_s),        # K2^T
            per_batch(S_s, D),        # V2
            per_qtile(S_t),           # target additive bias (query-tile rows)
            per_qtile(S_s),           # source additive bias (query-tile rows)
        ] + [invariant(w.shape) for w in weights]

        return pl.pallas_call(
            kernel,
            out_shape=jax.ShapeDtypeStruct((B, S_t, D), x.dtype),
            grid=(B, NQ),
            in_specs=in_specs,
            out_specs=pl.BlockSpec((None, TQ, D), lambda b, q: (b, q, 0)),
            scratch_shapes=[pltpu.VMEM((TQ, D), jnp.bfloat16)],   # concat-free head outputs
            compiler_params=pltpu.CompilerParams(
                dimension_semantics=("parallel", "parallel"),
                vmem_limit_bytes=int(vmem_limit)),
            cost_estimate=cost,
        )(*args)

    try:
        return run(single_buffer_weights=True)
    except Exception:
        # Installed Pallas rejected pipeline_mode=pl.Buffered(1): fall back to the default
        # double-buffered weights (correct, just more VMEM).
        return run(single_buffer_weights=False)


# ----------------------------- pure-JAX reference (f32) -----------------------------
def decoder_block_ref(x, enc, tgt_mask, src_mask, p, num_heads):
    def ln(x, a, b):
        d = x.shape[-1]
        mean = jnp.mean(x, -1, keepdims=True)
        var = jnp.sum((x - mean) ** 2, -1, keepdims=True) / (d - 1)
        return a * (x - mean) / (jnp.sqrt(var) + EPS) + b

    def mha(q_in, kv_in, mask, wq, wk, wv, wo):
        B, Sq, D = q_in.shape
        Sk = kv_in.shape[1]
        dk = D // num_heads
        q = (q_in @ wq).reshape(B, Sq, num_heads, dk).transpose(0, 2, 1, 3)
        k = (kv_in @ wk).reshape(B, Sk, num_heads, dk).transpose(0, 2, 1, 3)
        v = (kv_in @ wv).reshape(B, Sk, num_heads, dk).transpose(0, 2, 1, 3)
        s = jnp.einsum("bhqd,bhkd->bhqk", q, k) / jnp.sqrt(jnp.float32(dk))
        s = jnp.where(mask[:, None, :, :] == 0, NEG_INF, s)
        o = jnp.einsum("bhqk,bhkd->bhqd", jax.nn.softmax(s, -1), v)
        return o.transpose(0, 2, 1, 3).reshape(B, Sq, D) @ wo

    h = ln(x, p["ln1_a"], p["ln1_b"])
    x = x + mha(h, h, tgt_mask, p["wq1"], p["wk1"], p["wv1"], p["wo1"])
    h = ln(x, p["ln2_a"], p["ln2_b"])
    x = x + mha(h, enc, src_mask, p["wq2"], p["wk2"], p["wv2"], p["wo2"])
    h = ln(x, p["ln3_a"], p["ln3_b"])
    ff = jnp.maximum(h @ p["ff_w1"] + p["ff_b1"], 0.0) @ p["ff_w2"] + p["ff_b2"]
    return x + ff


if __name__ == "__main__":
    B, S_T, S_S, D, H, D_FF = 2, 8, 10, 32, 4, 64

    key = jax.random.PRNGKey(0)
    keys = jax.random.split(key, 16)

    def w(k, shape, scale=0.1):
        return (scale * jax.random.normal(k, shape)).astype(jnp.float32)

    params = {
        # LayerNormalization params: alpha=ones, bias=zeros (as in __init__)
        "ln1_a": jnp.ones((1, D), jnp.float32), "ln1_b": jnp.zeros((1, D), jnp.float32),
        "ln2_a": jnp.ones((1, D), jnp.float32), "ln2_b": jnp.zeros((1, D), jnp.float32),
        "ln3_a": jnp.ones((1, D), jnp.float32), "ln3_b": jnp.zeros((1, D), jnp.float32),
        # self-attention (w_q, w_k, w_v, w_o), stored as (in, out)
        "wq1": w(keys[0], (D, D)), "wk1": w(keys[1], (D, D)),
        "wv1": w(keys[2], (D, D)), "wo1": w(keys[3], (D, D)),
        # cross-attention
        "wq2": w(keys[4], (D, D)), "wk2": w(keys[5], (D, D)),
        "wv2": w(keys[6], (D, D)), "wo2": w(keys[7], (D, D)),
        # feed-forward: Linear(D, D_FF) -> ReLU -> Linear(D_FF, D)
        "ff_w1": w(keys[8], (D, D_FF)), "ff_b1": w(keys[9], (1, D_FF)),
        "ff_w2": w(keys[10], (D_FF, D)), "ff_b2": w(keys[11], (1, D)),
    }

    x = jax.random.normal(keys[12], (B, S_T, D), jnp.float32)
    enc = jax.random.normal(keys[13], (B, S_S, D), jnp.float32)

    # tgt_mask: causal (B, S_T, S_T); src_mask: padding mask (B, S_T, S_S)
    tgt_mask = jnp.broadcast_to(jnp.tril(jnp.ones((S_T, S_T), jnp.int32)), (B, S_T, S_T))
    src_mask = jnp.ones((B, S_T, S_S), jnp.int32)
    src_mask = src_mask.at[1, :, S_S - 3:].set(0)  # pad out last 3 source tokens of batch 1

    out = decoder_block(x, enc, tgt_mask, src_mask, params, H)
    out = jax.block_until_ready(out)

    ref = decoder_block_ref(x, enc, tgt_mask, src_mask, params, H)
    assert out.shape == (B, S_T, D)
    assert bool(jnp.all(jnp.isfinite(out)))
    # Tolerance accounts for bf16 MXU operands (f32 accumulation) + approx reciprocals
    # vs. the pure-f32 reference.
    assert bool(jnp.allclose(out, ref, atol=2e-2, rtol=2e-2)), (
        f"max abs diff {float(jnp.max(jnp.abs(out - ref)))}")

    print("KERNEL_OK")
</pallas_src>

<mosaic_0001>
module attributes {stable_mosaic.version = 11 : i64} {
  func.func @decoder_block_kernel(%arg0: i32, %arg1: i32, %arg2: memref<1x8x32xf32, #tpu.memory_space<vmem>>, %arg3: memref<1x8x32xbf16, #tpu.memory_space<vmem>>, %arg4: memref<1x32x8xbf16, #tpu.memory_space<vmem>>, %arg5: memref<1x8x32xbf16, #tpu.memory_space<vmem>>, %arg6: memref<1x32x10xbf16, #tpu.memory_space<vmem>>, %arg7: memref<1x10x32xbf16, #tpu.memory_space<vmem>>, %arg8: memref<1x8x8xbf16, #tpu.memory_space<vmem>>, %arg9: memref<1x8x10xbf16, #tpu.memory_space<vmem>>, %arg10: memref<32x32xbf16, #tpu.memory_space<vmem>>, %arg11: memref<1x32xf32, #tpu.memory_space<vmem>>, %arg12: memref<1x32xf32, #tpu.memory_space<vmem>>, %arg13: memref<32x32xbf16, #tpu.memory_space<vmem>>, %arg14: memref<32x32xbf16, #tpu.memory_space<vmem>>, %arg15: memref<1x32xf32, #tpu.memory_space<vmem>>, %arg16: memref<1x32xf32, #tpu.memory_space<vmem>>, %arg17: memref<32x64xbf16, #tpu.memory_space<vmem>>, %arg18: memref<1x64xf32, #tpu.memory_space<vmem>>, %arg19: memref<64x32xbf16, #tpu.memory_space<vmem>>, %arg20: memref<1x32xf32, #tpu.memory_space<vmem>>, %arg21: memref<1x8x32xf32, #tpu.memory_space<vmem>>, %arg22: memref<8x32xbf16, #tpu.memory_space<vmem>>) attributes {dimension_semantics = [#tpu.dimension_semantics<parallel>, #tpu.dimension_semantics<parallel>], iteration_bounds = array<i64: 2, 1>, scalar_prefetch = 0 : i64, scratch_operands = 1 : i64, tpu.core_type = #tpu.core_type<tc>, window_params = [{transform_indices = @transform_0, window_bounds = array<i64: 1, 8, 32>}, {transform_indices = @transform_1, window_bounds = array<i64: 1, 8, 32>}, {transform_indices = @transform_2, window_bounds = array<i64: 1, 32, 8>}, {transform_indices = @transform_3, window_bounds = array<i64: 1, 8, 32>}, {transform_indices = @transform_4, window_bounds = array<i64: 1, 32, 10>}, {transform_indices = @transform_5, window_bounds = array<i64: 1, 10, 32>}, {transform_indices = @transform_6, window_bounds = array<i64: 1, 8, 8>}, {transform_indices = @transform_7, window_bounds = array<i64: 1, 8, 10>}, {pipeline_mode = #tpu.pipeline_mode<synchronous>, transform_indices = @transform_8, window_bounds = array<i64: 32, 32>}, {pipeline_mode = #tpu.pipeline_mode<synchronous>, transform_indices = @transform_9, window_bounds = array<i64: 1, 32>}, {pipeline_mode = #tpu.pipeline_mode<synchronous>, transform_indices = @transform_10, window_bounds = array<i64: 1, 32>}, {pipeline_mode = #tpu.pipeline_mode<synchronous>, transform_indices = @transform_11, window_bounds = array<i64: 32, 32>}, {pipeline_mode = #tpu.pipeline_mode<synchronous>, transform_indices = @transform_12, window_bounds = array<i64: 32, 32>}, {pipeline_mode = #tpu.pipeline_mode<synchronous>, transform_indices = @transform_13, window_bounds = array<i64: 1, 32>}, {pipeline_mode = #tpu.pipeline_mode<synchronous>, transform_indices = @transform_14, window_bounds = array<i64: 1, 32>}, {pipeline_mode = #tpu.pipeline_mode<synchronous>, transform_indices = @transform_15, window_bounds = array<i64: 32, 64>}, {pipeline_mode = #tpu.pipeline_mode<synchronous>, transform_indices = @transform_16, window_bounds = array<i64: 1, 64>}, {pipeline_mode = #tpu.pipeline_mode<synchronous>, transform_indices = @transform_17, window_bounds = array<i64: 64, 32>}, {pipeline_mode = #tpu.pipeline_mode<synchronous>, transform_indices = @transform_18, window_bounds = array<i64: 1, 32>}, {transform_indices = @transform_19, window_bounds = array<i64: 1, 8, 32>}]} {
    %c0 = arith.constant 0 : index
    %c0_0 = arith.constant 0 : index
    %c0_1 = arith.constant 0 : index
    %0 = vector.load %arg2[%c0, %c0_0, %c0_1] : memref<1x8x32xf32, #tpu.memory_space<vmem>>, vector<1x8x32xf32>
    %1 = vector.shape_cast %0 : vector<1x8x32xf32> to vector<8x32xf32>
    %c0_2 = arith.constant 0 : index
    %c0_3 = arith.constant 0 : index
    %c0_4 = arith.constant 0 : index
    %2 = vector.load %arg3[%c0_2, %c0_3, %c0_4] : memref<1x8x32xbf16, #tpu.memory_space<vmem>>, vector<1x8x32xbf16>
    %3 = vector.shape_cast %2 : vector<1x8x32xbf16> to vector<8x32xbf16>
    %c0_5 = arith.constant 0 : index
    %c0_6 = arith.constant 0 : index
    %c0_7 = arith.constant 0 : index
    %4 = vector.load %arg8[%c0_5, %c0_6, %c0_7] : memref<1x8x8xbf16, #tpu.memory_space<vmem>>, vector<1x8x8xbf16>
    %5 = vector.shape_cast %4 : vector<1x8x8xbf16> to vector<8x8xbf16>
    %6 = arith.extf %5 : vector<8x8xbf16> to vector<8x8xf32>
    %7 = vector.extract_strided_slice %3 {offsets = [0, 0], sizes = [8, 8], strides = [1, 1]} : vector<8x32xbf16> to vector<8x8xbf16>
    %c0_8 = arith.constant 0 : index
    %c0_9 = arith.constant 0 : index
    %c0_10 = arith.constant 0 : index
    %8 = vector.load %arg4[%c0_8, %c0_9, %c0_10] : memref<1x32x8xbf16, #tpu.memory_space<vmem>>, vector<1x8x8xbf16>
    %9 = vector.shape_cast %8 : vector<1x8x8xbf16> to vector<8x8xbf16>
    %cst = arith.constant dense<0.000000e+00> : vector<8x8xf32>
    %10 = tpu.matmul %7, %9, %cst {dimension_numbers = #tpu.dot_dimension_numbers<[1], [0], [0], [1], [0, 0, 1, 1], [], []>} : vector<8x8xbf16>, vector<8x8xbf16>, vector<8x8xf32> -> vector<8x8xf32>
    %11 = arith.addf %10, %6 : vector<8x8xf32>
    %cst_11 = arith.constant dense<0xFF800000> : vector<8xf32>
    %12 = vector.multi_reduction <maximumf>, %11, %cst_11 [1] : vector<8x8xf32> to vector<8xf32>
    %13 = vector.shape_cast %12 : vector<8xf32> to vector<8x1xf32>
    %14 = vector.broadcast %13 : vector<8x1xf32> to vector<8x8xf32>
    %15 = arith.subf %11, %14 : vector<8x8xf32>
    %16 = math.exp %15 : vector<8x8xf32>
    %cst_12 = arith.constant dense<0.000000e+00> : vector<8xf32>
    %17 = vector.multi_reduction <add>, %16, %cst_12 [1] : vector<8x8xf32> to vector<8xf32>
    %18 = vector.shape_cast %17 : vector<8xf32> to vector<8x1xf32>
    %19 = tpu.reciprocal %18 {approx = true} : vector<8x1xf32> -> vector<8x1xf32>
    %20 = vector.broadcast %19 : vector<8x1xf32> to vector<8x8xf32>
    %21 = arith.mulf %16, %20 : vector<8x8xf32>
    %22 = arith.truncf %21 : vector<8x8xf32> to vector<8x8xbf16>
    %c0_13 = arith.constant 0 : index
    %c0_14 = arith.constant 0 : index
    %c0_15 = arith.constant 0 : index
    %23 = vector.load %arg5[%c0_13, %c0_14, %c0_15] : memref<1x8x32xbf16, #tpu.memory_space<vmem>>, vector<1x8x8xbf16>
    %24 = vector.shape_cast %23 : vector<1x8x8xbf16> to vector<8x8xbf16>
    %cst_16 = arith.constant dense<0.000000e+00> : vector<8x8xf32>
    %25 = tpu.matmul %22, %24, %cst_16 {dimension_numbers = #tpu.dot_dimension_numbers<[1], [0], [0], [1], [0, 0, 1, 1], [], []>} : vector<8x8xbf16>, vector<8x8xbf16>, vector<8x8xf32> -> vector<8x8xf32>
    %26 = arith.truncf %25 : vector<8x8xf32> to vector<8x8xbf16>
    %c0_17 = arith.constant 0 : index
    %c0_18 = arith.constant 0 : index
    %27 = vector.load %arg22[%c0_17, %c0_18] : memref<8x32xbf16, #tpu.memory_space<vmem>>, vector<8x8xbf16>
    tpu.vector_store %arg22[%c0_17, %c0_18], %26 {strides = array<i32>} : memref<8x32xbf16, #tpu.memory_space<vmem>>, vector<8x8xbf16>,
    %28 = vector.extract_strided_slice %3 {offsets = [0, 8], sizes = [8, 8], strides = [1, 1]} : vector<8x32xbf16> to vector<8x8xbf16>
    %c0_19 = arith.constant 0 : index
    %c8 = arith.constant 8 : index
    %c0_20 = arith.constant 0 : index
    %29 = vector.load %arg4[%c0_19, %c8, %c0_20] : memref<1x32x8xbf16, #tpu.memory_space<vmem>>, vector<1x8x8xbf16>
    %30 = vector.shape_cast %29 : vector<1x8x8xbf16> to vector<8x8xbf16>
    %cst_21 = arith.constant dense<0.000000e+00> : vector<8x8xf32>
    %31 = tpu.matmul %28, %30, %cst_21 {dimension_numbers = #tpu.dot_dimension_numbers<[1], [0], [0], [1], [0, 0, 1, 1], [], []>} : vector<8x8xbf16>, vector<8x8xbf16>, vector<8x8xf32> -> vector<8x8xf32>
    %32 = arith.addf %31, %6 : vector<8x8xf32>
    %cst_22 = arith.constant dense<0xFF800000> : vector<8xf32>
    %33 = vector.multi_reduction <maximumf>, %32, %cst_22 [1] : vector<8x8xf32> to vector<8xf32>
    %34 = vector.shape_cast %33 : vector<8xf32> to vector<8x1xf32>
    %35 = vector.broadcast %34 : vector<8x1xf32> to vector<8x8xf32>
    %36 = arith.subf %32, %35 : vector<8x8xf32>
    %37 = math.exp %36 : vector<8x8xf32>
    %cst_23 = arith.constant dense<0.000000e+00> : vector<8xf32>
    %38 = vector.multi_reduction <add>, %37, %cst_23 [1] : vector<8x8xf32> to vector<8xf32>
    %39 = vector.shape_cast %38 : vector<8xf32> to vector<8x1xf32>
    %40 = tpu.reciprocal %39 {approx = true} : vector<8x1xf32> -> vector<8x1xf32>
    %41 = vector.broadcast %40 : vector<8x1xf32> to vector<8x8xf32>
    %42 = arith.mulf %37, %41 : vector<8x8xf32>
    %43 = arith.truncf %42 : vector<8x8xf32> to vector<8x8xbf16>
    %c0_24 = arith.constant 0 : index
    %c0_25 = arith.constant 0 : index
    %c8_26 = arith.constant 8 : index
    %44 = vector.load %arg5[%c0_24, %c0_25, %c8_26] : memref<1x8x32xbf16, #tpu.memory_space<vmem>>, vector<1x8x8xbf16>
    %45 = vector.shape_cast %44 : vector<1x8x8xbf16> to vector<8x8xbf16>
    %cst_27 = arith.constant dense<0.000000e+00> : vector<8x8xf32>
    %46 = tpu.matmul %43, %45, %cst_27 {dimension_numbers = #tpu.dot_dimension_numbers<[1], [0], [0], [1], [0, 0, 1, 1], [], []>} : vector<8x8xbf16>, vector<8x8xbf16>, vector<8x8xf32> -> vector<8x8xf32>
    %47 = arith.truncf %46 : vector<8x8xf32> to vector<8x8xbf16>
    %c0_28 = arith.constant 0 : index
    %c8_29 = arith.constant 8 : index
    %48 = vector.load %arg22[%c0_28, %c8_29] : memref<8x32xbf16, #tpu.memory_space<vmem>>, vector<8x8xbf16>
    tpu.vector_store %arg22[%c0_28, %c8_29], %47 {strides = array<i32>} : memref<8x32xbf16, #tpu.memory_space<vmem>>, vector<8x8xbf16>,
    %49 = vector.extract_strided_slice %3 {offsets = [0, 16], sizes = [8, 8], strides = [1, 1]} : vector<8x32xbf16> to vector<8x8xbf16>
    %c0_30 = arith.constant 0 : index
    %c16 = arith.constant 16 : index
    %c0_31 = arith.constant 0 : index
    %50 = vector.load %arg4[%c0_30, %c16, %c0_31] : memref<1x32x8xbf16, #tpu.memory_space<vmem>>, vector<1x8x8xbf16>
    %51 = vector.shape_cast %50 : vector<1x8x8xbf16> to vector<8x8xbf16>
    %cst_32 = arith.constant dense<0.000000e+00> : vector<8x8xf32>
    %52 = tpu.matmul %49, %51, %cst_32 {dimension_numbers = #tpu.dot_dimension_numbers<[1], [0], [0], [1], [0, 0, 1, 1], [], []>} : vector<8x8xbf16>, vector<8x8xbf16>, vector<8x8xf32> -> vector<8x8xf32>
    %53 = arith.addf %52, %6 : vector<8x8xf32>
    %cst_33 = arith.constant dense<0xFF800000> : vector<8xf32>
    %54 = vector.multi_reduction <maximumf>, %53, %cst_33 [1] : vector<8x8xf32> to vector<8xf32>
    %55 = vector.shape_cast %54 : vector<8xf32> to vector<8x1xf32>
    %56 = vector.broadcast %55 : vector<8x1xf32> to vector<8x8xf32>
    %57 = arith.subf %53, %56 : vector<8x8xf32>
    %58 = math.exp %57 : vector<8x8xf32>
    %cst_34 = arith.constant dense<0.000000e+00> : vector<8xf32>
    %59 = vector.multi_reduction <add>, %58, %cst_34 [1] : vector<8x8xf32> to vector<8xf32>
    %60 = vector.shape_cast %59 : vector<8xf32> to vector<8x1xf32>
    %61 = tpu.reciprocal %60 {approx = true} : vector<8x1xf32> -> vector<8x1xf32>
    %62 = vector.broadcast %61 : vector<8x1xf32> to vector<8x8xf32>
    %63 = arith.mulf %58, %62 : vector<8x8xf32>
    %64 = arith.truncf %63 : vector<8x8xf32> to vector<8x8xbf16>
    %c0_35 = arith.constant 0 : index
    %c0_36 = arith.constant 0 : index
    %c16_37 = arith.constant 16 : index
    %65 = vector.load %arg5[%c0_35, %c0_36, %c16_37] : memref<1x8x32xbf16, #tpu.memory_space<vmem>>, vector<1x8x8xbf16>
    %66 = vector.shape_cast %65 : vector<1x8x8xbf16> to vector<8x8xbf16>
    %cst_38 = arith.constant dense<0.000000e+00> : vector<8x8xf32>
    %67 = tpu.matmul %64, %66, %cst_38 {dimension_numbers = #tpu.dot_dimension_numbers<[1], [0], [0], [1], [0, 0, 1, 1], [], []>} : vector<8x8xbf16>, vector<8x8xbf16>, vector<8x8xf32> -> vector<8x8xf32>
    %68 = arith.truncf %67 : vector<8x8xf32> to vector<8x8xbf16>
    %c0_39 = arith.constant 0 : index
    %c16_40 = arith.constant 16 : index
    %69 = vector.load %arg22[%c0_39, %c16_40] : memref<8x32xbf16, #tpu.memory_space<vmem>>, vector<8x8xbf16>
    tpu.vector_store %arg22[%c0_39, %c16_40], %68 {strides = array<i32>} : memref<8x32xbf16, #tpu.memory_space<vmem>>, vector<8x8xbf16>,
    %70 = vector.extract_strided_slice %3 {offsets = [0, 24], sizes = [8, 8], strides = [1, 1]} : vector<8x32xbf16> to vector<8x8xbf16>
    %c0_41 = arith.constant 0 : index
    %c24 = arith.constant 24 : index
    %c0_42 = arith.constant 0 : index
    %71 = vector.load %arg4[%c0_41, %c24, %c0_42] : memref<1x32x8xbf16, #tpu.memory_space<vmem>>, vector<1x8x8xbf16>
    %72 = vector.shape_cast %71 : vector<1x8x8xbf16> to vector<8x8xbf16>
    %cst_43 = arith.constant dense<0.000000e+00> : vector<8x8xf32>
    %73 = tpu.matmul %70, %72, %cst_43 {dimension_numbers = #tpu.dot_dimension_numbers<[1], [0], [0], [1], [0, 0, 1, 1], [], []>} : vector<8x8xbf16>, vector<8x8xbf16>, vector<8x8xf32> -> vector<8x8xf32>
    %74 = arith.addf %73, %6 : vector<8x8xf32>
    %cst_44 = arith.constant dense<0xFF800000> : vector<8xf32>
    %75 = vector.multi_reduction <maximumf>, %74, %cst_44 [1] : vector<8x8xf32> to vector<8xf32>
    %76 = vector.shape_cast %75 : vector<8xf32> to vector<8x1xf32>
    %77 = vector.broadcast %76 : vector<8x1xf32> to vector<8x8xf32>
    %78 = arith.subf %74, %77 : vector<8x8xf32>
    %79 = math.exp %78 : vector<8x8xf32>
    %cst_45 = arith.constant dense<0.000000e+00> : vector<8xf32>
    %80 = vector.multi_reduction <add>, %79, %cst_45 [1] : vector<8x8xf32> to vector<8xf32>
    %81 = vector.shape_cast %80 : vector<8xf32> to vector<8x1xf32>
    %82 = tpu.reciprocal %81 {approx = true} : vector<8x1xf32> -> vector<8x1xf32>
    %83 = vector.broadcast %82 : vector<8x1xf32> to vector<8x8xf32>
    %84 = arith.mulf %79, %83 : vector<8x8xf32>
    %85 = arith.truncf %84 : vector<8x8xf32> to vector<8x8xbf16>
    %c0_46 = arith.constant 0 : index
    %c0_47 = arith.constant 0 : index
    %c24_48 = arith.constant 24 : index
    %86 = vector.load %arg5[%c0_46, %c0_47, %c24_48] : memref<1x8x32xbf16, #tpu.memory_space<vmem>>, vector<1x8x8xbf16>
    %87 = vector.shape_cast %86 : vector<1x8x8xbf16> to vector<8x8xbf16>
    %cst_49 = arith.constant dense<0.000000e+00> : vector<8x8xf32>
    %88 = tpu.matmul %85, %87, %cst_49 {dimension_numbers = #tpu.dot_dimension_numbers<[1], [0], [0], [1], [0, 0, 1, 1], [], []>} : vector<8x8xbf16>, vector<8x8xbf16>, vector<8x8xf32> -> vector<8x8xf32>
    %89 = arith.truncf %88 : vector<8x8xf32> to vector<8x8xbf16>
    %c0_50 = arith.constant 0 : index
    %c24_51 = arith.constant 24 : index
    %90 = vector.load %arg22[%c0_50, %c24_51] : memref<8x32xbf16, #tpu.memory_space<vmem>>, vector<8x8xbf16>
    tpu.vector_store %arg22[%c0_50, %c24_51], %89 {strides = array<i32>} : memref<8x32xbf16, #tpu.memory_space<vmem>>, vector<8x8xbf16>,
    %c0_52 = arith.constant 0 : index
    %c0_53 = arith.constant 0 : index
    %91 = vector.load %arg22[%c0_52, %c0_53] : memref<8x32xbf16, #tpu.memory_space<vmem>>, vector<8x32xbf16>
    %c0_54 = arith.constant 0 : index
    %c0_55 = arith.constant 0 : index
    %92 = vector.load %arg10[%c0_54, %c0_55] : memref<32x32xbf16, #tpu.memory_space<vmem>>, vector<32x32xbf16>
    %cst_56 = arith.constant dense<0.000000e+00> : vector<8x32xf32>
    %93 = tpu.matmul %91, %92, %cst_56 {dimension_numbers = #tpu.dot_dimension_numbers<[1], [0], [0], [1], [0, 0, 1, 1], [], []>} : vector<8x32xbf16>, vector<32x32xbf16>, vector<8x32xf32> -> vector<8x32xf32>
    %94 = arith.addf %1, %93 : vector<8x32xf32>
    %c0_57 = arith.constant 0 : index
    %c0_58 = arith.constant 0 : index
    %95 = vector.load %arg11[%c0_57, %c0_58] : memref<1x32xf32, #tpu.memory_space<vmem>>, vector<1x32xf32>
    %c0_59 = arith.constant 0 : index
    %c0_60 = arith.constant 0 : index
    %96 = vector.load %arg12[%c0_59, %c0_60] : memref<1x32xf32, #tpu.memory_space<vmem>>, vector<1x32xf32>
    %cst_61 = arith.constant dense<0.000000e+00> : vector<8xf32>
    %97 = vector.multi_reduction <add>, %94, %cst_61 [1] : vector<8x32xf32> to vector<8xf32>
    %98 = vector.shape_cast %97 : vector<8xf32> to vector<8x1xf32>
    %cst_62 = arith.constant 3.200000e+01 : f32
    %99 = vector.broadcast %cst_62 : f32 to vector<8x1xf32>
    %100 = arith.divf %98, %99 : vector<8x1xf32>
    %101 = vector.broadcast %100 : vector<8x1xf32> to vector<8x32xf32>
    %102 = arith.subf %94, %101 : vector<8x32xf32>
    %103 = arith.mulf %102, %102 : vector<8x32xf32>
    %cst_63 = arith.constant dense<0.000000e+00> : vector<8xf32>
    %104 = vector.multi_reduction <add>, %103, %cst_63 [1] : vector<8x32xf32> to vector<8xf32>
    %105 = vector.shape_cast %104 : vector<8xf32> to vector<8x1xf32>
    %cst_64 = arith.constant 0.0322580636 : f32
    %106 = vector.broadcast %cst_64 : f32 to vector<8x1xf32>
    %107 = arith.mulf %105, %106 : vector<8x1xf32>
    %108 = math.sqrt %107 : vector<8x1xf32>
    %cst_65 = arith.constant 9.99999997E-7 : f32
    %109 = vector.broadcast %cst_65 : f32 to vector<8x1xf32>
    %110 = arith.addf %108, %109 : vector<8x1xf32>
    %111 = tpu.reciprocal %110 {approx = true} : vector<8x1xf32> -> vector<8x1xf32>
    %112 = vector.broadcast %100 : vector<8x1xf32> to vector<8x32xf32>
    %113 = arith.subf %94, %112 : vector<8x32xf32>
    %114 = vector.broadcast %111 : vector<8x1xf32> to vector<8x32xf32>
    %115 = arith.mulf %113, %114 : vector<8x32xf32>
    %116 = vector.broadcast %95 : vector<1x32xf32> to vector<8x32xf32>
    %117 = arith.mulf %116, %115 : vector<8x32xf32>
    %118 = vector.broadcast %96 : vector<1x32xf32> to vector<8x32xf32>
    %119 = arith.addf %117, %118 : vector<8x32xf32>
    %120 = arith.truncf %119 : vector<8x32xf32> to vector<8x32xbf16>
    %c0_66 = arith.constant 0 : index
    %c0_67 = arith.constant 0 : index
    %121 = vector.load %arg13[%c0_66, %c0_67] : memref<32x32xbf16, #tpu.memory_space<vmem>>, vector<32x32xbf16>
    %cst_68 = arith.constant dense<0.000000e+00> : vector<8x32xf32>
    %122 = tpu.matmul %120, %121, %cst_68 {dimension_numbers = #tpu.dot_dimension_numbers<[1], [0], [0], [1], [0, 0, 1, 1], [], []>} : vector<8x32xbf16>, vector<32x32xbf16>, vector<8x32xf32> -> vector<8x32xf32>
    %cst_69 = arith.constant 0.353553385 : f32
    %123 = vector.broadcast %cst_69 : f32 to vector<8x32xf32>
    %124 = arith.mulf %122, %123 : vector<8x32xf32>
    %125 = arith.truncf %124 : vector<8x32xf32> to vector<8x32xbf16>
    %c0_70 = arith.constant 0 : index
    %c0_71 = arith.constant 0 : index
    %c0_72 = arith.constant 0 : index
    %126 = vector.load %arg9[%c0_70, %c0_71, %c0_72] : memref<1x8x10xbf16, #tpu.memory_space<vmem>>, vector<1x8x10xbf16>
    %127 = vector.shape_cast %126 : vector<1x8x10xbf16> to vector<8x10xbf16>
    %128 = arith.extf %127 : vector<8x10xbf16> to vector<8x10xf32>
    %129 = vector.extract_strided_slice %125 {offsets = [0, 0], sizes = [8, 8], strides = [1, 1]} : vector<8x32xbf16> to vector<8x8xbf16>
    %c0_73 = arith.constant 0 : index
    %c0_74 = arith.constant 0 : index
    %c0_75 = arith.constant 0 : index
    %130 = vector.load %arg6[%c0_73, %c0_74, %c0_75] : memref<1x32x10xbf16, #tpu.memory_space<vmem>>, vector<1x8x10xbf16>
    %131 = vector.shape_cast %130 : vector<1x8x10xbf16> to vector<8x10xbf16>
    %cst_76 = arith.constant dense<0.000000e+00> : vector<8x10xf32>
    %132 = tpu.matmul %129, %131, %cst_76 {dimension_numbers = #tpu.dot_dimension_numbers<[1], [0], [0], [1], [0, 0, 1, 1], [], []>} : vector<8x8xbf16>, vector<8x10xbf16>, vector<8x10xf32> -> vector<8x10xf32>
    %133 = arith.addf %132, %128 : vector<8x10xf32>
    %cst_77 = arith.constant dense<0xFF800000> : vector<8xf32>
    %134 = vector.multi_reduction <maximumf>, %133, %cst_77 [1] : vector<8x10xf32> to vector<8xf32>
    %135 = vector.shape_cast %134 : vector<8xf32> to vector<8x1xf32>
    %136 = vector.broadcast %135 : vector<8x1xf32> to vector<8x10xf32>
    %137 = arith.subf %133, %136 : vector<8x10xf32>
    %138 = math.exp %137 : vector<8x10xf32>
    %cst_78 = arith.constant dense<0.000000e+00> : vector<8xf32>
    %139 = vector.multi_reduction <add>, %138, %cst_78 [1] : vector<8x10xf32> to vector<8xf32>
    %140 = vector.shape_cast %139 : vector<8xf32> to vector<8x1xf32>
    %141 = tpu.reciprocal %140 {approx = true} : vector<8x1xf32> -> vector<8x1xf32>
    %142 = vector.broadcast %141 : vector<8x1xf32> to vector<8x10xf32>
    %143 = arith.mulf %138, %142 : vector<8x10xf32>
    %144 = arith.truncf %143 : vector<8x10xf32> to vector<8x10xbf16>
    %c0_79 = arith.constant 0 : index
    %c0_80 = arith.constant 0 : index
    %c0_81 = arith.constant 0 : index
    %145 = vector.load %arg7[%c0_79, %c0_80, %c0_81] : memref<1x10x32xbf16, #tpu.memory_space<vmem>>, vector<1x10x8xbf16>
    %146 = vector.shape_cast %145 : vector<1x10x8xbf16> to vector<10x8xbf16>
    %cst_82 = arith.constant dense<0.000000e+00> : vector<8x8xf32>
    %147 = tpu.matmul %144, %146, %cst_82 {dimension_numbers = #tpu.dot_dimension_numbers<[1], [0], [0], [1], [0, 0, 1, 1], [], []>} : vector<8x10xbf16>, vector<10x8xbf16>, vector<8x8xf32> -> vector<8x8xf32>
    %148 = arith.truncf %147 : vector<8x8xf32> to vector<8x8xbf16>
    %c0_83 = arith.constant 0 : index
    %c0_84 = arith.constant 0 : index
    %149 = vector.load %arg22[%c0_83, %c0_84] : memref<8x32xbf16, #tpu.memory_space<vmem>>, vector<8x8xbf16>
    tpu.vector_store %arg22[%c0_83, %c0_84], %148 {strides = array<i32>} : memref<8x32xbf16, #tpu.memory_space<vmem>>, vector<8x8xbf16>,
    %150 = vector.extract_strided_slice %125 {offsets = [0, 8], sizes = [8, 8], strides = [1, 1]} : vector<8x32xbf16> to vector<8x8xbf16>
    %c0_85 = arith.constant 0 : index
    %c8_86 = arith.constant 8 : index
    %c0_87 = arith.constant 0 : index
    %151 = vector.load %arg6[%c0_85, %c8_86, %c0_87] : memref<1x32x10xbf16, #tpu.memory_space<vmem>>, vector<1x8x10xbf16>
    %152 = vector.shape_cast %151 : vector<1x8x10xbf16> to vector<8x10xbf16>
    %cst_88 = arith.constant dense<0.000000e+00> : vector<8x10xf32>
    %153 = tpu.matmul %150, %152, %cst_88 {dimension_numbers = #tpu.dot_dimension_numbers<[1], [0], [0], [1], [0, 0, 1, 1], [], []>} : vector<8x8xbf16>, vector<8x10xbf16>, vector<8x10xf32> -> vector<8x10xf32>
    %154 = arith.addf %153, %128 : vector<8x10xf32>
    %cst_89 = arith.constant dense<0xFF800000> : vector<8xf32>
    %155 = vector.multi_reduction <maximumf>, %154, %cst_89 [1] : vector<8x10xf32> to vector<8xf32>
    %156 = vector.shape_cast %155 : vector<8xf32> to vector<8x1xf32>
    %157 = vector.broadcast %156 : vector<8x1xf32> to vector<8x10xf32>
    %158 = arith.subf %154, %157 : vector<8x10xf32>
    %159 = math.exp %158 : vector<8x10xf32>
    %cst_90 = arith.constant dense<0.000000e+00> : vector<8xf32>
    %160 = vector.multi_reduction <add>, %159, %cst_90 [1] : vector<8x10xf32> to vector<8xf32>
    %161 = vector.shape_cast %160 : vector<8xf32> to vector<8x1xf32>
    %162 = tpu.reciprocal %161 {approx = true} : vector<8x1xf32> -> vector<8x1xf32>
    %163 = vector.broadcast %162 : vector<8x1xf32> to vector<8x10xf32>
    %164 = arith.mulf %159, %163 : vector<8x10xf32>
    %165 = arith.truncf %164 : vector<8x10xf32> to vector<8x10xbf16>
    %c0_91 = arith.constant 0 : index
    %c0_92 = arith.constant 0 : index
    %c8_93 = arith.constant 8 : index
    %166 = vector.load %arg7[%c0_91, %c0_92, %c8_93] : memref<1x10x32xbf16, #tpu.memory_space<vmem>>, vector<1x10x8xbf16>
    %167 = vector.shape_cast %166 : vector<1x10x8xbf16> to vector<10x8xbf16>
    %cst_94 = arith.constant dense<0.000000e+00> : vector<8x8xf32>
    %168 = tpu.matmul %165, %167, %cst_94 {dimension_numbers = #tpu.dot_dimension_numbers<[1], [0], [0], [1], [0, 0, 1, 1], [], []>} : vector<8x10xbf16>, vector<10x8xbf16>, vector<8x8xf32> -> vector<8x8xf32>
    %169 = arith.truncf %168 : vector<8x8xf32> to vector<8x8xbf16>
    %c0_95 = arith.constant 0 : index
    %c8_96 = arith.constant 8 : index
    %170 = vector.load %arg22[%c0_95, %c8_96] : memref<8x32xbf16, #tpu.memory_space<vmem>>, vector<8x8xbf16>
    tpu.vector_store %arg22[%c0_95, %c8_96], %169 {strides = array<i32>} : memref<8x32xbf16, #tpu.memory_space<vmem>>, vector<8x8xbf16>,
    %171 = vector.extract_strided_slice %125 {offsets = [0, 16], sizes = [8, 8], strides = [1, 1]} : vector<8x32xbf16> to vector<8x8xbf16>
    %c0_97 = arith.constant 0 : index
    %c16_98 = arith.constant 16 : index
    %c0_99 = arith.constant 0 : index
    %172 = vector.load %arg6[%c0_97, %c16_98, %c0_99] : memref<1x32x10xbf16, #tpu.memory_space<vmem>>, vector<1x8x10xbf16>
    %173 = vector.shape_cast %172 : vector<1x8x10xbf16> to vector<8x10xbf16>
    %cst_100 = arith.constant dense<0.000000e+00> : vector<8x10xf32>
    %174 = tpu.matmul %171, %173, %cst_100 {dimension_numbers = #tpu.dot_dimension_numbers<[1], [0], [0], [1], [0, 0, 1, 1], [], []>} : vector<8x8xbf16>, vector<8x10xbf16>, vector<8x10xf32> -> vector<8x10xf32>
    %175 = arith.addf %174, %128 : vector<8x10xf32>
    %cst_101 = arith.constant dense<0xFF800000> : vector<8xf32>
    %176 = vector.multi_reduction <maximumf>, %175, %cst_101 [1] : vector<8x10xf32> to vector<8xf32>
    %177 = vector.shape_cast %176 : vector<8xf32> to vector<8x1xf32>
    %178 = vector.broadcast %177 : vector<8x1xf32> to vector<8x10xf32>
    %179 = arith.subf %175, %178 : vector<8x10xf32>
    %180 = math.exp %179 : vector<8x10xf32>
    %cst_102 = arith.constant dense<0.000000e+00> : vector<8xf32>
    %181 = vector.multi_reduction <add>, %180, %cst_102 [1] : vector<8x10xf32> to vector<8xf32>
    %182 = vector.shape_cast %181 : vector<8xf32> to vector<8x1xf32>
    %183 = tpu.reciprocal %182 {approx = true} : vector<8x1xf32> -> vector<8x1xf32>
    %184 = vector.broadcast %183 : vector<8x1xf32> to vector<8x10xf32>
    %185 = arith.mulf %180, %184 : vector<8x10xf32>
    %186 = arith.truncf %185 : vector<8x10xf32> to vector<8x10xbf16>
    %c0_103 = arith.constant 0 : index
    %c0_104 = arith.constant 0 : index
    %c16_105 = arith.constant 16 : index
    %187 = vector.load %arg7[%c0_103, %c0_104, %c16_105] : memref<1x10x32xbf16, #tpu.memory_space<vmem>>, vector<1x10x8xbf16>
    %188 = vector.shape_cast %187 : vector<1x10x8xbf16> to vector<10x8xbf16>
    %cst_106 = arith.constant dense<0.000000e+00> : vector<8x8xf32>
    %189 = tpu.matmul %186, %188, %cst_106 {dimension_numbers = #tpu.dot_dimension_numbers<[1], [0], [0], [1], [0, 0, 1, 1], [], []>} : vector<8x10xbf16>, vector<10x8xbf16>, vector<8x8xf32> -> vector<8x8xf32>
    %190 = arith.truncf %189 : vector<8x8xf32> to vector<8x8xbf16>
    %c0_107 = arith.constant 0 : index
    %c16_108 = arith.constant 16 : index
    %191 = vector.load %arg22[%c0_107, %c16_108] : memref<8x32xbf16, #tpu.memory_space<vmem>>, vector<8x8xbf16>
    tpu.vector_store %arg22[%c0_107, %c16_108], %190 {strides = array<i32>} : memref<8x32xbf16, #tpu.memory_space<vmem>>, vector<8x8xbf16>,
    %192 = vector.extract_strided_slice %125 {offsets = [0, 24], sizes = [8, 8], strides = [1, 1]} : vector<8x32xbf16> to vector<8x8xbf16>
    %c0_109 = arith.constant 0 : index
    %c24_110 = arith.constant 24 : index
    %c0_111 = arith.constant 0 : index
    %193 = vector.load %arg6[%c0_109, %c24_110, %c0_111] : memref<1x32x10xbf16, #tpu.memory_space<vmem>>, vector<1x8x10xbf16>
    %194 = vector.shape_cast %193 : vector<1x8x10xbf16> to vector<8x10xbf16>
    %cst_112 = arith.constant dense<0.000000e+00> : vector<8x10xf32>
    %195 = tpu.matmul %192, %194, %cst_112 {dimension_numbers = #tpu.dot_dimension_numbers<[1], [0], [0], [1], [0, 0, 1, 1], [], []>} : vector<8x8xbf16>, vector<8x10xbf16>, vector<8x10xf32> -> vector<8x10xf32>
    %196 = arith.addf %195, %128 : vector<8x10xf32>
    %cst_113 = arith.constant dense<0xFF800000> : vector<8xf32>
    %197 = vector.multi_reduction <maximumf>, %196, %cst_113 [1] : vector<8x10xf32> to vector<8xf32>
    %198 = vector.shape_cast %197 : vector<8xf32> to vector<8x1xf32>
    %199 = vector.broadcast %198 : vector<8x1xf32> to vector<8x10xf32>
    %200 = arith.subf %196, %199 : vector<8x10xf32>
    %201 = math.exp %200 : vector<8x10xf32>
    %cst_114 = arith.constant dense<0.000000e+00> : vector<8xf32>
    %202 = vector.multi_reduction <add>, %201, %cst_114 [1] : vector<8x10xf32> to vector<8xf32>
    %203 = vector.shape_cast %202 : vector<8xf32> to vector<8x1xf32>
    %204 = tpu.reciprocal %203 {approx = true} : vector<8x1xf32> -> vector<8x1xf32>
    %205 = vector.broadcast %204 : vector<8x1xf32> to vector<8x10xf32>
    %206 = arith.mulf %201, %205 : vector<8x10xf32>
    %207 = arith.truncf %206 : vector<8x10xf32> to vector<8x10xbf16>
    %c0_115 = arith.constant 0 : index
    %c0_116 = arith.constant 0 : index
    %c24_117 = arith.constant 24 : index
    %208 = vector.load %arg7[%c0_115, %c0_116, %c24_117] : memref<1x10x32xbf16, #tpu.memory_space<vmem>>, vector<1x10x8xbf16>
    %209 = vector.shape_cast %208 : vector<1x10x8xbf16> to vector<10x8xbf16>
    %cst_118 = arith.constant dense<0.000000e+00> : vector<8x8xf32>
    %210 = tpu.matmul %207, %209, %cst_118 {dimension_numbers = #tpu.dot_dimension_numbers<[1], [0], [0], [1], [0, 0, 1, 1], [], []>} : vector<8x10xbf16>, vector<10x8xbf16>, vector<8x8xf32> -> vector<8x8xf32>
    %211 = arith.truncf %210 : vector<8x8xf32> to vector<8x8xbf16>
    %c0_119 = arith.constant 0 : index
    %c24_120 = arith.constant 24 : index
    %212 = vector.load %arg22[%c0_119, %c24_120] : memref<8x32xbf16, #tpu.memory_space<vmem>>, vector<8x8xbf16>
    tpu.vector_store %arg22[%c0_119, %c24_120], %211 {strides = array<i32>} : memref<8x32xbf16, #tpu.memory_space<vmem>>, vector<8x8xbf16>,
    %c0_121 = arith.constant 0 : index
    %c0_122 = arith.constant 0 : index
    %213 = vector.load %arg22[%c0_121, %c0_122] : memref<8x32xbf16, #tpu.memory_space<vmem>>, vector<8x32xbf16>
    %c0_123 = arith.constant 0 : index
    %c0_124 = arith.constant 0 : index
    %214 = vector.load %arg14[%c0_123, %c0_124] : memref<32x32xbf16, #tpu.memory_space<vmem>>, vector<32x32xbf16>
    %cst_125 = arith.constant dense<0.000000e+00> : vector<8x32xf32>
    %215 = tpu.matmul %213, %214, %cst_125 {dimension_numbers = #tpu.dot_dimension_numbers<[1], [0], [0], [1], [0, 0, 1, 1], [], []>} : vector<8x32xbf16>, vector<32x32xbf16>, vector<8x32xf32> -> vector<8x32xf32>
    %216 = arith.addf %94, %215 : vector<8x32xf32>
    %c0_126 = arith.constant 0 : index
    %c0_127 = arith.constant 0 : index
    %217 = vector.load %arg15[%c0_126, %c0_127] : memref<1x32xf32, #tpu.memory_space<vmem>>, vector<1x32xf32>
    %c0_128 = arith.constant 0 : index
    %c0_129 = arith.constant 0 : index
    %218 = vector.load %arg16[%c0_128, %c0_129] : memref<1x32xf32, #tpu.memory_space<vmem>>, vector<1x32xf32>
    %cst_130 = arith.constant dense<0.000000e+00> : vector<8xf32>
    %219 = vector.multi_reduction <add>, %216, %cst_130 [1] : vector<8x32xf32> to vector<8xf32>
    %220 = vector.shape_cast %219 : vector<8xf32> to vector<8x1xf32>
    %cst_131 = arith.constant 3.200000e+01 : f32
    %221 = vector.broadcast %cst_131 : f32 to vector<8x1xf32>
    %222 = arith.divf %220, %221 : vector<8x1xf32>
    %223 = vector.broadcast %222 : vector<8x1xf32> to vector<8x32xf32>
    %224 = arith.subf %216, %223 : vector<8x32xf32>
    %225 = arith.mulf %224, %224 : vector<8x32xf32>
    %cst_132 = arith.constant dense<0.000000e+00> : vector<8xf32>
    %226 = vector.multi_reduction <add>, %225, %cst_132 [1] : vector<8x32xf32> to vector<8xf32>
    %227 = vector.shape_cast %226 : vector<8xf32> to vector<8x1xf32>
    %cst_133 = arith.constant 0.0322580636 : f32
    %228 = vector.broadcast %cst_133 : f32 to vector<8x1xf32>
    %229 = arith.mulf %227, %228 : vector<8x1xf32>
    %230 = math.sqrt %229 : vector<8x1xf32>
    %cst_134 = arith.constant 9.99999997E-7 : f32
    %231 = vector.broadcast %cst_134 : f32 to vector<8x1xf32>
    %232 = arith.addf %230, %231 : vector<8x1xf32>
    %233 = tpu.reciprocal %232 {approx = true} : vector<8x1xf32> -> vector<8x1xf32>
    %234 = vector.broadcast %222 : vector<8x1xf32> to vector<8x32xf32>
    %235 = arith.subf %216, %234 : vector<8x32xf32>
    %236 = vector.broadcast %233 : vector<8x1xf32> to vector<8x32xf32>
    %237 = arith.mulf %235, %236 : vector<8x32xf32>
    %238 = vector.broadcast %217 : vector<1x32xf32> to vector<8x32xf32>
    %239 = arith.mulf %238, %237 : vector<8x32xf32>
    %240 = vector.broadcast %218 : vector<1x32xf32> to vector<8x32xf32>
    %241 = arith.addf %239, %240 : vector<8x32xf32>
    %242 = arith.truncf %241 : vector<8x32xf32> to vector<8x32xbf16>
    %c0_135 = arith.constant 0 : index
    %c0_136 = arith.constant 0 : index
    %243 = vector.load %arg17[%c0_135, %c0_136] : memref<32x64xbf16, #tpu.memory_space<vmem>>, vector<32x64xbf16>
    %cst_137 = arith.constant dense<0.000000e+00> : vector<8x64xf32>
    %244 = tpu.matmul %242, %243, %cst_137 {dimension_numbers = #tpu.dot_dimension_numbers<[1], [0], [0], [1], [0, 0, 1, 1], [], []>} : vector<8x32xbf16>, vector<32x64xbf16>, vector<8x64xf32> -> vector<8x64xf32>
    %c0_138 = arith.constant 0 : index
    %c0_139 = arith.constant 0 : index
    %245 = vector.load %arg18[%c0_138, %c0_139] : memref<1x64xf32, #tpu.memory_space<vmem>>, vector<1x64xf32>
    %246 = vector.broadcast %245 : vector<1x64xf32> to vector<8x64xf32>
    %247 = arith.addf %244, %246 : vector<8x64xf32>
    %cst_140 = arith.constant 0.000000e+00 : f32
    %248 = vector.broadcast %cst_140 : f32 to vector<8x64xf32>
    %249 = arith.maximumf %247, %248 : vector<8x64xf32>
    %250 = arith.truncf %249 : vector<8x64xf32> to vector<8x64xbf16>
    %c0_141 = arith.constant 0 : index
    %c0_142 = arith.constant 0 : index
    %251 = vector.load %arg19[%c0_141, %c0_142] : memref<64x32xbf16, #tpu.memory_space<vmem>>, vector<64x32xbf16>
    %cst_143 = arith.constant dense<0.000000e+00> : vector<8x32xf32>
    %252 = tpu.matmul %250, %251, %cst_143 {dimension_numbers = #tpu.dot_dimension_numbers<[1], [0], [0], [1], [0, 0, 1, 1], [], []>} : vector<8x64xbf16>, vector<64x32xbf16>, vector<8x32xf32> -> vector<8x32xf32>
    %c0_144 = arith.constant 0 : index
    %c0_145 = arith.constant 0 : index
    %253 = vector.load %arg20[%c0_144, %c0_145] : memref<1x32xf32, #tpu.memory_space<vmem>>, vector<1x32xf32>
    %254 = vector.broadcast %253 : vector<1x32xf32> to vector<8x32xf32>
    %255 = arith.addf %252, %254 : vector<8x32xf32>
    %256 = arith.addf %216, %255 : vector<8x32xf32>
    %c0_146 = arith.constant 0 : index
    %c0_147 = arith.constant 0 : index
    %c0_148 = arith.constant 0 : index
    %257 = vector.load %arg21[%c0_146, %c0_147, %c0_148] : memref<1x8x32xf32, #tpu.memory_space<vmem>>, vector<1x8x32xf32>
    %258 = vector.shape_cast %257 : vector<1x8x32xf32> to vector<8x32xf32>
    %259 = vector.shape_cast %256 : vector<8x32xf32> to vector<1x8x32xf32>
    tpu.vector_store %arg21[%c0_146, %c0_147, %c0_148], %259 {strides = array<i32>} : memref<1x8x32xf32, #tpu.memory_space<vmem>>, vector<1x8x32xf32>,
    return
  }
  func.func @transform_0(%arg0: i32, %arg1: i32) -> (i32, i32, i32) {
    %c0_i32 = arith.constant 0 : i32
    %c0_i32_0 = arith.constant 0 : i32
    return %arg0, %arg1, %c0_i32 : i32, i32, i32
  }
  func.func @transform_1(%arg0: i32, %arg1: i32) -> (i32, i32, i32) {
    %c0_i32 = arith.constant 0 : i32
    %c0_i32_0 = arith.constant 0 : i32
    return %arg0, %arg1, %c0_i32 : i32, i32, i32
  }
  func.func @transform_2(%arg0: i32, %arg1: i32) -> (i32, i32, i32) {
    %c0_i32 = arith.constant 0 : i32
    %c0_i32_0 = arith.constant 0 : i32
    %c0_i32_1 = arith.constant 0 : i32
    return %arg0, %c0_i32, %c0_i32_0 : i32, i32, i32
  }
  func.func @transform_3(%arg0: i32, %arg1: i32) -> (i32, i32, i32) {
    %c0_i32 = arith.constant 0 : i32
    %c0_i32_0 = arith.constant 0 : i32
    %c0_i32_1 = arith.constant 0 : i32
    return %arg0, %c0_i32, %c0_i32_0 : i32, i32, i32
  }
  func.func @transform_4(%arg0: i32, %arg1: i32) -> (i32, i32, i32) {
    %c0_i32 = arith.constant 0 : i32
    %c0_i32_0 = arith.constant 0 : i32
    %c0_i32_1 = arith.constant 0 : i32
    return %arg0, %c0_i32, %c0_i32_0 : i32, i32, i32
  }
  func.func @transform_5(%arg0: i32, %arg1: i32) -> (i32, i32, i32) {
    %c0_i32 = arith.constant 0 : i32
    %c0_i32_0 = arith.constant 0 : i32
    %c0_i32_1 = arith.constant 0 : i32
    return %arg0, %c0_i32, %c0_i32_0 : i32, i32, i32
  }
  func.func @transform_6(%arg0: i32, %arg1: i32) -> (i32, i32, i32) {
    %c0_i32 = arith.constant 0 : i32
    %c0_i32_0 = arith.constant 0 : i32
    return %arg0, %arg1, %c0_i32 : i32, i32, i32
  }
  func.func @transform_7(%arg0: i32, %arg1: i32) -> (i32, i32, i32) {
    %c0_i32 = arith.constant 0 : i32
    %c0_i32_0 = arith.constant 0 : i32
    return %arg0, %arg1, %c0_i32 : i32, i32, i32
  }
  func.func @transform_8(%arg0: i32, %arg1: i32) -> (i32, i32) {
    %c0_i32 = arith.constant 0 : i32
    %c0_i32_0 = arith.constant 0 : i32
    %c0_i32_1 = arith.constant 0 : i32
    return %c0_i32, %c0_i32_0 : i32, i32
  }
  func.func @transform_9(%arg0: i32, %arg1: i32) -> (i32, i32) {
    %c0_i32 = arith.constant 0 : i32
    %c0_i32_0 = arith.constant 0 : i32
    %c0_i32_1 = arith.constant 0 : i32
    return %c0_i32, %c0_i32_0 : i32, i32
  }
  func.func @transform_10(%arg0: i32, %arg1: i32) -> (i32, i32) {
    %c0_i32 = arith.constant 0 : i32
    %c0_i32_0 = arith.constant 0 : i32
    %c0_i32_1 = arith.constant 0 : i32
    return %c0_i32, %c0_i32_0 : i32, i32
  }
  func.func @transform_11(%arg0: i32, %arg1: i32) -> (i32, i32) {
    %c0_i32 = arith.constant 0 : i32
    %c0_i32_0 = arith.constant 0 : i32
    %c0_i32_1 = arith.constant 0 : i32
    return %c0_i32, %c0_i32_0 : i32, i32
  }
  func.func @transform_12(%arg0: i32, %arg1: i32) -> (i32, i32) {
    %c0_i32 = arith.constant 0 : i32
    %c0_i32_0 = arith.constant 0 : i32
    %c0_i32_1 = arith.constant 0 : i32
    return %c0_i32, %c0_i32_0 : i32, i32
  }
  func.func @transform_13(%arg0: i32, %arg1: i32) -> (i32, i32) {
    %c0_i32 = arith.constant 0 : i32
    %c0_i32_0 = arith.constant 0 : i32
    %c0_i32_1 = arith.constant 0 : i32
    return %c0_i32, %c0_i32_0 : i32, i32
  }
  func.func @transform_14(%arg0: i32, %arg1: i32) -> (i32, i32) {
    %c0_i32 = arith.constant 0 : i32
    %c0_i32_0 = arith.constant 0 : i32
    %c0_i32_1 = arith.constant 0 : i32
    return %c0_i32, %c0_i32_0 : i32, i32
  }
  func.func @transform_15(%arg0: i32, %arg1: i32) -> (i32, i32) {
    %c0_i32 = arith.constant 0 : i32
    %c0_i32_0 = arith.constant 0 : i32
    %c0_i32_1 = arith.constant 0 : i32
    return %c0_i32, %c0_i32_0 : i32, i32
  }
  func.func @transform_16(%arg0: i32, %arg1: i32) -> (i32, i32) {
    %c0_i32 = arith.constant 0 : i32
    %c0_i32_0 = arith.constant 0 : i32
    %c0_i32_1 = arith.constant 0 : i32
    return %c0_i32, %c0_i32_0 : i32, i32
  }
  func.func @transform_17(%arg0: i32, %arg1: i32) -> (i32, i32) {
    %c0_i32 = arith.constant 0 : i32
    %c0_i32_0 = arith.constant 0 : i32
    %c0_i32_1 = arith.constant 0 : i32
    return %c0_i32, %c0_i32_0 : i32, i32
  }
  func.func @transform_18(%arg0: i32, %arg1: i32) -> (i32, i32) {
    %c0_i32 = arith.constant 0 : i32
    %c0_i32_0 = arith.constant 0 : i32
    %c0_i32_1 = arith.constant 0 : i32
    return %c0_i32, %c0_i32_0 : i32, i32
  }
  func.func @transform_19(%arg0: i32, %arg1: i32) -> (i32, i32, i32) {
    %c0_i32 = arith.constant 0 : i32
    %c0_i32_0 = arith.constant 0 : i32
    return %arg0, %arg1, %c0_i32 : i32, i32, i32
  }
}

module attributes {stable_mosaic.version = 11 : i64} {
  func.func @decoder_block_kernel(%arg0: i32, %arg1: i32, %arg2: memref<1x8x32xf32, #tpu.memory_space<vmem>>, %arg3: memref<1x8x32xbf16, #tpu.memory_space<vmem>>, %arg4: memref<1x32x8xbf16, #tpu.memory_space<vmem>>, %arg5: memref<1x8x32xbf16, #tpu.memory_space<vmem>>, %arg6: memref<1x32x10xbf16, #tpu.memory_space<vmem>>, %arg7: memref<1x10x32xbf16, #tpu.memory_space<vmem>>, %arg8: memref<1x8x8xbf16, #tpu.memory_space<vmem>>, %arg9: memref<1x8x10xbf16, #tpu.memory_space<vmem>>, %arg10: memref<32x32xbf16, #tpu.memory_space<vmem>>, %arg11: memref<1x32xf32, #tpu.memory_space<vmem>>, %arg12: memref<1x32xf32, #tpu.memory_space<vmem>>, %arg13: memref<32x32xbf16, #tpu.memory_space<vmem>>, %arg14: memref<32x32xbf16, #tpu.memory_space<vmem>>, %arg15: memref<1x32xf32, #tpu.memory_space<vmem>>, %arg16: memref<1x32xf32, #tpu.memory_space<vmem>>, %arg17: memref<32x64xbf16, #tpu.memory_space<vmem>>, %arg18: memref<1x64xf32, #tpu.memory_space<vmem>>, %arg19: memref<64x32xbf16, #tpu.memory_space<vmem>>, %arg20: memref<1x32xf32, #tpu.memory_space<vmem>>, %arg21: memref<1x8x32xf32, #tpu.memory_space<vmem>>, %arg22: memref<8x32xbf16, #tpu.memory_space<vmem>>) attributes {dimension_semantics = [#tpu.dimension_semantics<parallel>, #tpu.dimension_semantics<parallel>], iteration_bounds = array<i64: 2, 1>, scalar_prefetch = 0 : i64, scratch_operands = 1 : i64, tpu.core_type = #tpu.core_type<tc>, window_params = [{transform_indices = @transform_0, window_bounds = array<i64: 1, 8, 32>}, {transform_indices = @transform_1, window_bounds = array<i64: 1, 8, 32>}, {transform_indices = @transform_2, window_bounds = array<i64: 1, 32, 8>}, {transform_indices = @transform_3, window_bounds = array<i64: 1, 8, 32>}, {transform_indices = @transform_4, window_bounds = array<i64: 1, 32, 10>}, {transform_indices = @transform_5, window_bounds = array<i64: 1, 10, 32>}, {transform_indices = @transform_6, window_bounds = array<i64: 1, 8, 8>}, {transform_indices = @transform_7, window_bounds = array<i64: 1, 8, 10>}, {pipeline_mode = #tpu.pipeline_mode<synchronous>, transform_indices = @transform_8, window_bounds = array<i64: 32, 32>}, {pipeline_mode = #tpu.pipeline_mode<synchronous>, transform_indices = @transform_9, window_bounds = array<i64: 1, 32>}, {pipeline_mode = #tpu.pipeline_mode<synchronous>, transform_indices = @transform_10, window_bounds = array<i64: 1, 32>}, {pipeline_mode = #tpu.pipeline_mode<synchronous>, transform_indices = @transform_11, window_bounds = array<i64: 32, 32>}, {pipeline_mode = #tpu.pipeline_mode<synchronous>, transform_indices = @transform_12, window_bounds = array<i64: 32, 32>}, {pipeline_mode = #tpu.pipeline_mode<synchronous>, transform_indices = @transform_13, window_bounds = array<i64: 1, 32>}, {pipeline_mode = #tpu.pipeline_mode<synchronous>, transform_indices = @transform_14, window_bounds = array<i64: 1, 32>}, {pipeline_mode = #tpu.pipeline_mode<synchronous>, transform_indices = @transform_15, window_bounds = array<i64: 32, 64>}, {pipeline_mode = #tpu.pipeline_mode<synchronous>, transform_indices = @transform_16, window_bounds = array<i64: 1, 64>}, {pipeline_mode = #tpu.pipeline_mode<synchronous>, transform_indices = @transform_17, window_bounds = array<i64: 64, 32>}, {pipeline_mode = #tpu.pipeline_mode<synchronous>, transform_indices = @transform_18, window_bounds = array<i64: 1, 32>}, {transform_indices = @transform_19, window_bounds = array<i64: 1, 8, 32>}]} {
    %c0 = arith.constant 0 : index
    %c0_0 = arith.constant 0 : index
    %c0_1 = arith.constant 0 : index
    %0 = vector.load %arg2[%c0, %c0_0, %c0_1] : memref<1x8x32xf32, #tpu.memory_space<vmem>>, vector<1x8x32xf32>
    %1 = vector.shape_cast %0 : vector<1x8x32xf32> to vector<8x32xf32>
    %c0_2 = arith.constant 0 : index
    %c0_3 = arith.constant 0 : index
    %c0_4 = arith.constant 0 : index
    %2 = vector.load %arg3[%c0_2, %c0_3, %c0_4] : memref<1x8x32xbf16, #tpu.memory_space<vmem>>, vector<1x8x32xbf16>
    %3 = vector.shape_cast %2 : vector<1x8x32xbf16> to vector<8x32xbf16>
    %c0_5 = arith.constant 0 : index
    %c0_6 = arith.constant 0 : index
    %c0_7 = arith.constant 0 : index
    %4 = vector.load %arg8[%c0_5, %c0_6, %c0_7] : memref<1x8x8xbf16, #tpu.memory_space<vmem>>, vector<1x8x8xbf16>
    %5 = vector.shape_cast %4 : vector<1x8x8xbf16> to vector<8x8xbf16>
    %6 = arith.extf %5 : vector<8x8xbf16> to vector<8x8xf32>
    %7 = vector.extract_strided_slice %3 {offsets = [0, 0], sizes = [8, 8], strides = [1, 1]} : vector<8x32xbf16> to vector<8x8xbf16>
    %c0_8 = arith.constant 0 : index
    %c0_9 = arith.constant 0 : index
    %c0_10 = arith.constant 0 : index
    %8 = vector.load %arg4[%c0_8, %c0_9, %c0_10] : memref<1x32x8xbf16, #tpu.memory_space<vmem>>, vector<1x8x8xbf16>
    %9 = vector.shape_cast %8 : vector<1x8x8xbf16> to vector<8x8xbf16>
    %cst = arith.constant dense<0.000000e+00> : vector<8x8xf32>
    %10 = tpu.matmul %7, %9, %cst {dimension_numbers = #tpu.dot_dimension_numbers<[1], [0], [0], [1], [0, 0, 1, 1], [], []>} : vector<8x8xbf16>, vector<8x8xbf16>, vector<8x8xf32> -> vector<8x8xf32>
    %11 = arith.addf %10, %6 : vector<8x8xf32>
    %cst_11 = arith.constant dense<0xFF800000> : vector<8xf32>
    %12 = vector.multi_reduction <maximumf>, %11, %cst_11 [1] : vector<8x8xf32> to vector<8xf32>
    %13 = vector.shape_cast %12 : vector<8xf32> to vector<8x1xf32>
    %14 = vector.broadcast %13 : vector<8x1xf32> to vector<8x8xf32>
    %15 = arith.subf %11, %14 : vector<8x8xf32>
    %16 = math.exp %15 : vector<8x8xf32>
    %cst_12 = arith.constant dense<0.000000e+00> : vector<8xf32>
    %17 = vector.multi_reduction <add>, %16, %cst_12 [1] : vector<8x8xf32> to vector<8xf32>
    %18 = vector.shape_cast %17 : vector<8xf32> to vector<8x1xf32>
    %19 = tpu.reciprocal %18 {approx = true} : vector<8x1xf32> -> vector<8x1xf32>
    %20 = vector.broadcast %19 : vector<8x1xf32> to vector<8x8xf32>
    %21 = arith.mulf %16, %20 : vector<8x8xf32>
    %22 = arith.truncf %21 : vector<8x8xf32> to vector<8x8xbf16>
    %c0_13 = arith.constant 0 : index
    %c0_14 = arith.constant 0 : index
    %c0_15 = arith.constant 0 : index
    %23 = vector.load %arg5[%c0_13, %c0_14, %c0_15] : memref<1x8x32xbf16, #tpu.memory_space<vmem>>, vector<1x8x8xbf16>
    %24 = vector.shape_cast %23 : vector<1x8x8xbf16> to vector<8x8xbf16>
    %cst_16 = arith.constant dense<0.000000e+00> : vector<8x8xf32>
    %25 = tpu.matmul %22, %24, %cst_16 {dimension_numbers = #tpu.dot_dimension_numbers<[1], [0], [0], [1], [0, 0, 1, 1], [], []>} : vector<8x8xbf16>, vector<8x8xbf16>, vector<8x8xf32> -> vector<8x8xf32>
    %26 = arith.truncf %25 : vector<8x8xf32> to vector<8x8xbf16>
    %c0_17 = arith.constant 0 : index
    %c0_18 = arith.constant 0 : index
    %27 = vector.load %arg22[%c0_17, %c0_18] : memref<8x32xbf16, #tpu.memory_space<vmem>>, vector<8x8xbf16>
    tpu.vector_store %arg22[%c0_17, %c0_18], %26 {strides = array<i32>} : memref<8x32xbf16, #tpu.memory_space<vmem>>, vector<8x8xbf16>,
    %28 = vector.extract_strided_slice %3 {offsets = [0, 8], sizes = [8, 8], strides = [1, 1]} : vector<8x32xbf16> to vector<8x8xbf16>
    %c0_19 = arith.constant 0 : index
    %c8 = arith.constant 8 : index
    %c0_20 = arith.constant 0 : index
    %29 = vector.load %arg4[%c0_19, %c8, %c0_20] : memref<1x32x8xbf16, #tpu.memory_space<vmem>>, vector<1x8x8xbf16>
    %30 = vector.shape_cast %29 : vector<1x8x8xbf16> to vector<8x8xbf16>
    %cst_21 = arith.constant dense<0.000000e+00> : vector<8x8xf32>
    %31 = tpu.matmul %28, %30, %cst_21 {dimension_numbers = #tpu.dot_dimension_numbers<[1], [0], [0], [1], [0, 0, 1, 1], [], []>} : vector<8x8xbf16>, vector<8x8xbf16>, vector<8x8xf32> -> vector<8x8xf32>
    %32 = arith.addf %31, %6 : vector<8x8xf32>
    %cst_22 = arith.constant dense<0xFF800000> : vector<8xf32>
    %33 = vector.multi_reduction <maximumf>, %32, %cst_22 [1] : vector<8x8xf32> to vector<8xf32>
    %34 = vector.shape_cast %33 : vector<8xf32> to vector<8x1xf32>
    %35 = vector.broadcast %34 : vector<8x1xf32> to vector<8x8xf32>
    %36 = arith.subf %32, %35 : vector<8x8xf32>
    %37 = math.exp %36 : vector<8x8xf32>
    %cst_23 = arith.constant dense<0.000000e+00> : vector<8xf32>
    %38 = vector.multi_reduction <add>, %37, %cst_23 [1] : vector<8x8xf32> to vector<8xf32>
    %39 = vector.shape_cast %38 : vector<8xf32> to vector<8x1xf32>
    %40 = tpu.reciprocal %39 {approx = true} : vector<8x1xf32> -> vector<8x1xf32>
    %41 = vector.broadcast %40 : vector<8x1xf32> to vector<8x8xf32>
    %42 = arith.mulf %37, %41 : vector<8x8xf32>
    %43 = arith.truncf %42 : vector<8x8xf32> to vector<8x8xbf16>
    %c0_24 = arith.constant 0 : index
    %c0_25 = arith.constant 0 : index
    %c8_26 = arith.constant 8 : index
    %44 = vector.load %arg5[%c0_24, %c0_25, %c8_26] : memref<1x8x32xbf16, #tpu.memory_space<vmem>>, vector<1x8x8xbf16>
    %45 = vector.shape_cast %44 : vector<1x8x8xbf16> to vector<8x8xbf16>
    %cst_27 = arith.constant dense<0.000000e+00> : vector<8x8xf32>
    %46 = tpu.matmul %43, %45, %cst_27 {dimension_numbers = #tpu.dot_dimension_numbers<[1], [0], [0], [1], [0, 0, 1, 1], [], []>} : vector<8x8xbf16>, vector<8x8xbf16>, vector<8x8xf32> -> vector<8x8xf32>
    %47 = arith.truncf %46 : vector<8x8xf32> to vector<8x8xbf16>
    %c0_28 = arith.constant 0 : index
    %c8_29 = arith.constant 8 : index
    %48 = vector.load %arg22[%c0_28, %c8_29] : memref<8x32xbf16, #tpu.memory_space<vmem>>, vector<8x8xbf16>
    tpu.vector_store %arg22[%c0_28, %c8_29], %47 {strides = array<i32>} : memref<8x32xbf16, #tpu.memory_space<vmem>>, vector<8x8xbf16>,
    %49 = vector.extract_strided_slice %3 {offsets = [0, 16], sizes = [8, 8], strides = [1, 1]} : vector<8x32xbf16> to vector<8x8xbf16>
    %c0_30 = arith.constant 0 : index
    %c16 = arith.constant 16 : index
    %c0_31 = arith.constant 0 : index
    %50 = vector.load %arg4[%c0_30, %c16, %c0_31] : memref<1x32x8xbf16, #tpu.memory_space<vmem>>, vector<1x8x8xbf16>
    %51 = vector.shape_cast %50 : vector<1x8x8xbf16> to vector<8x8xbf16>
    %cst_32 = arith.constant dense<0.000000e+00> : vector<8x8xf32>
    %52 = tpu.matmul %49, %51, %cst_32 {dimension_numbers = #tpu.dot_dimension_numbers<[1], [0], [0], [1], [0, 0, 1, 1], [], []>} : vector<8x8xbf16>, vector<8x8xbf16>, vector<8x8xf32> -> vector<8x8xf32>
    %53 = arith.addf %52, %6 : vector<8x8xf32>
    %cst_33 = arith.constant dense<0xFF800000> : vector<8xf32>
    %54 = vector.multi_reduction <maximumf>, %53, %cst_33 [1] : vector<8x8xf32> to vector<8xf32>
    %55 = vector.shape_cast %54 : vector<8xf32> to vector<8x1xf32>
    %56 = vector.broadcast %55 : vector<8x1xf32> to vector<8x8xf32>
    %57 = arith.subf %53, %56 : vector<8x8xf32>
    %58 = math.exp %57 : vector<8x8xf32>
    %cst_34 = arith.constant dense<0.000000e+00> : vector<8xf32>
    %59 = vector.multi_reduction <add>, %58, %cst_34 [1] : vector<8x8xf32> to vector<8xf32>
    %60 = vector.shape_cast %59 : vector<8xf32> to vector<8x1xf32>
    %61 = tpu.reciprocal %60 {approx = true} : vector<8x1xf32> -> vector<8x1xf32>
    %62 = vector.broadcast %61 : vector<8x1xf32> to vector<8x8xf32>
    %63 = arith.mulf %58, %62 : vector<8x8xf32>
    %64 = arith.truncf %63 : vector<8x8xf32> to vector<8x8xbf16>
    %c0_35 = arith.constant 0 : index
    %c0_36 = arith.constant 0 : index
    %c16_37 = arith.constant 16 : index
    %65 = vector.load %arg5[%c0_35, %c0_36, %c16_37] : memref<1x8x32xbf16, #tpu.memory_space<vmem>>, vector<1x8x8xbf16>
    %66 = vector.shape_cast %65 : vector<1x8x8xbf16> to vector<8x8xbf16>
    %cst_38 = arith.constant dense<0.000000e+00> : vector<8x8xf32>
    %67 = tpu.matmul %64, %66, %cst_38 {dimension_numbers = #tpu.dot_dimension_numbers<[1], [0], [0], [1], [0, 0, 1, 1], [], []>} : vector<8x8xbf16>, vector<8x8xbf16>, vector<8x8xf32> -> vector<8x8xf32>
    %68 = arith.truncf %67 : vector<8x8xf32> to vector<8x8xbf16>
    %c0_39 = arith.constant 0 : index
    %c16_40 = arith.constant 16 : index
    %69 = vector.load %arg22[%c0_39, %c16_40] : memref<8x32xbf16, #tpu.memory_space<vmem>>, vector<8x8xbf16>
    tpu.vector_store %arg22[%c0_39, %c16_40], %68 {strides = array<i32>} : memref<8x32xbf16, #tpu.memory_space<vmem>>, vector<8x8xbf16>,
    %70 = vector.extract_strided_slice %3 {offsets = [0, 24], sizes = [8, 8], strides = [1, 1]} : vector<8x32xbf16> to vector<8x8xbf16>
    %c0_41 = arith.constant 0 : index
    %c24 = arith.constant 24 : index
    %c0_42 = arith.constant 0 : index
    %71 = vector.load %arg4[%c0_41, %c24, %c0_42] : memref<1x32x8xbf16, #tpu.memory_space<vmem>>, vector<1x8x8xbf16>
    %72 = vector.shape_cast %71 : vector<1x8x8xbf16> to vector<8x8xbf16>
    %cst_43 = arith.constant dense<0.000000e+00> : vector<8x8xf32>
    %73 = tpu.matmul %70, %72, %cst_43 {dimension_numbers = #tpu.dot_dimension_numbers<[1], [0], [0], [1], [0, 0, 1, 1], [], []>} : vector<8x8xbf16>, vector<8x8xbf16>, vector<8x8xf32> -> vector<8x8xf32>
    %74 = arith.addf %73, %6 : vector<8x8xf32>
    %cst_44 = arith.constant dense<0xFF800000> : vector<8xf32>
    %75 = vector.multi_reduction <maximumf>, %74, %cst_44 [1] : vector<8x8xf32> to vector<8xf32>
    %76 = vector.shape_cast %75 : vector<8xf32> to vector<8x1xf32>
    %77 = vector.broadcast %76 : vector<8x1xf32> to vector<8x8xf32>
    %78 = arith.subf %74, %77 : vector<8x8xf32>
    %79 = math.exp %78 : vector<8x8xf32>
    %cst_45 = arith.constant dense<0.000000e+00> : vector<8xf32>
    %80 = vector.multi_reduction <add>, %79, %cst_45 [1] : vector<8x8xf32> to vector<8xf32>
    %81 = vector.shape_cast %80 : vector<8xf32> to vector<8x1xf32>
    %82 = tpu.reciprocal %81 {approx = true} : vector<8x1xf32> -> vector<8x1xf32>
    %83 = vector.broadcast %82 : vector<8x1xf32> to vector<8x8xf32>
    %84 = arith.mulf %79, %83 : vector<8x8xf32>
    %85 = arith.truncf %84 : vector<8x8xf32> to vector<8x8xbf16>
    %c0_46 = arith.constant 0 : index
    %c0_47 = arith.constant 0 : index
    %c24_48 = arith.constant 24 : index
    %86 = vector.load %arg5[%c0_46, %c0_47, %c24_48] : memref<1x8x32xbf16, #tpu.memory_space<vmem>>, vector<1x8x8xbf16>
    %87 = vector.shape_cast %86 : vector<1x8x8xbf16> to vector<8x8xbf16>
    %cst_49 = arith.constant dense<0.000000e+00> : vector<8x8xf32>
    %88 = tpu.matmul %85, %87, %cst_49 {dimension_numbers = #tpu.dot_dimension_numbers<[1], [0], [0], [1], [0, 0, 1, 1], [], []>} : vector<8x8xbf16>, vector<8x8xbf16>, vector<8x8xf32> -> vector<8x8xf32>
    %89 = arith.truncf %88 : vector<8x8xf32> to vector<8x8xbf16>
    %c0_50 = arith.constant 0 : index
    %c24_51 = arith.constant 24 : index
    %90 = vector.load %arg22[%c0_50, %c24_51] : memref<8x32xbf16, #tpu.memory_space<vmem>>, vector<8x8xbf16>
    tpu.vector_store %arg22[%c0_50, %c24_51], %89 {strides = array<i32>} : memref<8x32xbf16, #tpu.memory_space<vmem>>, vector<8x8xbf16>,
    %c0_52 = arith.constant 0 : index
    %c0_53 = arith.constant 0 : index
    %91 = vector.load %arg22[%c0_52, %c0_53] : memref<8x32xbf16, #tpu.memory_space<vmem>>, vector<8x32xbf16>
    %c0_54 = arith.constant 0 : index
    %c0_55 = arith.constant 0 : index
    %92 = vector.load %arg10[%c0_54, %c0_55] : memref<32x32xbf16, #tpu.memory_space<vmem>>, vector<32x32xbf16>
    %cst_56 = arith.constant dense<0.000000e+00> : vector<8x32xf32>
    %93 = tpu.matmul %91, %92, %cst_56 {dimension_numbers = #tpu.dot_dimension_numbers<[1], [0], [0], [1], [0, 0, 1, 1], [], []>} : vector<8x32xbf16>, vector<32x32xbf16>, vector<8x32xf32> -> vector<8x32xf32>
    %94 = arith.addf %1, %93 : vector<8x32xf32>
    %c0_57 = arith.constant 0 : index
    %c0_58 = arith.constant 0 : index
    %95 = vector.load %arg11[%c0_57, %c0_58] : memref<1x32xf32, #tpu.memory_space<vmem>>, vector<1x32xf32>
    %c0_59 = arith.constant 0 : index
    %c0_60 = arith.constant 0 : index
    %96 = vector.load %arg12[%c0_59, %c0_60] : memref<1x32xf32, #tpu.memory_space<vmem>>, vector<1x32xf32>
    %cst_61 = arith.constant dense<0.000000e+00> : vector<8xf32>
    %97 = vector.multi_reduction <add>, %94, %cst_61 [1] : vector<8x32xf32> to vector<8xf32>
    %98 = vector.shape_cast %97 : vector<8xf32> to vector<8x1xf32>
    %cst_62 = arith.constant 3.200000e+01 : f32
    %99 = vector.broadcast %cst_62 : f32 to vector<8x1xf32>
    %100 = arith.divf %98, %99 : vector<8x1xf32>
    %101 = vector.broadcast %100 : vector<8x1xf32> to vector<8x32xf32>
    %102 = arith.subf %94, %101 : vector<8x32xf32>
    %103 = arith.mulf %102, %102 : vector<8x32xf32>
    %cst_63 = arith.constant dense<0.000000e+00> : vector<8xf32>
    %104 = vector.multi_reduction <add>, %103, %cst_63 [1] : vector<8x32xf32> to vector<8xf32>
    %105 = vector.shape_cast %104 : vector<8xf32> to vector<8x1xf32>
    %cst_64 = arith.constant 0.0322580636 : f32
    %106 = vector.broadcast %cst_64 : f32 to vector<8x1xf32>
    %107 = arith.mulf %105, %106 : vector<8x1xf32>
    %108 = math.sqrt %107 : vector<8x1xf32>
    %cst_65 = arith.constant 9.99999997E-7 : f32
    %109 = vector.broadcast %cst_65 : f32 to vector<8x1xf32>
    %110 = arith.addf %108, %109 : vector<8x1xf32>
    %111 = tpu.reciprocal %110 {approx = true} : vector<8x1xf32> -> vector<8x1xf32>
    %112 = vector.broadcast %100 : vector<8x1xf32> to vector<8x32xf32>
    %113 = arith.subf %94, %112 : vector<8x32xf32>
    %114 = vector.broadcast %111 : vector<8x1xf32> to vector<8x32xf32>
    %115 = arith.mulf %113, %114 : vector<8x32xf32>
    %116 = vector.broadcast %95 : vector<1x32xf32> to vector<8x32xf32>
    %117 = arith.mulf %116, %115 : vector<8x32xf32>
    %118 = vector.broadcast %96 : vector<1x32xf32> to vector<8x32xf32>
    %119 = arith.addf %117, %118 : vector<8x32xf32>
    %120 = arith.truncf %119 : vector<8x32xf32> to vector<8x32xbf16>
    %c0_66 = arith.constant 0 : index
    %c0_67 = arith.constant 0 : index
    %121 = vector.load %arg13[%c0_66, %c0_67] : memref<32x32xbf16, #tpu.memory_space<vmem>>, vector<32x32xbf16>
    %cst_68 = arith.constant dense<0.000000e+00> : vector<8x32xf32>
    %122 = tpu.matmul %120, %121, %cst_68 {dimension_numbers = #tpu.dot_dimension_numbers<[1], [0], [0], [1], [0, 0, 1, 1], [], []>} : vector<8x32xbf16>, vector<32x32xbf16>, vector<8x32xf32> -> vector<8x32xf32>
    %cst_69 = arith.constant 0.353553385 : f32
    %123 = vector.broadcast %cst_69 : f32 to vector<8x32xf32>
    %124 = arith.mulf %122, %123 : vector<8x32xf32>
    %125 = arith.truncf %124 : vector<8x32xf32> to vector<8x32xbf16>
    %c0_70 = arith.constant 0 : index
    %c0_71 = arith.constant 0 : index
    %c0_72 = arith.constant 0 : index
    %126 = vector.load %arg9[%c0_70, %c0_71, %c0_72] : memref<1x8x10xbf16, #tpu.memory_space<vmem>>, vector<1x8x10xbf16>
    %127 = vector.shape_cast %126 : vector<1x8x10xbf16> to vector<8x10xbf16>
    %128 = arith.extf %127 : vector<8x10xbf16> to vector<8x10xf32>
    %129 = vector.extract_strided_slice %125 {offsets = [0, 0], sizes = [8, 8], strides = [1, 1]} : vector<8x32xbf16> to vector<8x8xbf16>
    %c0_73 = arith.constant 0 : index
    %c0_74 = arith.constant 0 : index
    %c0_75 = arith.constant 0 : index
    %130 = vector.load %arg6[%c0_73, %c0_74, %c0_75] : memref<1x32x10xbf16, #tpu.memory_space<vmem>>, vector<1x8x10xbf16>
    %131 = vector.shape_cast %130 : vector<1x8x10xbf16> to vector<8x10xbf16>
    %cst_76 = arith.constant dense<0.000000e+00> : vector<8x10xf32>
    %132 = tpu.matmul %129, %131, %cst_76 {dimension_numbers = #tpu.dot_dimension_numbers<[1], [0], [0], [1], [0, 0, 1, 1], [], []>} : vector<8x8xbf16>, vector<8x10xbf16>, vector<8x10xf32> -> vector<8x10xf32>
    %133 = arith.addf %132, %128 : vector<8x10xf32>
    %cst_77 = arith.constant dense<0xFF800000> : vector<8xf32>
    %134 = vector.multi_reduction <maximumf>, %133, %cst_77 [1] : vector<8x10xf32> to vector<8xf32>
    %135 = vector.shape_cast %134 : vector<8xf32> to vector<8x1xf32>
    %136 = vector.broadcast %135 : vector<8x1xf32> to vector<8x10xf32>
    %137 = arith.subf %133, %136 : vector<8x10xf32>
    %138 = math.exp %137 : vector<8x10xf32>
    %cst_78 = arith.constant dense<0.000000e+00> : vector<8xf32>
    %139 = vector.multi_reduction <add>, %138, %cst_78 [1] : vector<8x10xf32> to vector<8xf32>
    %140 = vector.shape_cast %139 : vector<8xf32> to vector<8x1xf32>
    %141 = tpu.reciprocal %140 {approx = true} : vector<8x1xf32> -> vector<8x1xf32>
    %142 = vector.broadcast %141 : vector<8x1xf32> to vector<8x10xf32>
    %143 = arith.mulf %138, %142 : vector<8x10xf32>
    %144 = arith.truncf %143 : vector<8x10xf32> to vector<8x10xbf16>
    %c0_79 = arith.constant 0 : index
    %c0_80 = arith.constant 0 : index
    %c0_81 = arith.constant 0 : index
    %145 = vector.load %arg7[%c0_79, %c0_80, %c0_81] : memref<1x10x32xbf16, #tpu.memory_space<vmem>>, vector<1x10x8xbf16>
    %146 = vector.shape_cast %145 : vector<1x10x8xbf16> to vector<10x8xbf16>
    %cst_82 = arith.constant dense<0.000000e+00> : vector<8x8xf32>
    %147 = tpu.matmul %144, %146, %cst_82 {dimension_numbers = #tpu.dot_dimension_numbers<[1], [0], [0], [1], [0, 0, 1, 1], [], []>} : vector<8x10xbf16>, vector<10x8xbf16>, vector<8x8xf32> -> vector<8x8xf32>
    %148 = arith.truncf %147 : vector<8x8xf32> to vector<8x8xbf16>
    %c0_83 = arith.constant 0 : index
    %c0_84 = arith.constant 0 : index
    %149 = vector.load %arg22[%c0_83, %c0_84] : memref<8x32xbf16, #tpu.memory_space<vmem>>, vector<8x8xbf16>
    tpu.vector_store %arg22[%c0_83, %c0_84], %148 {strides = array<i32>} : memref<8x32xbf16, #tpu.memory_space<vmem>>, vector<8x8xbf16>,
    %150 = vector.extract_strided_slice %125 {offsets = [0, 8], sizes = [8, 8], strides = [1, 1]} : vector<8x32xbf16> to vector<8x8xbf16>
    %c0_85 = arith.constant 0 : index
    %c8_86 = arith.constant 8 : index
    %c0_87 = arith.constant 0 : index
    %151 = vector.load %arg6[%c0_85, %c8_86, %c0_87] : memref<1x32x10xbf16, #tpu.memory_space<vmem>>, vector<1x8x10xbf16>
    %152 = vector.shape_cast %151 : vector<1x8x10xbf16> to vector<8x10xbf16>
    %cst_88 = arith.constant dense<0.000000e+00> : vector<8x10xf32>
    %153 = tpu.matmul %150, %152, %cst_88 {dimension_numbers = #tpu.dot_dimension_numbers<[1], [0], [0], [1], [0, 0, 1, 1], [], []>} : vector<8x8xbf16>, vector<8x10xbf16>, vector<8x10xf32> -> vector<8x10xf32>
    %154 = arith.addf %153, %128 : vector<8x10xf32>
    %cst_89 = arith.constant dense<0xFF800000> : vector<8xf32>
    %155 = vector.multi_reduction <maximumf>, %154, %cst_89 [1] : vector<8x10xf32> to vector<8xf32>
    %156 = vector.shape_cast %155 : vector<8xf32> to vector<8x1xf32>
    %157 = vector.broadcast %156 : vector<8x1xf32> to vector<8x10xf32>
    %158 = arith.subf %154, %157 : vector<8x10xf32>
    %159 = math.exp %158 : vector<8x10xf32>
    %cst_90 = arith.constant dense<0.000000e+00> : vector<8xf32>
    %160 = vector.multi_reduction <add>, %159, %cst_90 [1] : vector<8x10xf32> to vector<8xf32>
    %161 = vector.shape_cast %160 : vector<8xf32> to vector<8x1xf32>
    %162 = tpu.reciprocal %161 {approx = true} : vector<8x1xf32> -> vector<8x1xf32>
    %163 = vector.broadcast %162 : vector<8x1xf32> to vector<8x10xf32>
    %164 = arith.mulf %159, %163 : vector<8x10xf32>
    %165 = arith.truncf %164 : vector<8x10xf32> to vector<8x10xbf16>
    %c0_91 = arith.constant 0 : index
    %c0_92 = arith.constant 0 : index
    %c8_93 = arith.constant 8 : index
    %166 = vector.load %arg7[%c0_91, %c0_92, %c8_93] : memref<1x10x32xbf16, #tpu.memory_space<vmem>>, vector<1x10x8xbf16>
    %167 = vector.shape_cast %166 : vector<1x10x8xbf16> to vector<10x8xbf16>
    %cst_94 = arith.constant dense<0.000000e+00> : vector<8x8xf32>
    %168 = tpu.matmul %165, %167, %cst_94 {dimension_numbers = #tpu.dot_dimension_numbers<[1], [0], [0], [1], [0, 0, 1, 1], [], []>} : vector<8x10xbf16>, vector<10x8xbf16>, vector<8x8xf32> -> vector<8x8xf32>
    %169 = arith.truncf %168 : vector<8x8xf32> to vector<8x8xbf16>
    %c0_95 = arith.constant 0 : index
    %c8_96 = arith.constant 8 : index
    %170 = vector.load %arg22[%c0_95, %c8_96] : memref<8x32xbf16, #tpu.memory_space<vmem>>, vector<8x8xbf16>
    tpu.vector_store %arg22[%c0_95, %c8_96], %169 {strides = array<i32>} : memref<8x32xbf16, #tpu.memory_space<vmem>>, vector<8x8xbf16>,
    %171 = vector.extract_strided_slice %125 {offsets = [0, 16], sizes = [8, 8], strides = [1, 1]} : vector<8x32xbf16> to vector<8x8xbf16>
    %c0_97 = arith.constant 0 : index
    %c16_98 = arith.constant 16 : index
    %c0_99 = arith.constant 0 : index
    %172 = vector.load %arg6[%c0_97, %c16_98, %c0_99] : memref<1x32x10xbf16, #tpu.memory_space<vmem>>, vector<1x8x10xbf16>
    %173 = vector.shape_cast %172 : vector<1x8x10xbf16> to vector<8x10xbf16>
    %cst_100 = arith.constant dense<0.000000e+00> : vector<8x10xf32>
    %174 = tpu.matmul %171, %173, %cst_100 {dimension_numbers = #tpu.dot_dimension_numbers<[1], [0], [0], [1], [0, 0, 1, 1], [], []>} : vector<8x8xbf16>, vector<8x10xbf16>, vector<8x10xf32> -> vector<8x10xf32>
    %175 = arith.addf %174, %128 : vector<8x10xf32>
    %cst_101 = arith.constant dense<0xFF800000> : vector<8xf32>
    %176 = vector.multi_reduction <maximumf>, %175, %cst_101 [1] : vector<8x10xf32> to vector<8xf32>
    %177 = vector.shape_cast %176 : vector<8xf32> to vector<8x1xf32>
    %178 = vector.broadcast %177 : vector<8x1xf32> to vector<8x10xf32>
    %179 = arith.subf %175, %178 : vector<8x10xf32>
    %180 = math.exp %179 : vector<8x10xf32>
    %cst_102 = arith.constant dense<0.000000e+00> : vector<8xf32>
    %181 = vector.multi_reduction <add>, %180, %cst_102 [1] : vector<8x10xf32> to vector<8xf32>
    %182 = vector.shape_cast %181 : vector<8xf32> to vector<8x1xf32>
    %183 = tpu.reciprocal %182 {approx = true} : vector<8x1xf32> -> vector<8x1xf32>
    %184 = vector.broadcast %183 : vector<8x1xf32> to vector<8x10xf32>
    %185 = arith.mulf %180, %184 : vector<8x10xf32>
    %186 = arith.truncf %185 : vector<8x10xf32> to vector<8x10xbf16>
    %c0_103 = arith.constant 0 : index
    %c0_104 = arith.constant 0 : index
    %c16_105 = arith.constant 16 : index
    %187 = vector.load %arg7[%c0_103, %c0_104, %c16_105] : memref<1x10x32xbf16, #tpu.memory_space<vmem>>, vector<1x10x8xbf16>
    %188 = vector.shape_cast %187 : vector<1x10x8xbf16> to vector<10x8xbf16>
    %cst_106 = arith.constant dense<0.000000e+00> : vector<8x8xf32>
    %189 = tpu.matmul %186, %188, %cst_106 {dimension_numbers = #tpu.dot_dimension_numbers<[1], [0], [0], [1], [0, 0, 1, 1], [], []>} : vector<8x10xbf16>, vector<10x8xbf16>, vector<8x8xf32> -> vector<8x8xf32>
    %190 = arith.truncf %189 : vector<8x8xf32> to vector<8x8xbf16>
    %c0_107 = arith.constant 0 : index
    %c16_108 = arith.constant 16 : index
    %191 = vector.load %arg22[%c0_107, %c16_108] : memref<8x32xbf16, #tpu.memory_space<vmem>>, vector<8x8xbf16>
    tpu.vector_store %arg22[%c0_107, %c16_108], %190 {strides = array<i32>} : memref<8x32xbf16, #tpu.memory_space<vmem>>, vector<8x8xbf16>,
    %192 = vector.extract_strided_slice %125 {offsets = [0, 24], sizes = [8, 8], strides = [1, 1]} : vector<8x32xbf16> to vector<8x8xbf16>
    %c0_109 = arith.constant 0 : index
    %c24_110 = arith.constant 24 : index
    %c0_111 = arith.constant 0 : index
    %193 = vector.load %arg6[%c0_109, %c24_110, %c0_111] : memref<1x32x10xbf16, #tpu.memory_space<vmem>>, vector<1x8x10xbf16>
    %194 = vector.shape_cast %193 : vector<1x8x10xbf16> to vector<8x10xbf16>
    %cst_112 = arith.constant dense<0.000000e+00> : vector<8x10xf32>
    %195 = tpu.matmul %192, %194, %cst_112 {dimension_numbers = #tpu.dot_dimension_numbers<[1], [0], [0], [1], [0, 0, 1, 1], [], []>} : vector<8x8xbf16>, vector<8x10xbf16>, vector<8x10xf32> -> vector<8x10xf32>
    %196 = arith.addf %195, %128 : vector<8x10xf32>
    %cst_113 = arith.constant dense<0xFF800000> : vector<8xf32>
    %197 = vector.multi_reduction <maximumf>, %196, %cst_113 [1] : vector<8x10xf32> to vector<8xf32>
    %198 = vector.shape_cast %197 : vector<8xf32> to vector<8x1xf32>
    %199 = vector.broadcast %198 : vector<8x1xf32> to vector<8x10xf32>
    %200 = arith.subf %196, %199 : vector<8x10xf32>
    %201 = math.exp %200 : vector<8x10xf32>
    %cst_114 = arith.constant dense<0.000000e+00> : vector<8xf32>
    %202 = vector.multi_reduction <add>, %201, %cst_114 [1] : vector<8x10xf32> to vector<8xf32>
    %203 = vector.shape_cast %202 : vector<8xf32> to vector<8x1xf32>
    %204 = tpu.reciprocal %203 {approx = true} : vector<8x1xf32> -> vector<8x1xf32>
    %205 = vector.broadcast %204 : vector<8x1xf32> to vector<8x10xf32>
    %206 = arith.mulf %201, %205 : vector<8x10xf32>
    %207 = arith.truncf %206 : vector<8x10xf32> to vector<8x10xbf16>
    %c0_115 = arith.constant 0 : index
    %c0_116 = arith.constant 0 : index
    %c24_117 = arith.constant 24 : index
    %208 = vector.load %arg7[%c0_115, %c0_116, %c24_117] : memref<1x10x32xbf16, #tpu.memory_space<vmem>>, vector<1x10x8xbf16>
    %209 = vector.shape_cast %208 : vector<1x10x8xbf16> to vector<10x8xbf16>
    %cst_118 = arith.constant dense<0.000000e+00> : vector<8x8xf32>
    %210 = tpu.matmul %207, %209, %cst_118 {dimension_numbers = #tpu.dot_dimension_numbers<[1], [0], [0], [1], [0, 0, 1, 1], [], []>} : vector<8x10xbf16>, vector<10x8xbf16>, vector<8x8xf32> -> vector<8x8xf32>
    %211 = arith.truncf %210 : vector<8x8xf32> to vector<8x8xbf16>
    %c0_119 = arith.constant 0 : index
    %c24_120 = arith.constant 24 : index
    %212 = vector.load %arg22[%c0_119, %c24_120] : memref<8x32xbf16, #tpu.memory_space<vmem>>, vector<8x8xbf16>
    tpu.vector_store %arg22[%c0_119, %c24_120], %211 {strides = array<i32>} : memref<8x32xbf16, #tpu.memory_space<vmem>>, vector<8x8xbf16>,
    %c0_121 = arith.constant 0 : index
    %c0_122 = arith.constant 0 : index
    %213 = vector.load %arg22[%c0_121, %c0_122] : memref<8x32xbf16, #tpu.memory_space<vmem>>, vector<8x32xbf16>
    %c0_123 = arith.constant 0 : index
    %c0_124 = arith.constant 0 : index
    %214 = vector.load %arg14[%c0_123, %c0_124] : memref<32x32xbf16, #tpu.memory_space<vmem>>, vector<32x32xbf16>
    %cst_125 = arith.constant dense<0.000000e+00> : vector<8x32xf32>
    %215 = tpu.matmul %213, %214, %cst_125 {dimension_numbers = #tpu.dot_dimension_numbers<[1], [0], [0], [1], [0, 0, 1, 1], [], []>} : vector<8x32xbf16>, vector<32x32xbf16>, vector<8x32xf32> -> vector<8x32xf32>
    %216 = arith.addf %94, %215 : vector<8x32xf32>
    %c0_126 = arith.constant 0 : index
    %c0_127 = arith.constant 0 : index
    %217 = vector.load %arg15[%c0_126, %c0_127] : memref<1x32xf32, #tpu.memory_space<vmem>>, vector<1x32xf32>
    %c0_128 = arith.constant 0 : index
    %c0_129 = arith.constant 0 : index
    %218 = vector.load %arg16[%c0_128, %c0_129] : memref<1x32xf32, #tpu.memory_space<vmem>>, vector<1x32xf32>
    %cst_130 = arith.constant dense<0.000000e+00> : vector<8xf32>
    %219 = vector.multi_reduction <add>, %216, %cst_130 [1] : vector<8x32xf32> to vector<8xf32>
    %220 = vector.shape_cast %219 : vector<8xf32> to vector<8x1xf32>
    %cst_131 = arith.constant 3.200000e+01 : f32
    %221 = vector.broadcast %cst_131 : f32 to vector<8x1xf32>
    %222 = arith.divf %220, %221 : vector<8x1xf32>
    %223 = vector.broadcast %222 : vector<8x1xf32> to vector<8x32xf32>
    %224 = arith.subf %216, %223 : vector<8x32xf32>
    %225 = arith.mulf %224, %224 : vector<8x32xf32>
    %cst_132 = arith.constant dense<0.000000e+00> : vector<8xf32>
    %226 = vector.multi_reduction <add>, %225, %cst_132 [1] : vector<8x32xf32> to vector<8xf32>
    %227 = vector.shape_cast %226 : vector<8xf32> to vector<8x1xf32>
    %cst_133 = arith.constant 0.0322580636 : f32
    %228 = vector.broadcast %cst_133 : f32 to vector<8x1xf32>
    %229 = arith.mulf %227, %228 : vector<8x1xf32>
    %230 = math.sqrt %229 : vector<8x1xf32>
    %cst_134 = arith.constant 9.99999997E-7 : f32
    %231 = vector.broadcast %cst_134 : f32 to vector<8x1xf32>
    %232 = arith.addf %230, %231 : vector<8x1xf32>
    %233 = tpu.reciprocal %232 {approx = true} : vector<8x1xf32> -> vector<8x1xf32>
    %234 = vector.broadcast %222 : vector<8x1xf32> to vector<8x32xf32>
    %235 = arith.subf %216, %234 : vector<8x32xf32>
    %236 = vector.broadcast %233 : vector<8x1xf32> to vector<8x32xf32>
    %237 = arith.mulf %235, %236 : vector<8x32xf32>
    %238 = vector.broadcast %217 : vector<1x32xf32> to vector<8x32xf32>
    %239 = arith.mulf %238, %237 : vector<8x32xf32>
    %240 = vector.broadcast %218 : vector<1x32xf32> to vector<8x32xf32>
    %241 = arith.addf %239, %240 : vector<8x32xf32>
    %242 = arith.truncf %241 : vector<8x32xf32> to vector<8x32xbf16>
    %c0_135 = arith.constant 0 : index
    %c0_136 = arith.constant 0 : index
    %243 = vector.load %arg17[%c0_135, %c0_136] : memref<32x64xbf16, #tpu.memory_space<vmem>>, vector<32x64xbf16>
    %cst_137 = arith.constant dense<0.000000e+00> : vector<8x64xf32>
    %244 = tpu.matmul %242, %243, %cst_137 {dimension_numbers = #tpu.dot_dimension_numbers<[1], [0], [0], [1], [0, 0, 1, 1], [], []>} : vector<8x32xbf16>, vector<32x64xbf16>, vector<8x64xf32> -> vector<8x64xf32>
    %c0_138 = arith.constant 0 : index
    %c0_139 = arith.constant 0 : index
    %245 = vector.load %arg18[%c0_138, %c0_139] : memref<1x64xf32, #tpu.memory_space<vmem>>, vector<1x64xf32>
    %246 = vector.broadcast %245 : vector<1x64xf32> to vector<8x64xf32>
    %247 = arith.addf %244, %246 : vector<8x64xf32>
    %cst_140 = arith.constant 0.000000e+00 : f32
    %248 = vector.broadcast %cst_140 : f32 to vector<8x64xf32>
    %249 = arith.maximumf %247, %248 : vector<8x64xf32>
    %250 = arith.truncf %249 : vector<8x64xf32> to vector<8x64xbf16>
    %c0_141 = arith.constant 0 : index
    %c0_142 = arith.constant 0 : index
    %251 = vector.load %arg19[%c0_141, %c0_142] : memref<64x32xbf16, #tpu.memory_space<vmem>>, vector<64x32xbf16>
    %cst_143 = arith.constant dense<0.000000e+00> : vector<8x32xf32>
    %252 = tpu.matmul %250, %251, %cst_143 {dimension_numbers = #tpu.dot_dimension_numbers<[1], [0], [0], [1], [0, 0, 1, 1], [], []>} : vector<8x64xbf16>, vector<64x32xbf16>, vector<8x32xf32> -> vector<8x32xf32>
    %c0_144 = arith.constant 0 : index
    %c0_145 = arith.constant 0 : index
    %253 = vector.load %arg20[%c0_144, %c0_145] : memref<1x32xf32, #tpu.memory_space<vmem>>, vector<1x32xf32>
    %254 = vector.broadcast %253 : vector<1x32xf32> to vector<8x32xf32>
    %255 = arith.addf %252, %254 : vector<8x32xf32>
    %256 = arith.addf %216, %255 : vector<8x32xf32>
    %c0_146 = arith.constant 0 : index
    %c0_147 = arith.constant 0 : index
    %c0_148 = arith.constant 0 : index
    %257 = vector.load %arg21[%c0_146, %c0_147, %c0_148] : memref<1x8x32xf32, #tpu.memory_space<vmem>>, vector<1x8x32xf32>
    %258 = vector.shape_cast %257 : vector<1x8x32xf32> to vector<8x32xf32>
    %259 = vector.shape_cast %256 : vector<8x32xf32> to vector<1x8x32xf32>
    tpu.vector_store %arg21[%c0_146, %c0_147, %c0_148], %259 {strides = array<i32>} : memref<1x8x32xf32, #tpu.memory_space<vmem>>, vector<1x8x32xf32>,
    return
  }
  func.func @transform_0(%arg0: i32, %arg1: i32) -> (i32, i32, i32) {
    %c0_i32 = arith.constant 0 : i32
    %c0_i32_0 = arith.constant 0 : i32
    return %arg0, %arg1, %c0_i32 : i32, i32, i32
  }
  func.func @transform_1(%arg0: i32, %arg1: i32) -> (i32, i32, i32) {
    %c0_i32 = arith.constant 0 : i32
    %c0_i32_0 = arith.constant 0 : i32
    return %arg0, %arg1, %c0_i32 : i32, i32, i32
  }
  func.func @transform_2(%arg0: i32, %arg1: i32) -> (i32, i32, i32) {
    %c0_i32 = arith.constant 0 : i32
    %c0_i32_0 = arith.constant 0 : i32
    %c0_i32_1 = arith.constant 0 : i32
    return %arg0, %c0_i32, %c0_i32_0 : i32, i32, i32
  }
  func.func @transform_3(%arg0: i32, %arg1: i32) -> (i32, i32, i32) {
    %c0_i32 = arith.constant 0 : i32
    %c0_i32_0 = arith.constant 0 : i32
    %c0_i32_1 = arith.constant 0 : i32
    return %arg0, %c0_i32, %c0_i32_0 : i32, i32, i32
  }
  func.func @transform_4(%arg0: i32, %arg1: i32) -> (i32, i32, i32) {
    %c0_i32 = arith.constant 0 : i32
    %c0_i32_0 = arith.constant 0 : i32
    %c0_i32_1 = arith.constant 0 : i32
    return %arg0, %c0_i32, %c0_i32_0 : i32, i32, i32
  }
  func.func @transform_5(%arg0: i32, %arg1: i32) -> (i32, i32, i32) {
    %c0_i32 = arith.constant 0 : i32
    %c0_i32_0 = arith.constant 0 : i32
    %c0_i32_1 = arith.constant 0 : i32
    return %arg0, %c0_i32, %c0_i32_0 : i32, i32, i32
  }
  func.func @transform_6(%arg0: i32, %arg1: i32) -> (i32, i32, i32) {
    %c0_i32 = arith.constant 0 : i32
    %c0_i32_0 = arith.constant 0 : i32
    return %arg0, %arg1, %c0_i32 : i32, i32, i32
  }
  func.func @transform_7(%arg0: i32, %arg1: i32) -> (i32, i32, i32) {
    %c0_i32 = arith.constant 0 : i32
    %c0_i32_0 = arith.constant 0 : i32
    return %arg0, %arg1, %c0_i32 : i32, i32, i32
  }
  func.func @transform_8(%arg0: i32, %arg1: i32) -> (i32, i32) {
    %c0_i32 = arith.constant 0 : i32
    %c0_i32_0 = arith.constant 0 : i32
    %c0_i32_1 = arith.constant 0 : i32
    return %c0_i32, %c0_i32_0 : i32, i32
  }
  func.func @transform_9(%arg0: i32, %arg1: i32) -> (i32, i32) {
    %c0_i32 = arith.constant 0 : i32
    %c0_i32_0 = arith.constant 0 : i32
    %c0_i32_1 = arith.constant 0 : i32
    return %c0_i32, %c0_i32_0 : i32, i32
  }
  func.func @transform_10(%arg0: i32, %arg1: i32) -> (i32, i32) {
    %c0_i32 = arith.constant 0 : i32
    %c0_i32_0 = arith.constant 0 : i32
    %c0_i32_1 = arith.constant 0 : i32
    return %c0_i32, %c0_i32_0 : i32, i32
  }
  func.func @transform_11(%arg0: i32, %arg1: i32) -> (i32, i32) {
    %c0_i32 = arith.constant 0 : i32
    %c0_i32_0 = arith.constant 0 : i32
    %c0_i32_1 = arith.constant 0 : i32
    return %c0_i32, %c0_i32_0 : i32, i32
  }
  func.func @transform_12(%arg0: i32, %arg1: i32) -> (i32, i32) {
    %c0_i32 = arith.constant 0 : i32
    %c0_i32_0 = arith.constant 0 : i32
    %c0_i32_1 = arith.constant 0 : i32
    return %c0_i32, %c0_i32_0 : i32, i32
  }
  func.func @transform_13(%arg0: i32, %arg1: i32) -> (i32, i32) {
    %c0_i32 = arith.constant 0 : i32
    %c0_i32_0 = arith.constant 0 : i32
    %c0_i32_1 = arith.constant 0 : i32
    return %c0_i32, %c0_i32_0 : i32, i32
  }
  func.func @transform_14(%arg0: i32, %arg1: i32) -> (i32, i32) {
    %c0_i32 = arith.constant 0 : i32
    %c0_i32_0 = arith.constant 0 : i32
    %c0_i32_1 = arith.constant 0 : i32
    return %c0_i32, %c0_i32_0 : i32, i32
  }
  func.func @transform_15(%arg0: i32, %arg1: i32) -> (i32, i32) {
    %c0_i32 = arith.constant 0 : i32
    %c0_i32_0 = arith.constant 0 : i32
    %c0_i32_1 = arith.constant 0 : i32
    return %c0_i32, %c0_i32_0 : i32, i32
  }
  func.func @transform_16(%arg0: i32, %arg1: i32) -> (i32, i32) {
    %c0_i32 = arith.constant 0 : i32
    %c0_i32_0 = arith.constant 0 : i32
    %c0_i32_1 = arith.constant 0 : i32
    return %c0_i32, %c0_i32_0 : i32, i32
  }
  func.func @transform_17(%arg0: i32, %arg1: i32) -> (i32, i32) {
    %c0_i32 = arith.constant 0 : i32
    %c0_i32_0 = arith.constant 0 : i32
    %c0_i32_1 = arith.constant 0 : i32
    return %c0_i32, %c0_i32_0 : i32, i32
  }
  func.func @transform_18(%arg0: i32, %arg1: i32) -> (i32, i32) {
    %c0_i32 = arith.constant 0 : i32
    %c0_i32_0 = arith.constant 0 : i32
    %c0_i32_1 = arith.constant 0 : i32
    return %c0_i32, %c0_i32_0 : i32, i32
  }
  func.func @transform_19(%arg0: i32, %arg1: i32) -> (i32, i32, i32) {
    %c0_i32 = arith.constant 0 : i32
    %c0_i32_0 = arith.constant 0 : i32
    return %arg0, %arg1, %c0_i32 : i32, i32, i32
  }
}

</mosaic_0001>

<llo_original>
// kernel: tpu_custom_call.1
$region0: #{tpu_custom_call.1}
  #allocation0 [shape = 'u32[]', space=smem, size = 0x4, offset = 0x4, fixed_abs, tag = 'smem constant byte address 0x4 - core index']
  #allocation1 [shape = 'u32[144,128]{1,0:T(1,128)}', space=vmem, size = 0x12000, scoped, tag = 'internal scratch']
  #allocation2 [shape = 'bf16[8,32]{1,0:T(8,128)(2,1)}', space=vmem, size = 0x800, scoped, tag = 'scratch operand']
  %s0 = inlined_call_operand.vmem [shape: f32[2,8,32], index: 0, kind: input, shape index: {}]
  %s1 = inlined_call_operand.vmem [shape: bf16[2,8,32], index: 1, kind: input, shape index: {}]
  %s2 = inlined_call_operand.vmem [shape: bf16[2,32,8], index: 2, kind: input, shape index: {}]
  %s3 = inlined_call_operand.vmem [shape: bf16[2,8,32], index: 3, kind: input, shape index: {}]
  %s4 = inlined_call_operand.vmem [shape: bf16[2,32,10], index: 4, kind: input, shape index: {}]
  %s5 = inlined_call_operand.vmem [shape: bf16[2,10,32], index: 5, kind: input, shape index: {}]
  %s6 = inlined_call_operand.vmem [shape: bf16[2,8,8], index: 6, kind: input, shape index: {}]
  %s7 = inlined_call_operand.vmem [shape: bf16[2,8,10], index: 7, kind: input, shape index: {}]
  %s8 = inlined_call_operand.vmem [shape: bf16[32,32], index: 8, kind: input, shape index: {}]
  %s9 = inlined_call_operand.vmem [shape: f32[1,32], index: 9, kind: input, shape index: {}]
  %s10 = inlined_call_operand.vmem [shape: f32[1,32], index: 10, kind: input, shape index: {}]
  %s11 = inlined_call_operand.vmem [shape: bf16[32,32], index: 11, kind: input, shape index: {}]
  %s12 = inlined_call_operand.vmem [shape: bf16[32,32], index: 12, kind: input, shape index: {}]
  %s13 = inlined_call_operand.vmem [shape: f32[1,32], index: 13, kind: input, shape index: {}]
  %s14 = inlined_call_operand.vmem [shape: f32[1,32], index: 14, kind: input, shape index: {}]
  %s15 = inlined_call_operand.vmem [shape: bf16[32,64], index: 15, kind: input, shape index: {}]
  %s16 = inlined_call_operand.vmem [shape: f32[1,64], index: 16, kind: input, shape index: {}]
  %s17 = inlined_call_operand.vmem [shape: bf16[64,32], index: 17, kind: input, shape index: {}]
  %s18 = inlined_call_operand.vmem [shape: f32[1,32], index: 18, kind: input, shape index: {}]
  %s19 = inlined_call_operand.hbm [shape: f32[2,8,32], index: 19, kind: output, shape index: {}]
  %s20 = sld [smem:[#allocation0]]
  $region109: #{tpu_custom_call.1} parent=0
    _
  %s22 = ssub.s32 1, %s20
  %s23 = scalar_select 0, %s22, %s20
  $region1: #{tpu_custom_call.1} parent=0
    #allocation3 [shape = 'u8[8192]{0}', space=vmem, size = 0x2000, scoped, tag = 'output window, operand 0']
    #allocation4 [shape = 's32[2]{0}', space=sflag, size = 0x8, scoped, tag = 'scoped memory for tpu_custom_call.1']
    %24 = vsyncpa [#allocation4], 0
    %s25 = scalar_lea.sflag [#allocation4], 1
    %26 = vsyncpa %s25, 0
    loop: start=0, step=1, limit=4
    $region2: #{tpu_custom_call.1} parent=1 // loop_pre_header
      _
    $region3: #{tpu_custom_call.1} parent=1 // loop_header
      %s28 = sphi 0, %s32
      %p29 = scmp.ge.s32.totalorder %s28, 4
      %s35 = sphi 0, %s47
      %s36 = sphi 0, %s43
      %s37 = sphi 0, %s35
      %s38 = sphi 0, %s36
      %s39 = sphi 0, %s37
      %s40 = sphi 0, %s38
      %s52 = sphi 0, %s54
      %s55 = sphi 0, %s52
      %s56 = sphi 0, %s55
      %s72 = sphi 0, %s56
      %s80 = sphi 0, %s82
      %s83 = sphi 0, %s80
      %s84 = sphi 0, %s83
      %s100 = sphi 0, %s84
      %s106 = sphi 0, %s108
      %s109 = sphi 0, %s106
      %s110 = sphi 0, %s109
      %s126 = sphi 0, %s110
      %s132 = sphi 0, %s134
      %s135 = sphi 0, %s132
      %s136 = sphi 0, %s135
      %s152 = sphi 0, %s136
      %s158 = sphi 0, %s160
      %s161 = sphi 0, %s158
      %s162 = sphi 0, %s161
      %s178 = sphi 0, %s162
      %s184 = sphi 0, %s186
      %s187 = sphi 0, %s184
      %s188 = sphi 0, %s187
      %s204 = sphi 0, %s188
      %s212 = sphi 0, %s214
      %s215 = sphi 0, %s212
      %s216 = sphi 0, %s215
      %s232 = sphi 0, %s216
      %s240 = sphi 0, %s242
      %s243 = sphi 0, %s240
      %s244 = sphi 0, %s243
      %s260 = sphi 0, %s244
      %s264 = sphi 0, %s264
      %s266 = sphi 0, %s264
      %s267 = sphi 0, %s266
      %s281 = sphi 0, %s267
      %s285 = sphi 0, %s285
      %s287 = sphi 0, %s285
      %s288 = sphi 0, %s287
      %s302 = sphi 0, %s288
      %s306 = sphi 0, %s306
      %s308 = sphi 0, %s306
      %s309 = sphi 0, %s308
      %s323 = sphi 0, %s309
      %s327 = sphi 0, %s327
      %s329 = sphi 0, %s327
      %s330 = sphi 0, %s329
      %s344 = sphi 0, %s330
      %s348 = sphi 0, %s348
      %s350 = sphi 0, %s348
      %s351 = sphi 0, %s350
      %s365 = sphi 0, %s351
      %s369 = sphi 0, %s369
      %s371 = sphi 0, %s369
      %s372 = sphi 0, %s371
      %s386 = sphi 0, %s372
      %s390 = sphi 0, %s390
      %s392 = sphi 0, %s390
      %s393 = sphi 0, %s392
      %s407 = sphi 0, %s393
      %s411 = sphi 0, %s411
      %s413 = sphi 0, %s411
      %s414 = sphi 0, %s413
      %s428 = sphi 0, %s414
      %s432 = sphi 0, %s432
      %s434 = sphi 0, %s432
      %s435 = sphi 0, %s434
      %s449 = sphi 0, %s435
      %s453 = sphi 0, %s453
      %s455 = sphi 0, %s453
      %s456 = sphi 0, %s455
      %s470 = sphi 0, %s456
      %s474 = sphi 0, %s474
      %s476 = sphi 0, %s474
      %s477 = sphi 0, %s476
      %s491 = sphi 0, %s477
      %s499 = sphi 0, %s501
      %s502 = sphi 0, %s499
      %s503 = sphi 0, %s502
      %s519 = sphi 0, %s503
    $region4: #{tpu_custom_call.1} parent=1 // loop_header_branch
      %31 = sbr.rel (%p29) target = $region8
    $region5: #{tpu_custom_call.1} parent=1 // loop_body
      %s33 = ssub.s32 %s28, 1
      %s34 = ssub.s32 %s28, 2
      %s41 = sadd.s32 1, %s36
      %p42 = scmp.ge.s32.totalorder %s41, 1
      %s43 = scalar_select %p42, 0, %s41
      %s44 = sadd.s32 1, %s35
      %s45 = scalar_select %p42, %s44, %s35
      %p46 = scmp.ge.s32.totalorder %s45, 2
      %s47 = scalar_select %p46, 0, %s45
      %s48 = ssub.s32 %s35, %s47
      %s49 = ssub.s32 %s36, %s43
      %s50 = sor.u32 %s48, %s49
      %p51 = scmp.eq.s32.totalorder %s50, 0
      %s53 = sadd.s32 %s52, 1
      %s54 = scalar_select %p51, %s52, %s53
      %p57 = pneg %p51
      %p58 = scmp.eq.s32.totalorder %s28, 1
      %p59 = por %p57, %p58
      %p60 = scmp.ne.s32.totalorder %s52, %s55
      %p61 = scmp.eq.s32.totalorder %s28, 0
      %p62 = por %p60, %p61
      %p63 = scmp.ne.s32.totalorder %s52, %s55
      %p64 = scmp.eq.s32.totalorder %s33, 1
      %p65 = por %p63, %p64
      %p66 = scmp.ne.s32.totalorder %s55, %s56
      %p67 = scmp.eq.s32.totalorder %s33, 0
      %p68 = por %p66, %p67
      %p69 = scmp.ne.s32.totalorder %s55, %s56
      %p70 = scmp.eq.s32.totalorder %s34, 1
      %p71 = por %p69, %p70
      %p73 = scmp.ne.s32.totalorder %s56, %s72
      %p74 = scmp.eq.s32.totalorder %s34, 0
      %p75 = por %p73, %p74
      %s76 = ssub.s32 %s35, %s47
      %s77 = ssub.s32 %s36, %s43
      %s78 = sor.u32 %s76, %s77
      %p79 = scmp.eq.s32.totalorder %s78, 0
      %s81 = sadd.s32 %s80, 1
      %s82 = scalar_select %p79, %s80, %s81
      %p85 = pneg %p79
      %p86 = scmp.eq.s32.totalorder %s28, 1
      %p87 = por %p85, %p86
      %p88 = scmp.ne.s32.totalorder %s80, %s83
      %p89 = scmp.eq.s32.totalorder %s28, 0
      %p90 = por %p88, %p89
      %p91 = scmp.ne.s32.totalorder %s80, %s83
      %p92 = scmp.eq.s32.totalorder %s33, 1
      %p93 = por %p91, %p92
      %p94 = scmp.ne.s32.totalorder %s83, %s84
      %p95 = scmp.eq.s32.totalorder %s33, 0
      %p96 = por %p94, %p95
      %p97 = scmp.ne.s32.totalorder %s83, %s84
      %p98 = scmp.eq.s32.totalorder %s34, 1
      %p99 = por %p97, %p98
      %p101 = scmp.ne.s32.totalorder %s84, %s100
      %p102 = scmp.eq.s32.totalorder %s34, 0
      %p103 = por %p101, %p102
      %s104 = ssub.s32 %s35, %s47
      %p105 = scmp.eq.s32.totalorder %s104, 0
      %s107 = sadd.s32 %s106, 1
      %s108 = scalar_select %p105, %s106, %s107
      %p111 = pneg %p105
      %p112 = scmp.eq.s32.totalorder %s28, 1
      %p113 = por %p111, %p112
      %p114 = scmp.ne.s32.totalorder %s106, %s109
      %p115 = scmp.eq.s32.totalorder %s28, 0
      %p116 = por %p114, %p115
      %p117 = scmp.ne.s32.totalorder %s106, %s109
      %p118 = scmp.eq.s32.totalorder %s33, 1
      %p119 = por %p117, %p118
      %p120 = scmp.ne.s32.totalorder %s109, %s110
      %p121 = scmp.eq.s32.totalorder %s33, 0
      %p122 = por %p120, %p121
      %p123 = scmp.ne.s32.totalorder %s109, %s110
      %p124 = scmp.eq.s32.totalorder %s34, 1
      %p125 = por %p123, %p124
      %p127 = scmp.ne.s32.totalorder %s110, %s126
      %p128 = scmp.eq.s32.totalorder %s34, 0
      %p129 = por %p127, %p128
      %s130 = ssub.s32 %s35, %s47
      %p131 = scmp.eq.s32.totalorder %s130, 0
      %s133 = sadd.s32 %s132, 1
      %s134 = scalar_select %p131, %s132, %s133
      %p137 = pneg %p131
      %p138 = scmp.eq.s32.totalorder %s28, 1
      %p139 = por %p137, %p138
      %p140 = scmp.ne.s32.totalorder %s132, %s135
      %p141 = scmp.eq.s32.totalorder %s28, 0
      %p142 = por %p140, %p141
      %p143 = scmp.ne.s32.totalorder %s132, %s135
      %p144 = scmp.eq.s32.totalorder %s33, 1
      %p145 = por %p143, %p144
      %p146 = scmp.ne.s32.totalorder %s135, %s136
      %p147 = scmp.eq.s32.totalorder %s33, 0
      %p148 = por %p146, %p147
      %p149 = scmp.ne.s32.totalorder %s135, %s136
      %p150 = scmp.eq.s32.totalorder %s34, 1
      %p151 = por %p149, %p150
      %p153 = scmp.ne.s32.totalorder %s136, %s152
      %p154 = scmp.eq.s32.totalorder %s34, 0
      %p155 = por %p153, %p154
      %s156 = ssub.s32 %s35, %s47
      %p157 = scmp.eq.s32.totalorder %s156, 0
      %s159 = sadd.s32 %s158, 1
      %s160 = scalar_select %p157, %s158, %s159
      %p163 = pneg %p157
      %p164 = scmp.eq.s32.totalorder %s28, 1
      %p165 = por %p163, %p164
      %p166 = scmp.ne.s32.totalorder %s158, %s161
      %p167 = scmp.eq.s32.totalorder %s28, 0
      %p168 = por %p166, %p167
      %p169 = scmp.ne.s32.totalorder %s158, %s161
      %p170 = scmp.eq.s32.totalorder %s33, 1
      %p171 = por %p169, %p170
      %p172 = scmp.ne.s32.totalorder %s161, %s162
      %p173 = scmp.eq.s32.totalorder %s33, 0
      %p174 = por %p172, %p173
      %p175 = scmp.ne.s32.totalorder %s161, %s162
      %p176 = scmp.eq.s32.totalorder %s34, 1
      %p177 = por %p175, %p176
      %p179 = scmp.ne.s32.totalorder %s162, %s178
      %p180 = scmp.eq.s32.totalorder %s34, 0
      %p181 = por %p179, %p180
      %s182 = ssub.s32 %s35, %s47
      %p183 = scmp.eq.s32.totalorder %s182, 0
      %s185 = sadd.s32 %s184, 1
      %s186 = scalar_select %p183, %s184, %s185
      %p189 = pneg %p183
      %p190 = scmp.eq.s32.totalorder %s28, 1
      %p191 = por %p189, %p190
      %p192 = scmp.ne.s32.totalorder %s184, %s187
      %p193 = scmp.eq.s32.totalorder %s28, 0
      %p194 = por %p192, %p193
      %p195 = scmp.ne.s32.totalorder %s184, %s187
      %p196 = scmp.eq.s32.totalorder %s33, 1
      %p197 = por %p195, %p196
      %p198 = scmp.ne.s32.totalorder %s187, %s188
      %p199 = scmp.eq.s32.totalorder %s33, 0
      %p200 = por %p198, %p199
      %p201 = scmp.ne.s32.totalorder %s187, %s188
      %p202 = scmp.eq.s32.totalorder %s34, 1
      %p203 = por %p201, %p202
      %p205 = scmp.ne.s32.totalorder %s188, %s204
      %p206 = scmp.eq.s32.totalorder %s34, 0
      %p207 = por %p205, %p206
      %s208 = ssub.s32 %s35, %s47
      %s209 = ssub.s32 %s36, %s43
      %s210 = sor.u32 %s208, %s209
      %p211 = scmp.eq.s32.totalorder %s210, 0
      %s213 = sadd.s32 %s212, 1
      %s214 = scalar_select %p211, %s212, %s213
      %p217 = pneg %p211
      %p218 = scmp.eq.s32.totalorder %s28, 1
      %p219 = por %p217, %p218
      %p220 = scmp.ne.s32.totalorder %s212, %s215
      %p221 = scmp.eq.s32.totalorder %s28, 0
      %p222 = por %p220, %p221
      %p223 = scmp.ne.s32.totalorder %s212, %s215
      %p224 = scmp.eq.s32.totalorder %s33, 1
      %p225 = por %p223, %p224
      %p226 = scmp.ne.s32.totalorder %s215, %s216
      %p227 = scmp.eq.s32.totalorder %s33, 0
      %p228 = por %p226, %p227
      %p229 = scmp.ne.s32.totalorder %s215, %s216
      %p230 = scmp.eq.s32.totalorder %s34, 1
      %p231 = por %p229, %p230
      %p233 = scmp.ne.s32.totalorder %s216, %s232
      %p234 = scmp.eq.s32.totalorder %s34, 0
      %p235 = por %p233, %p234
      %s236 = ssub.s32 %s35, %s47
      %s237 = ssub.s32 %s36, %s43
      %s238 = sor.u32 %s236, %s237
      %p239 = scmp.eq.s32.totalorder %s238, 0
      %s241 = sadd.s32 %s240, 1
      %s242 = scalar_select %p239, %s240, %s241
      %p245 = pneg %p239
      %p246 = scmp.eq.s32.totalorder %s28, 1
      %p247 = por %p245, %p246
      %p248 = scmp.ne.s32.totalorder %s240, %s243
      %p249 = scmp.eq.s32.totalorder %s28, 0
      %p250 = por %p248, %p249
      %p251 = scmp.ne.s32.totalorder %s240, %s243
      %p252 = scmp.eq.s32.totalorder %s33, 1
      %p253 = por %p251, %p252
      %p254 = scmp.ne.s32.totalorder %s243, %s244
      %p255 = scmp.eq.s32.totalorder %s33, 0
      %p256 = por %p254, %p255
      %p257 = scmp.ne.s32.totalorder %s243, %s244
      %p258 = scmp.eq.s32.totalorder %s34, 1
      %p259 = por %p257, %p258
      %p261 = scmp.ne.s32.totalorder %s244, %s260
      %p262 = scmp.eq.s32.totalorder %s34, 0
      %p263 = por %p261, %p262
      %s265 = sadd.s32 %s264, 1
      %p268 = scmp.eq.s32.totalorder %s28, 1
      %p269 = scmp.ne.s32.totalorder %s264, %s266
      %p270 = scmp.eq.s32.totalorder %s28, 0
      %p271 = por %p269, %p270
      %p272 = scmp.ne.s32.totalorder %s264, %s266
      %p273 = scmp.eq.s32.totalorder %s33, 1
      %p274 = por %p272, %p273
      %p275 = scmp.ne.s32.totalorder %s266, %s267
      %p276 = scmp.eq.s32.totalorder %s33, 0
      %p277 = por %p275, %p276
      %p278 = scmp.ne.s32.totalorder %s266, %s267
      %p279 = scmp.eq.s32.totalorder %s34, 1
      %p280 = por %p278, %p279
      %p282 = scmp.ne.s32.totalorder %s267, %s281
      %p283 = scmp.eq.s32.totalorder %s34, 0
      %p284 = por %p282, %p283
      %s286 = sadd.s32 %s285, 1
      %p289 = scmp.eq.s32.totalorder %s28, 1
      %p290 = scmp.ne.s32.totalorder %s285, %s287
      %p291 = scmp.eq.s32.totalorder %s28, 0
      %p292 = por %p290, %p291
      %p293 = scmp.ne.s32.totalorder %s285, %s287
      %p294 = scmp.eq.s32.totalorder %s33, 1
      %p295 = por %p293, %p294
      %p296 = scmp.ne.s32.totalorder %s287, %s288
      %p297 = scmp.eq.s32.totalorder %s33, 0
      %p298 = por %p296, %p297
      %p299 = scmp.ne.s32.totalorder %s287, %s288
      %p300 = scmp.eq.s32.totalorder %s34, 1
      %p301 = por %p299, %p300
      %p303 = scmp.ne.s32.totalorder %s288, %s302
      %p304 = scmp.eq.s32.totalorder %s34, 0
      %p305 = por %p303, %p304
      %s307 = sadd.s32 %s306, 1
      %p310 = scmp.eq.s32.totalorder %s28, 1
      %p311 = scmp.ne.s32.totalorder %s306, %s308
      %p312 = scmp.eq.s32.totalorder %s28, 0
      %p313 = por %p311, %p312
      %p314 = scmp.ne.s32.totalorder %s306, %s308
      %p315 = scmp.eq.s32.totalorder %s33, 1
      %p316 = por %p314, %p315
      %p317 = scmp.ne.s32.totalorder %s308, %s309
      %p318 = scmp.eq.s32.totalorder %s33, 0
      %p319 = por %p317, %p318
      %p320 = scmp.ne.s32.totalorder %s308, %s309
      %p321 = scmp.eq.s32.totalorder %s34, 1
      %p322 = por %p320, %p321
      %p324 = scmp.ne.s32.totalorder %s309, %s323
      %p325 = scmp.eq.s32.totalorder %s34, 0
      %p326 = por %p324, %p325
      %s328 = sadd.s32 %s327, 1
      %p331 = scmp.eq.s32.totalorder %s28, 1
      %p332 = scmp.ne.s32.totalorder %s327, %s329
      %p333 = scmp.eq.s32.totalorder %s28, 0
      %p334 = por %p332, %p333
      %p335 = scmp.ne.s32.totalorder %s327, %s329
      %p336 = scmp.eq.s32.totalorder %s33, 1
      %p337 = por %p335, %p336
      %p338 = scmp.ne.s32.totalorder %s329, %s330
      %p339 = scmp.eq.s32.totalorder %s33, 0
      %p340 = por %p338, %p339
      %p341 = scmp.ne.s32.totalorder %s329, %s330
      %p342 = scmp.eq.s32.totalorder %s34, 1
      %p343 = por %p341, %p342
      %p345 = scmp.ne.s32.totalorder %s330, %s344
      %p346 = scmp.eq.s32.totalorder %s34, 0
      %p347 = por %p345, %p346
      %s349 = sadd.s32 %s348, 1
      %p352 = scmp.eq.s32.totalorder %s28, 1
      %p353 = scmp.ne.s32.totalorder %s348, %s350
      %p354 = scmp.eq.s32.totalorder %s28, 0
      %p355 = por %p353, %p354
      %p356 = scmp.ne.s32.totalorder %s348, %s350
      %p357 = scmp.eq.s32.totalorder %s33, 1
      %p358 = por %p356, %p357
      %p359 = scmp.ne.s32.totalorder %s350, %s351
      %p360 = scmp.eq.s32.totalorder %s33, 0
      %p361 = por %p359, %p360
      %p362 = scmp.ne.s32.totalorder %s350, %s351
      %p363 = scmp.eq.s32.totalorder %s34, 1
      %p364 = por %p362, %p363
      %p366 = scmp.ne.s32.totalorder %s351, %s365
      %p367 = scmp.eq.s32.totalorder %s34, 0
      %p368 = por %p366, %p367
      %s370 = sadd.s32 %s369, 1
      %p373 = scmp.eq.s32.totalorder %s28, 1
      %p374 = scmp.ne.s32.totalorder %s369, %s371
      %p375 = scmp.eq.s32.totalorder %s28, 0
      %p376 = por %p374, %p375
      %p377 = scmp.ne.s32.totalorder %s369, %s371
      %p378 = scmp.eq.s32.totalorder %s33, 1
      %p379 = por %p377, %p378
      %p380 = scmp.ne.s32.totalorder %s371, %s372
      %p381 = scmp.eq.s32.totalorder %s33, 0
      %p382 = por %p380, %p381
      %p383 = scmp.ne.s32.totalorder %s371, %s372
      %p384 = scmp.eq.s32.totalorder %s34, 1
      %p385 = por %p383, %p384
      %p387 = scmp.ne.s32.totalorder %s372, %s386
      %p388 = scmp.eq.s32.totalorder %s34, 0
      %p389 = por %p387, %p388
      %s391 = sadd.s32 %s390, 1
      %p394 = scmp.eq.s32.totalorder %s28, 1
      %p395 = scmp.ne.s32.totalorder %s390, %s392
      %p396 = scmp.eq.s32.totalorder %s28, 0
      %p397 = por %p395, %p396
      %p398 = scmp.ne.s32.totalorder %s390, %s392
      %p399 = scmp.eq.s32.totalorder %s33, 1
      %p400 = por %p398, %p399
      %p401 = scmp.ne.s32.totalorder %s392, %s393
      %p402 = scmp.eq.s32.totalorder %s33, 0
      %p403 = por %p401, %p402
      %p404 = scmp.ne.s32.totalorder %s392, %s393
      %p405 = scmp.eq.s32.totalorder %s34, 1
      %p406 = por %p404, %p405
      %p408 = scmp.ne.s32.totalorder %s393, %s407
      %p409 = scmp.eq.s32.totalorder %s34, 0
      %p410 = por %p408, %p409
      %s412 = sadd.s32 %s411, 1
      %p415 = scmp.eq.s32.totalorder %s28, 1
      %p416 = scmp.ne.s32.totalorder %s411, %s413
      %p417 = scmp.eq.s32.totalorder %s28, 0
      %p418 = por %p416, %p417
      %p419 = scmp.ne.s32.totalorder %s411, %s413
      %p420 = scmp.eq.s32.totalorder %s33, 1
      %p421 = por %p419, %p420
      %p422 = scmp.ne.s32.totalorder %s413, %s414
      %p423 = scmp.eq.s32.totalorder %s33, 0
      %p424 = por %p422, %p423
      %p425 = scmp.ne.s32.totalorder %s413, %s414
      %p426 = scmp.eq.s32.totalorder %s34, 1
      %p427 = por %p425, %p426
      %p429 = scmp.ne.s32.totalorder %s414, %s428
      %p430 = scmp.eq.s32.totalorder %s34, 0
      %p431 = por %p429, %p430
      %s433 = sadd.s32 %s432, 1
      %p436 = scmp.eq.s32.totalorder %s28, 1
      %p437 = scmp.ne.s32.totalorder %s432, %s434
      %p438 = scmp.eq.s32.totalorder %s28, 0
      %p439 = por %p437, %p438
      %p440 = scmp.ne.s32.totalorder %s432, %s434
      %p441 = scmp.eq.s32.totalorder %s33, 1
      %p442 = por %p440, %p441
      %p443 = scmp.ne.s32.totalorder %s434, %s435
      %p444 = scmp.eq.s32.totalorder %s33, 0
      %p445 = por %p443, %p444
      %p446 = scmp.ne.s32.totalorder %s434, %s435
      %p447 = scmp.eq.s32.totalorder %s34, 1
      %p448 = por %p446, %p447
      %p450 = scmp.ne.s32.totalorder %s435, %s449
      %p451 = scmp.eq.s32.totalorder %s34, 0
      %p452 = por %p450, %p451
      %s454 = sadd.s32 %s453, 1
      %p457 = scmp.eq.s32.totalorder %s28, 1
      %p458 = scmp.ne.s32.totalorder %s453, %s455
      %p459 = scmp.eq.s32.totalorder %s28, 0
      %p460 = por %p458, %p459
      %p461 = scmp.ne.s32.totalorder %s453, %s455
      %p462 = scmp.eq.s32.totalorder %s33, 1
      %p463 = por %p461, %p462
      %p464 = scmp.ne.s32.totalorder %s455, %s456
      %p465 = scmp.eq.s32.totalorder %s33, 0
      %p466 = por %p464, %p465
      %p467 = scmp.ne.s32.totalorder %s455, %s456
      %p468 = scmp.eq.s32.totalorder %s34, 1
      %p469 = por %p467, %p468
      %p471 = scmp.ne.s32.totalorder %s456, %s470
      %p472 = scmp.eq.s32.totalorder %s34, 0
      %p473 = por %p471, %p472
      %s475 = sadd.s32 %s474, 1
      %p478 = scmp.eq.s32.totalorder %s28, 1
      %p479 = scmp.ne.s32.totalorder %s474, %s476
      %p480 = scmp.eq.s32.totalorder %s28, 0
      %p481 = por %p479, %p480
      %p482 = scmp.ne.s32.totalorder %s474, %s476
      %p483 = scmp.eq.s32.totalorder %s33, 1
      %p484 = por %p482, %p483
      %p485 = scmp.ne.s32.totalorder %s476, %s477
      %p486 = scmp.eq.s32.totalorder %s33, 0
      %p487 = por %p485, %p486
      %p488 = scmp.ne.s32.totalorder %s476, %s477
      %p489 = scmp.eq.s32.totalorder %s34, 1
      %p490 = por %p488, %p489
      %p492 = scmp.ne.s32.totalorder %s477, %s491
      %p493 = scmp.eq.s32.totalorder %s34, 0
      %p494 = por %p492, %p493
      %s495 = ssub.s32 %s35, %s47
      %s496 = ssub.s32 %s36, %s43
      %s497 = sor.u32 %s495, %s496
      %p498 = scmp.eq.s32.totalorder %s497, 0
      %s500 = sadd.s32 %s499, 1
      %s501 = scalar_select %p498, %s499, %s500
      %p504 = pneg %p498
      %p505 = scmp.eq.s32.totalorder %s28, 1
      %p506 = por %p504, %p505
      %p507 = scmp.ne.s32.totalorder %s499, %s502
      %p508 = scmp.eq.s32.totalorder %s28, 0
      %p509 = por %p507, %p508
      %p510 = scmp.ne.s32.totalorder %s499, %s502
      %p511 = scmp.eq.s32.totalorder %s33, 1
      %p512 = por %p510, %p511
      %p513 = scmp.ne.s32.totalorder %s502, %s503
      %p514 = scmp.eq.s32.totalorder %s33, 0
      %p515 = por %p513, %p514
      %p516 = scmp.ne.s32.totalorder %s502, %s503
      %p517 = scmp.eq.s32.totalorder %s34, 1
      %p518 = por %p516, %p517
      %p520 = scmp.ne.s32.totalorder %s503, %s519
      %p521 = scmp.eq.s32.totalorder %s34, 0
      %p522 = por %p520, %p521
      %p523 = scmp.le.s32.totalorder 1, %s28
      %p524 = scmp.lt.s32.totalorder %s28, 3
      %p525 = pnand %p523, %p524
      %p526 = pneg %p525
      // Predicated region
      $region9: #{tpu_custom_call.1} parent=5 // pred_check
        _
      $region10: #{tpu_custom_call.1} parent=5 // pred_check_branch
        %528 = sbr.rel (%p525) target = $region12
      $region11: #{tpu_custom_call.1} parent=5 // pred_region
        %s529 = ssub.s32 %s28, 1
        // Predicated region
        $region13: #{tpu_custom_call.1} parent=11 // pred_check
          %p530 = pneg %p277
        $region14: #{tpu_custom_call.1} parent=11 // pred_check_branch
          %532 = sbr.rel (%p530) target = $region16
        $region15: #{tpu_custom_call.1} parent=11 // pred_region
          _
        $region16: #{tpu_custom_call.1} parent=11 // pred_fallthru
          _
        // Predicated region
        $region17: #{tpu_custom_call.1} parent=11 // pred_check
          %p533 = pneg %p298
        $region18: #{tpu_custom_call.1} parent=11 // pred_check_branch
          %535 = sbr.rel (%p533) target = $region20
        $region19: #{tpu_custom_call.1} parent=11 // pred_region
          _
        $region20: #{tpu_custom_call.1} parent=11 // pred_fallthru
          _
        // Predicated region
        $region21: #{tpu_custom_call.1} parent=11 // pred_check
          %p536 = pneg %p319
        $region22: #{tpu_custom_call.1} parent=11 // pred_check_branch
          %538 = sbr.rel (%p536) target = $region24
        $region23: #{tpu_custom_call.1} parent=11 // pred_region
          _
        $region24: #{tpu_custom_call.1} parent=11 // pred_fallthru
          _
        // Predicated region
        $region25: #{tpu_custom_call.1} parent=11 // pred_check
          %p539 = pneg %p340
        $region26: #{tpu_custom_call.1} parent=11 // pred_check_branch
          %541 = sbr.rel (%p539) target = $region28
        $region27: #{tpu_custom_call.1} parent=11 // pred_region
          _
        $region28: #{tpu_custom_call.1} parent=11 // pred_fallthru
          _
        // Predicated region
        $region29: #{tpu_custom_call.1} parent=11 // pred_check
          %p542 = pneg %p361
        $region30: #{tpu_custom_call.1} parent=11 // pred_check_branch
          %544 = sbr.rel (%p542) target = $region32
        $region31: #{tpu_custom_call.1} parent=11 // pred_region
          _
        $region32: #{tpu_custom_call.1} parent=11 // pred_fallthru
          _
        // Predicated region
        $region33: #{tpu_custom_call.1} parent=11 // pred_check
          %p545 = pneg %p382
        $region34: #{tpu_custom_call.1} parent=11 // pred_check_branch
          %547 = sbr.rel (%p545) target = $region36
        $region35: #{tpu_custom_call.1} parent=11 // pred_region
          _
        $region36: #{tpu_custom_call.1} parent=11 // pred_fallthru
          _
        // Predicated region
        $region37: #{tpu_custom_call.1} parent=11 // pred_check
          %p548 = pneg %p403
        $region38: #{tpu_custom_call.1} parent=11 // pred_check_branch
          %550 = sbr.rel (%p548) target = $region40
        $region39: #{tpu_custom_call.1} parent=11 // pred_region
          _
        $region40: #{tpu_custom_call.1} parent=11 // pred_fallthru
          _
        // Predicated region
        $region41: #{tpu_custom_call.1} parent=11 // pred_check
          %p551 = pneg %p424
        $region42: #{tpu_custom_call.1} parent=11 // pred_check_branch
          %553 = sbr.rel (%p551) target = $region44
        $region43: #{tpu_custom_call.1} parent=11 // pred_region
          _
        $region44: #{tpu_custom_call.1} parent=11 // pred_fallthru
          _
        // Predicated region
        $region45: #{tpu_custom_call.1} parent=11 // pred_check
          %p554 = pneg %p445
        $region46: #{tpu_custom_call.1} parent=11 // pred_check_branch
          %556 = sbr.rel (%p554) target = $region48
        $region47: #{tpu_custom_call.1} parent=11 // pred_region
          _
        $region48: #{tpu_custom_call.1} parent=11 // pred_fallthru
          _
        // Predicated region
        $region49: #{tpu_custom_call.1} parent=11 // pred_check
          %p557 = pneg %p466
        $region50: #{tpu_custom_call.1} parent=11 // pred_check_branch
          %559 = sbr.rel (%p557) target = $region52
        $region51: #{tpu_custom_call.1} parent=11 // pred_region
          _
        $region52: #{tpu_custom_call.1} parent=11 // pred_fallthru
          _
        // Predicated region
        $region53: #{tpu_custom_call.1} parent=11 // pred_check
          %p560 = pneg %p487
        $region54: #{tpu_custom_call.1} parent=11 // pred_check_branch
          %562 = sbr.rel (%p560) target = $region56
        $region55: #{tpu_custom_call.1} parent=11 // pred_region
          _
        $region56: #{tpu_custom_call.1} parent=11 // pred_fallthru
          _
      $region12: #{tpu_custom_call.1} parent=5 // pred_fallthru
        _
      %p563 = scmp.lt.s32.totalorder %s28, 2
      // Predicated region
      $region57: #{tpu_custom_call.1} parent=5 // pred_check
        %p564 = pneg %p563
      $region58: #{tpu_custom_call.1} parent=5 // pred_check_branch
        %566 = sbr.rel (%p564) target = $region60
      $region59: #{tpu_custom_call.1} parent=5 // pred_region
        // Predicated region
        $region61: #{tpu_custom_call.1} parent=59 // pred_check
          %p567 = pneg %p62
        $region62: #{tpu_custom_call.1} parent=59 // pred_check_branch
          %569 = sbr.rel (%p567) target = $region64
        $region63: #{tpu_custom_call.1} parent=59 // pred_region
          %p570 = scmp.lt.s32.totalorder %s35, 1
          %s571 = scalar_select %p570, %s35, 1
          %p572 = scmp.lt.s32.totalorder %s36, 0
          %s573 = scalar_select %p572, %s36, 0
          %s574 = sadd.s32 %s573, %s571
          %s575 = smul.addr %s574, 8
          %s576 = scalar_lea.vmem %s0, %s575
        $region64: #{tpu_custom_call.1} parent=59 // pred_fallthru
          _
        // Predicated region
        $region65: #{tpu_custom_call.1} parent=59 // pred_check
          %p577 = pneg %p90
        $region66: #{tpu_custom_call.1} parent=59 // pred_check_branch
          %579 = sbr.rel (%p577) target = $region68
        $region67: #{tpu_custom_call.1} parent=59 // pred_region
          %p580 = scmp.lt.s32.totalorder %s35, 1
          %s581 = scalar_select %p580, %s35, 1
          %p582 = scmp.lt.s32.totalorder %s36, 0
          %s583 = scalar_select %p582, %s36, 0
          %s584 = sadd.s32 %s583, %s581
          %s585 = smul.addr %s584, 4
          %s586 = scalar_lea.vmem %s1, %s585
        $region68: #{tpu_custom_call.1} parent=59 // pred_fallthru
          _
        // Predicated region
        $region69: #{tpu_custom_call.1} parent=59 // pred_check
          %p587 = pneg %p116
        $region70: #{tpu_custom_call.1} parent=59 // pred_check_branch
          %589 = sbr.rel (%p587) target = $region72
        $region71: #{tpu_custom_call.1} parent=59 // pred_region
          %p590 = scmp.lt.s32.totalorder %s35, 1
          %s591 = scalar_select %p590, %s35, 1
          %s592 = smul.addr %s591, 4
          %s593 = smul.addr %s592, 4
          %s594 = scalar_lea.vmem %s2, %s593
        $region72: #{tpu_custom_call.1} parent=59 // pred_fallthru
          _
        // Predicated region
        $region73: #{tpu_custom_call.1} parent=59 // pred_check
          %p595 = pneg %p142
        $region74: #{tpu_custom_call.1} parent=59 // pred_check_branch
          %597 = sbr.rel (%p595) target = $region76
        $region75: #{tpu_custom_call.1} parent=59 // pred_region
          %p598 = scmp.lt.s32.totalorder %s35, 1
          %s599 = scalar_select %p598, %s35, 1
          %s600 = smul.addr %s599, 4
          %s601 = scalar_lea.vmem %s3, %s600
        $region76: #{tpu_custom_call.1} parent=59 // pred_fallthru
          _
        // Predicated region
        $region77: #{tpu_custom_call.1} parent=59 // pred_check
          %p602 = pneg %p168
        $region78: #{tpu_custom_call.1} parent=59 // pred_check_branch
          %604 = sbr.rel (%p602) target = $region80
        $region79: #{tpu_custom_call.1} parent=59 // pred_region
          %p605 = scmp.lt.s32.totalorder %s35, 1
          %s606 = scalar_select %p605, %s35, 1
          %s607 = smul.addr %s606, 4
          %s608 = smul.addr %s607, 4
          %s609 = scalar_lea.vmem %s4, %s608
        $region80: #{tpu_custom_call.1} parent=59 // pred_fallthru
          _
        // Predicated region
        $region81: #{tpu_custom_call.1} parent=59 // pred_check
          %p610 = pneg %p194
        $region82: #{tpu_custom_call.1} parent=59 // pred_check_branch
          %612 = sbr.rel (%p610) target = $region84
        $region83: #{tpu_custom_call.1} parent=59 // pred_region
          %p613 = scmp.lt.s32.totalorder %s35, 1
          %s614 = scalar_select %p613, %s35, 1
          %s615 = smul.addr %s614, 2
          %s616 = smul.addr %s615, 4
          %s617 = scalar_lea.vmem %s5, %s616
        $region84: #{tpu_custom_call.1} parent=59 // pred_fallthru
          _
        // Predicated region
        $region85: #{tpu_custom_call.1} parent=59 // pred_check
          %p618 = pneg %p222
        $region86: #{tpu_custom_call.1} parent=59 // pred_check_branch
          %620 = sbr.rel (%p618) target = $region88
        $region87: #{tpu_custom_call.1} parent=59 // pred_region
          %p621 = scmp.lt.s32.totalorder %s35, 1
          %s622 = scalar_select %p621, %s35, 1
          %p623 = scmp.lt.s32.totalorder %s36, 0
          %s624 = scalar_select %p623, %s36, 0
          %s625 = sadd.s32 %s624, %s622
          %s626 = smul.addr %s625, 4
          %s627 = scalar_lea.vmem %s6, %s626
        $region88: #{tpu_custom_call.1} parent=59 // pred_fallthru
          _
        // Predicated region
        $region89: #{tpu_custom_call.1} parent=59 // pred_check
          %p628 = pneg %p250
        $region90: #{tpu_custom_call.1} parent=59 // pred_check_branch
          %630 = sbr.rel (%p628) target = $region92
        $region91: #{tpu_custom_call.1} parent=59 // pred_region
          %p631 = scmp.lt.s32.totalorder %s35, 1
          %s632 = scalar_select %p631, %s35, 1
          %p633 = scmp.lt.s32.totalorder %s36, 0
          %s634 = scalar_select %p633, %s36, 0
          %s635 = sadd.s32 %s634, %s632
          %s636 = smul.addr %s635, 4
          %s637 = scalar_lea.vmem %s7, %s636
        $region92: #{tpu_custom_call.1} parent=59 // pred_fallthru
          _
      $region60: #{tpu_custom_call.1} parent=5 // pred_fallthru
        _
      %p638 = scmp.le.s32.totalorder 1, %s28
      %p639 = scmp.lt.s32.totalorder %s28, 3
      %p640 = pnand %p638, %p639
      %p641 = pneg %p640
      // Predicated region
      $region93: #{tpu_custom_call.1} parent=5 // pred_check
        _
      $region94: #{tpu_custom_call.1} parent=5 // pred_check_branch
        %643 = sbr.rel (%p640) target = $region96
      $region95: #{tpu_custom_call.1} parent=5 // pred_region
        %s644 = ssub.s32 %s28, 1
        %p645 = scmp.lt.s32.totalorder %s37, 1
        %s646 = scalar_select %p645, %s37, 1
        %p647 = scmp.lt.s32.totalorder %s38, 0
        %s648 = scalar_select %p647, %s38, 0
        %s649 = sadd.s32 %s648, %s646
        %s650 = smul.addr %s649, 8
        %s651 = scalar_lea.vmem %s0, %s650
        %p652 = pneg %p68
        %p653 = pneg %p65
        %p654 = scmp.lt.s32.totalorder %s37, 1
        %s655 = scalar_select %p654, %s37, 1
        %p656 = scmp.lt.s32.totalorder %s38, 0
        %s657 = scalar_select %p656, %s38, 0
        %s658 = sadd.s32 %s657, %s655
        %s659 = smul.addr %s658, 4
        %s660 = scalar_lea.vmem %s1, %s659
        %p661 = pneg %p96
        %p662 = pneg %p93
        %p663 = scmp.lt.s32.totalorder %s37, 1
        %s664 = scalar_select %p663, %s37, 1
        %s665 = smul.addr %s664, 4
        %s666 = smul.addr %s665, 4
        %s667 = scalar_lea.vmem %s2, %s666
        %p668 = pneg %p122
        %p669 = pneg %p119
        %p670 = scmp.lt.s32.totalorder %s37, 1
        %s671 = scalar_select %p670, %s37, 1
        %s672 = smul.addr %s671, 4
        %s673 = scalar_lea.vmem %s3, %s672
        %p674 = pneg %p148
        %p675 = pneg %p145
        %p676 = scmp.lt.s32.totalorder %s37, 1
        %s677 = scalar_select %p676, %s37, 1
        %s678 = smul.addr %s677, 4
        %s679 = smul.addr %s678, 4
        %s680 = scalar_lea.vmem %s4, %s679
        %p681 = pneg %p174
        %p682 = pneg %p171
        %p683 = scmp.lt.s32.totalorder %s37, 1
        %s684 = scalar_select %p683, %s37, 1
        %s685 = smul.addr %s684, 2
        %s686 = smul.addr %s685, 4
        %s687 = scalar_lea.vmem %s5, %s686
        %p688 = pneg %p200
        %p689 = pneg %p197
        %p690 = scmp.lt.s32.totalorder %s37, 1
        %s691 = scalar_select %p690, %s37, 1
        %p692 = scmp.lt.s32.totalorder %s38, 0
        %s693 = scalar_select %p692, %s38, 0
        %s694 = sadd.s32 %s693, %s691
        %s695 = smul.addr %s694, 4
        %s696 = scalar_lea.vmem %s6, %s695
        %p697 = pneg %p228
        %p698 = pneg %p225
        %p699 = scmp.lt.s32.totalorder %s37, 1
        %s700 = scalar_select %p699, %s37, 1
        %p701 = scmp.lt.s32.totalorder %s38, 0
        %s702 = scalar_select %p701, %s38, 0
        %s703 = sadd.s32 %s702, %s700
        %s704 = smul.addr %s703, 4
        %s705 = scalar_lea.vmem %s7, %s704
        %p706 = pneg %p256
        %p707 = pneg %p253
        %p708 = pneg %p277
        %p709 = pneg %p274
        %p710 = pneg %p298
        %p711 = pneg %p295
        %p712 = pneg %p319
        %p713 = pneg %p316
        %p714 = pneg %p340
        %p715 = pneg %p337
        %p716 = pneg %p361
        %p717 = pneg %p358
        %p718 = pneg %p382
        %p719 = pneg %p379
        %p720 = pneg %p403
        %p721 = pneg %p400
        %p722 = pneg %p424
        %p723 = pneg %p421
        %p724 = pneg %p445
        %p725 = pneg %p442
        %p726 = pneg %p466
        %p727 = pneg %p463
        %p728 = pneg %p487
        %p729 = pneg %p484
        %p730 = pneg %p515
        %p731 = pneg %p512
        %s732 = sand.u32 %s502, 1
        %s733 = scalar_lea.sflag [#allocation4], %s732
        %s734 = sand.u32 %s502, 1
        %s735 = smul.addr %s734, 8
        %s736 = scalar_lea.vmem [#allocation3], %s735
        %p737 = scmp.lt.s32.totalorder %s37, 1
        %s738 = scalar_select %p737, %s37, 1
        %p739 = scmp.lt.s32.totalorder %s38, 0
        %s740 = scalar_select %p739, %s38, 0
        %s741 = sadd.s32 %s740, %s738
        %s742 = smul.addr %s741, 8
        %s743 = scalar_lea.vmem %s0, %s742
        %p744 = scmp.lt.s32.totalorder %s37, 1
        %s745 = scalar_select %p744, %s37, 1
        %p746 = scmp.lt.s32.totalorder %s38, 0
        %s747 = scalar_select %p746, %s38, 0
        %s748 = sadd.s32 %s747, %s745
        %s749 = smul.addr %s748, 4
        %s750 = scalar_lea.vmem %s1, %s749
        %p751 = scmp.lt.s32.totalorder %s37, 1
        %s752 = scalar_select %p751, %s37, 1
        %s753 = smul.addr %s752, 4
        %s754 = smul.addr %s753, 4
        %s755 = scalar_lea.vmem %s2, %s754
        %p756 = scmp.lt.s32.totalorder %s37, 1
        %s757 = scalar_select %p756, %s37, 1
        %s758 = smul.addr %s757, 4
        %s759 = scalar_lea.vmem %s3, %s758
        %p760 = scmp.lt.s32.totalorder %s37, 1
        %s761 = scalar_select %p760, %s37, 1
        %s762 = smul.addr %s761, 4
        %s763 = smul.addr %s762, 4
        %s764 = scalar_lea.vmem %s4, %s763
        %p765 = scmp.lt.s32.totalorder %s37, 1
        %s766 = scalar_select %p765, %s37, 1
        %s767 = smul.addr %s766, 2
        %s768 = smul.addr %s767, 4
        %s769 = scalar_lea.vmem %s5, %s768
        %p770 = scmp.lt.s32.totalorder %s37, 1
        %s771 = scalar_select %p770, %s37, 1
        %p772 = scmp.lt.s32.totalorder %s38, 0
        %s773 = scalar_select %p772, %s38, 0
        %s774 = sadd.s32 %s773, %s771
        %s775 = smul.addr %s774, 4
        %s776 = scalar_lea.vmem %s6, %s775
        %p777 = scmp.lt.s32.totalorder %s37, 1
        %s778 = scalar_select %p777, %s37, 1
        %p779 = scmp.lt.s32.totalorder %s38, 0
        %s780 = scalar_select %p779, %s38, 0
        %s781 = sadd.s32 %s780, %s778
        %s782 = smul.addr %s781, 4
        %s783 = scalar_lea.vmem %s7, %s782
        %v785 = vld [vmem:[%s743] sm:$0xff]
        %v786 = vld [vmem:[%s750] sm:$0xf]
        %v787 = vld [vmem:[%s776] sm:$0xf]
        %v788 = vunpack.c.l.bf16 %v787
        %v789 = vld [vmem:[%s755] sm:$0xf]
        %vm790 = vcmask 64512
        %v792 = vsel %vm790, %v786, 0
        %vm794 = vcmask 1043456
        %v796 = vsel %vm794, %v789, 0
        %798 = vmatprep.subr.bf16.mxu0 0
        %799 = vmatpush1.bf16.msra.mxu0 %v796
        %800 = vmatprep.subr.bf16.mxu0 0
        %801 = vmatpush1.bf16.msra.mxu0 0
        %802 = vmatprep.subr.bf16.mxu0 0
        %803 = vmatpush1.bf16.msra.mxu0 0
        %804 = vmatprep.subr.bf16.mxu0 0
        %805 = vmatpush1.bf16.msra.mxu0 0
        %806 = vmatprep.subr.bf16.mxu0 0
        %807 = vmatpush1.bf16.msra.mxu0 0
        %808 = vmatprep.subr.bf16.mxu0 0
        %809 = vmatpush1.bf16.msra.mxu0 0
        %810 = vmatprep.subr.bf16.mxu0 0
        %811 = vmatpush1.bf16.msra.mxu0 0
        %812 = vmatprep.subr.bf16.mxu0 0
        %813 = vmatpush1.bf16.msra.mxu0 0
        %814 = vmatprep.subr.bf16.mxu0 0
        %815 = vmatpush1.bf16.msra.mxu0 0
        %816 = vmatprep.subr.bf16.mxu0 0
        %817 = vmatpush1.bf16.msra.mxu0 0
        %818 = vmatprep.subr.bf16.mxu0 0
        %819 = vmatpush1.bf16.msra.mxu0 0
        %820 = vmatprep.subr.bf16.mxu0 0
        %821 = vmatpush1.bf16.msra.mxu0 0
        %822 = vmatprep.subr.bf16.mxu0 0
        %823 = vmatpush1.bf16.msra.mxu0 0
        %824 = vmatprep.subr.bf16.mxu0 0
        %825 = vmatpush1.bf16.msra.mxu0 0
        %826 = vmatprep.subr.bf16.mxu0 0
        %827 = vmatpush1.bf16.msra.mxu0 0
        %828 = vmatprep.subr.bf16.mxu0 0
        %829 = vmatpush1.bf16.msra.mxu0 0
        %830 = vmatprep.mubr.bf16.mxu0 0
        %831 = vmatmul.mubr.bf16.gmra.mrb[0].mxu0 %v792
        %v832 = vpop.f32.mrb[0].mxu0
        %v833 = vadd.f32 %v788, %v832
        %v834 = vpop.f32.mrb[0].mxu0
        %v835 = vpop.f32.mrb[0].mxu0
        %v836 = vpop.f32.mrb[0].mxu0
        %837 = vdwg.mxu0
        %v838 = vsel %vm790, %v833, -inf
        %839 = vmax.xlane.f32.xlu0 %v838
        %v840 = vpop.xlane.xlu0 %839
        %v841 = vsub.f32 %v833, %v840
        %v842 = vmul.f32 %v841, 1.442695
        %v843 = vpow.pop %v842
        %v844 = vsel %vm790, %v843, 0.0
        %845 = vadd.xlane.f32.xlu0 %v844
        %v846 = vpop.xlane.xlu0 %845
        %v847 = vrcp.pop %v846
        %v848 = vmul.f32 %v843, %v847
        %v849 = vpack.c.bf16 %v848, %v848
        %v850 = vld [vmem:[%s759] sm:$0xf]
        %v852 = vsel %vm790, %v849, 0
        %v855 = vsel %vm794, %v850, 0
        %857 = vmatprep.subr.bf16.mxu0 0
        %858 = vmatpush1.bf16.msra.mxu0 %v855
        %859 = vmatprep.subr.bf16.mxu0 0
        %860 = vmatpush1.bf16.msra.mxu0 0
        %861 = vmatprep.subr.bf16.mxu0 0
        %862 = vmatpush1.bf16.msra.mxu0 0
        %863 = vmatprep.subr.bf16.mxu0 0
        %864 = vmatpush1.bf16.msra.mxu0 0
        %865 = vmatprep.subr.bf16.mxu0 0
        %866 = vmatpush1.bf16.msra.mxu0 0
        %867 = vmatprep.subr.bf16.mxu0 0
        %868 = vmatpush1.bf16.msra.mxu0 0
        %869 = vmatprep.subr.bf16.mxu0 0
        %870 = vmatpush1.bf16.msra.mxu0 0
        %871 = vmatprep.subr.bf16.mxu0 0
        %872 = vmatpush1.bf16.msra.mxu0 0
        %873 = vmatprep.subr.bf16.mxu0 0
        %874 = vmatpush1.bf16.msra.mxu0 0
        %875 = vmatprep.subr.bf16.mxu0 0
        %876 = vmatpush1.bf16.msra.mxu0 0
        %877 = vmatprep.subr.bf16.mxu0 0
        %878 = vmatpush1.bf16.msra.mxu0 0
        %879 = vmatprep.subr.bf16.mxu0 0
        %880 = vmatpush1.bf16.msra.mxu0 0
        %881 = vmatprep.subr.bf16.mxu0 0
        %882 = vmatpush1.bf16.msra.mxu0 0
        %883 = vmatprep.subr.bf16.mxu0 0
        %884 = vmatpush1.bf16.msra.mxu0 0
        %885 = vmatprep.subr.bf16.mxu0 0
        %886 = vmatpush1.bf16.msra.mxu0 0
        %887 = vmatprep.subr.bf16.mxu0 0
        %888 = vmatpush1.bf16.msra.mxu0 0
        %889 = vmatprep.mubr.bf16.mxu0 0
        %890 = vmatmul.mubr.bf16.gmra.mrb[0].mxu0 %v852
        %v891 = vpop.f32.mrb[0].mxu0
        %v892 = vadd.f32 0.0, %v891
        %v893 = vpop.f32.mrb[0].mxu0
        %v894 = vpop.f32.mrb[0].mxu0
        %v895 = vpop.f32.mrb[0].mxu0
        %896 = vdwg.mxu0
        %v897 = vpack.c.bf16 %v892, %v892
        %vm898 = vcmask 60416
        %899 = vst.msk [vmem:[#allocation2] sm:$0xf] %vm898, %v897
        %v900 = vld [vmem:[%s755 + $0x4] sm:$0xf]
        %v902 = vunpack.c.l.b16 %v786
        %v903 = vpack.c.b16 %v902, %v902
        %904 = vrot.lane.b32.xlu0 %v903, 120
        %v905 = vpop.permute.xlu0 %904
        %v907 = vsel %vm790, %v905, 0
        %v910 = vsel %vm794, %v900, 0
        %912 = vmatprep.subr.bf16.mxu0 0
        %913 = vmatpush1.bf16.msra.mxu0 %v910
        %914 = vmatprep.subr.bf16.mxu0 0
        %915 = vmatpush1.bf16.msra.mxu0 0
        %916 = vmatprep.subr.bf16.mxu0 0
        %917 = vmatpush1.bf16.msra.mxu0 0
        %918 = vmatprep.subr.bf16.mxu0 0
        %919 = vmatpush1.bf16.msra.mxu0 0
        %920 = vmatprep.subr.bf16.mxu0 0
        %921 = vmatpush1.bf16.msra.mxu0 0
        %922 = vmatprep.subr.bf16.mxu0 0
        %923 = vmatpush1.bf16.msra.mxu0 0
        %924 = vmatprep.subr.bf16.mxu0 0
        %925 = vmatpush1.bf16.msra.mxu0 0
        %926 = vmatprep.subr.bf16.mxu0 0
        %927 = vmatpush1.bf16.msra.mxu0 0
        %928 = vmatprep.subr.bf16.mxu0 0
        %929 = vmatpush1.bf16.msra.mxu0 0
        %930 = vmatprep.subr.bf16.mxu0 0
        %931 = vmatpush1.bf16.msra.mxu0 0
        %932 = vmatprep.subr.bf16.mxu0 0
        %933 = vmatpush1.bf16.msra.mxu0 0
        %934 = vmatprep.subr.bf16.mxu0 0
        %935 = vmatpush1.bf16.msra.mxu0 0
        %936 = vmatprep.subr.bf16.mxu0 0
        %937 = vmatpush1.bf16.msra.mxu0 0
        %938 = vmatprep.subr.bf16.mxu0 0
        %939 = vmatpush1.bf16.msra.mxu0 0
        %940 = vmatprep.subr.bf16.mxu0 0
        %941 = vmatpush1.bf16.msra.mxu0 0
        %942 = vmatprep.subr.bf16.mxu0 0
        %943 = vmatpush1.bf16.msra.mxu0 0
        %944 = vmatprep.mubr.bf16.mxu0 0
        %945 = vmatmul.mubr.bf16.gmra.mrb[0].mxu0 %v907
        %v946 = vpop.f32.mrb[0].mxu0
        %v947 = vadd.f32 %v788, %v946
        %v948 = vpop.f32.mrb[0].mxu0
        %v949 = vpop.f32.mrb[0].mxu0
        %v950 = vpop.f32.mrb[0].mxu0
        %951 = vdwg.mxu0
        %v952 = vsel %vm790, %v947, -inf
        %953 = vmax.xlane.f32.xlu0 %v952
        %v954 = vpop.xlane.xlu0 %953
        %v955 = vsub.f32 %v947, %v954
        %v956 = vmul.f32 %v955, 1.442695
        %v957 = vpow.pop %v956
        %v958 = vsel %vm790, %v957, 0.0
        %959 = vadd.xlane.f32.xlu0 %v958
        %v960 = vpop.xlane.xlu0 %959
        %v961 = vrcp.pop %v960
        %v962 = vmul.f32 %v957, %v961
        %v963 = vpack.c.bf16 %v962, %v962
        %v964 = vld [vmem:[%s759] sm:$0xf]
        %v966 = vunpack.c.l.b16 %v964
        %v967 = vpack.c.b16 %v966, %v966
        %968 = vrot.lane.b32.xlu0 %v967, 120
        %v969 = vpop.permute.xlu0 %968
        %v971 = vsel %vm790, %v963, 0
        %v974 = vsel %vm794, %v969, 0
        %976 = vmatprep.subr.bf16.mxu0 0
        %977 = vmatpush1.bf16.msra.mxu0 %v974
        %978 = vmatprep.subr.bf16.mxu0 0
        %979 = vmatpush1.bf16.msra.mxu0 0
        %980 = vmatprep.subr.bf16.mxu0 0
        %981 = vmatpush1.bf16.msra.mxu0 0
        %982 = vmatprep.subr.bf16.mxu0 0
        %983 = vmatpush1.bf16.msra.mxu0 0
        %984 = vmatprep.subr.bf16.mxu0 0
        %985 = vmatpush1.bf16.msra.mxu0 0
        %986 = vmatprep.subr.bf16.mxu0 0
        %987 = vmatpush1.bf16.msra.mxu0 0
        %988 = vmatprep.subr.bf16.mxu0 0
        %989 = vmatpush1.bf16.msra.mxu0 0
        %990 = vmatprep.subr.bf16.mxu0 0
        %991 = vmatpush1.bf16.msra.mxu0 0
        %992 = vmatprep.subr.bf16.mxu0 0
        %993 = vmatpush1.bf16.msra.mxu0 0
        %994 = vmatprep.subr.bf16.mxu0 0
        %995 = vmatpush1.bf16.msra.mxu0 0
        %996 = vmatprep.subr.bf16.mxu0 0
        %997 = vmatpush1.bf16.msra.mxu0 0
        %998 = vmatprep.subr.bf16.mxu0 0
        %999 = vmatpush1.bf16.msra.mxu0 0
        %1000 = vmatprep.subr.bf16.mxu0 0
        %1001 = vmatpush1.bf16.msra.mxu0 0
        %1002 = vmatprep.subr.bf16.mxu0 0
        %1003 = vmatpush1.bf16.msra.mxu0 0
        %1004 = vmatprep.subr.bf16.mxu0 0
        %1005 = vmatpush1.bf16.msra.mxu0 0
        %1006 = vmatprep.subr.bf16.mxu0 0
        %1007 = vmatpush1.bf16.msra.mxu0 0
        %1008 = vmatprep.mubr.bf16.mxu0 0
        %1009 = vmatmul.mubr.bf16.gmra.mrb[0].mxu0 %v971
        %v1010 = vpop.f32.mrb[0].mxu0
        %v1011 = vadd.f32 0.0, %v1010
        %v1012 = vpop.f32.mrb[0].mxu0
        %v1013 = vpop.f32.mrb[0].mxu0
        %v1014 = vpop.f32.mrb[0].mxu0
        %1015 = vdwg.mxu0
        %v1016 = vpack.c.bf16 %v1011, %v1011
        %v1018 = vunpack.c.l.b16 %v1016
        %v1019 = vpack.c.b16 %v1018, %v1018
        %1020 = vrot.lane.b32.xlu0 %v1019, 8
        %v1021 = vpop.permute.xlu0 %1020
        %vm1023 = vcmask 126016
        %1024 = vst.msk [vmem:[#allocation2] sm:$0xf] %vm1023, %v1021
        %v1025 = vld [vmem:[%s755 + $0x8] sm:$0xf]
        %1026 = vrot.lane.b32.xlu0 %v903, 112
        %v1027 = vpop.permute.xlu0 %1026
        %v1029 = vsel %vm790, %v1027, 0
        %v1032 = vsel %vm794, %v1025, 0
        %1034 = vmatprep.subr.bf16.mxu0 0
        %1035 = vmatpush1.bf16.msra.mxu0 %v1032
        %1036 = vmatprep.subr.bf16.mxu0 0
        %1037 = vmatpush1.bf16.msra.mxu0 0
        %1038 = vmatprep.subr.bf16.mxu0 0
        %1039 = vmatpush1.bf16.msra.mxu0 0
        %1040 = vmatprep.subr.bf16.mxu0 0
        %1041 = vmatpush1.bf16.msra.mxu0 0
        %1042 = vmatprep.subr.bf16.mxu0 0
        %1043 = vmatpush1.bf16.msra.mxu0 0
        %1044 = vmatprep.subr.bf16.mxu0 0
        %1045 = vmatpush1.bf16.msra.mxu0 0
        %1046 = vmatprep.subr.bf16.mxu0 0
        %1047 = vmatpush1.bf16.msra.mxu0 0
        %1048 = vmatprep.subr.bf16.mxu0 0
        %1049 = vmatpush1.bf16.msra.mxu0 0
        %1050 = vmatprep.subr.bf16.mxu0 0
        %1051 = vmatpush1.bf16.msra.mxu0 0
        %1052 = vmatprep.subr.bf16.mxu0 0
        %1053 = vmatpush1.bf16.msra.mxu0 0
        %1054 = vmatprep.subr.bf16.mxu0 0
        %1055 = vmatpush1.bf16.msra.mxu0 0
        %1056 = vmatprep.subr.bf16.mxu0 0
        %1057 = vmatpush1.bf16.msra.mxu0 0
        %1058 = vmatprep.subr.bf16.mxu0 0
        %1059 = vmatpush1.bf16.msra.mxu0 0
        %1060 = vmatprep.subr.bf16.mxu0 0
        %1061 = vmatpush1.bf16.msra.mxu0 0
        %1062 = vmatprep.subr.bf16.mxu0 0
        %1063 = vmatpush1.bf16.msra.mxu0 0
        %1064 = vmatprep.subr.bf16.mxu0 0
        %1065 = vmatpush1.bf16.msra.mxu0 0
        %1066 = vmatprep.mubr.bf16.mxu0 0
        %1067 = vmatmul.mubr.bf16.gmra.mrb[0].mxu0 %v1029
        %v1068 = vpop.f32.mrb[0].mxu0
        %v1069 = vadd.f32 %v788, %v1068
        %v1070 = vpop.f32.mrb[0].mxu0
        %v1071 = vpop.f32.mrb[0].mxu0
        %v1072 = vpop.f32.mrb[0].mxu0
        %1073 = vdwg.mxu0
        %v1074 = vsel %vm790, %v1069, -inf
        %1075 = vmax.xlane.f32.xlu0 %v1074
        %v1076 = vpop.xlane.xlu0 %1075
        %v1077 = vsub.f32 %v1069, %v1076
        %v1078 = vmul.f32 %v1077, 1.442695
        %v1079 = vpow.pop %v1078
        %v1080 = vsel %vm790, %v1079, 0.0
        %1081 = vadd.xlane.f32.xlu0 %v1080
        %v1082 = vpop.xlane.xlu0 %1081
        %v1083 = vrcp.pop %v1082
        %v1084 = vmul.f32 %v1079, %v1083
        %v1085 = vpack.c.bf16 %v1084, %v1084
        %v1086 = vld [vmem:[%s759] sm:$0xf]
        %v1088 = vunpack.c.l.b16 %v1086
        %v1089 = vpack.c.b16 %v1088, %v1088
        %1090 = vrot.lane.b32.xlu0 %v1089, 112
        %v1091 = vpop.permute.xlu0 %1090
        %v1093 = vsel %vm790, %v1085, 0
        %v1096 = vsel %vm794, %v1091, 0
        %1098 = vmatprep.subr.bf16.mxu0 0
        %1099 = vmatpush1.bf16.msra.mxu0 %v1096
        %1100 = vmatprep.subr.bf16.mxu0 0
        %1101 = vmatpush1.bf16.msra.mxu0 0
        %1102 = vmatprep.subr.bf16.mxu0 0
        %1103 = vmatpush1.bf16.msra.mxu0 0
        %1104 = vmatprep.subr.bf16.mxu0 0
        %1105 = vmatpush1.bf16.msra.mxu0 0
        %1106 = vmatprep.subr.bf16.mxu0 0
        %1107 = vmatpush1.bf16.msra.mxu0 0
        %1108 = vmatprep.subr.bf16.mxu0 0
        %1109 = vmatpush1.bf16.msra.mxu0 0
        %1110 = vmatprep.subr.bf16.mxu0 0
        %1111 = vmatpush1.bf16.msra.mxu0 0
        %1112 = vmatprep.subr.bf16.mxu0 0
        %1113 = vmatpush1.bf16.msra.mxu0 0
        %1114 = vmatprep.subr.bf16.mxu0 0
        %1115 = vmatpush1.bf16.msra.mxu0 0
        %1116 = vmatprep.subr.bf16.mxu0 0
        %1117 = vmatpush1.bf16.msra.mxu0 0
        %1118 = vmatprep.subr.bf16.mxu0 0
        %1119 = vmatpush1.bf16.msra.mxu0 0
        %1120 = vmatprep.subr.bf16.mxu0 0
        %1121 = vmatpush1.bf16.msra.mxu0 0
        %1122 = vmatprep.subr.bf16.mxu0 0
        %1123 = vmatpush1.bf16.msra.mxu0 0
        %1124 = vmatprep.subr.bf16.mxu0 0
        %1125 = vmatpush1.bf16.msra.mxu0 0
        %1126 = vmatprep.subr.bf16.mxu0 0
        %1127 = vmatpush1.bf16.msra.mxu0 0
        %1128 = vmatprep.subr.bf16.mxu0 0
        %1129 = vmatpush1.bf16.msra.mxu0 0
        %1130 = vmatprep.mubr.bf16.mxu0 0
        %1131 = vmatmul.mubr.bf16.gmra.mrb[0].mxu0 %v1093
        %v1132 = vpop.f32.mrb[0].mxu0
        %v1133 = vadd.f32 0.0, %v1132
        %v1134 = vpop.f32.mrb[0].mxu0
        %v1135 = vpop.f32.mrb[0].mxu0
        %v1136 = vpop.f32.mrb[0].mxu0
        %1137 = vdwg.mxu0
        %v1138 = vpack.c.bf16 %v1133, %v1133
        %v1140 = vunpack.c.l.b16 %v1138
        %v1141 = vpack.c.b16 %v1140, %v1140
        %1142 = vrot.lane.b32.xlu0 %v1141, 16
        %v1143 = vpop.permute.xlu0 %1142
        %vm1145 = vcmask 191616
        %1146 = vst.msk [vmem:[#allocation2] sm:$0xf] %vm1145, %v1143
        %v1147 = vld [vmem:[%s755 + $0xc] sm:$0xf]
        %1148 = vrot.lane.b32.xlu0 %v903, 104
        %v1149 = vpop.permute.xlu0 %1148
        %v1151 = vsel %vm790, %v1149, 0
        %v1154 = vsel %vm794, %v1147, 0
        %1156 = vmatprep.subr.bf16.mxu0 0
        %1157 = vmatpush1.bf16.msra.mxu0 %v1154
        %1158 = vmatprep.subr.bf16.mxu0 0
        %1159 = vmatpush1.bf16.msra.mxu0 0
        %1160 = vmatprep.subr.bf16.mxu0 0
        %1161 = vmatpush1.bf16.msra.mxu0 0
        %1162 = vmatprep.subr.bf16.mxu0 0
        %1163 = vmatpush1.bf16.msra.mxu0 0
        %1164 = vmatprep.subr.bf16.mxu0 0
        %1165 = vmatpush1.bf16.msra.mxu0 0
        %1166 = vmatprep.subr.bf16.mxu0 0
        %1167 = vmatpush1.bf16.msra.mxu0 0
        %1168 = vmatprep.subr.bf16.mxu0 0
        %1169 = vmatpush1.bf16.msra.mxu0 0
        %1170 = vmatprep.subr.bf16.mxu0 0
        %1171 = vmatpush1.bf16.msra.mxu0 0
        %1172 = vmatprep.subr.bf16.mxu0 0
        %1173 = vmatpush1.bf16.msra.mxu0 0
        %1174 = vmatprep.subr.bf16.mxu0 0
        %1175 = vmatpush1.bf16.msra.mxu0 0
        %1176 = vmatprep.subr.bf16.mxu0 0
        %1177 = vmatpush1.bf16.msra.mxu0 0
        %1178 = vmatprep.subr.bf16.mxu0 0
        %1179 = vmatpush1.bf16.msra.mxu0 0
        %1180 = vmatprep.subr.bf16.mxu0 0
        %1181 = vmatpush1.bf16.msra.mxu0 0
        %1182 = vmatprep.subr.bf16.mxu0 0
        %1183 = vmatpush1.bf16.msra.mxu0 0
        %1184 = vmatprep.subr.bf16.mxu0 0
        %1185 = vmatpush1.bf16.msra.mxu0 0
        %1186 = vmatprep.subr.bf16.mxu0 0
        %1187 = vmatpush1.bf16.msra.mxu0 0
        %1188 = vmatprep.mubr.bf16.mxu0 0
        %1189 = vmatmul.mubr.bf16.gmra.mrb[0].mxu0 %v1151
        %v1190 = vpop.f32.mrb[0].mxu0
        %v1191 = vadd.f32 %v788, %v1190
        %v1192 = vpop.f32.mrb[0].mxu0
        %v1193 = vpop.f32.mrb[0].mxu0
        %v1194 = vpop.f32.mrb[0].mxu0
        %1195 = vdwg.mxu0
        %v1196 = vsel %vm790, %v1191, -inf
        %1197 = vmax.xlane.f32.xlu0 %v1196
        %v1198 = vpop.xlane.xlu0 %1197
        %v1199 = vsub.f32 %v1191, %v1198
        %v1200 = vmul.f32 %v1199, 1.442695
        %v1201 = vpow.pop %v1200
        %v1202 = vsel %vm790, %v1201, 0.0
        %1203 = vadd.xlane.f32.xlu0 %v1202
        %v1204 = vpop.xlane.xlu0 %1203
        %v1205 = vrcp.pop %v1204
        %v1206 = vmul.f32 %v1201, %v1205
        %v1207 = vpack.c.bf16 %v1206, %v1206
        %v1208 = vld [vmem:[%s759] sm:$0xf]
        %v1210 = vunpack.c.l.b16 %v1208
        %v1211 = vpack.c.b16 %v1210, %v1210
        %1212 = vrot.lane.b32.xlu0 %v1211, 104
        %v1213 = vpop.permute.xlu0 %1212
        %v1215 = vsel %vm790, %v1207, 0
        %v1218 = vsel %vm794, %v1213, 0
        %1220 = vmatprep.subr.bf16.mxu0 0
        %1221 = vmatpush1.bf16.msra.mxu0 %v1218
        %1222 = vmatprep.subr.bf16.mxu0 0
        %1223 = vmatpush1.bf16.msra.mxu0 0
        %1224 = vmatprep.subr.bf16.mxu0 0
        %1225 = vmatpush1.bf16.msra.mxu0 0
        %1226 = vmatprep.subr.bf16.mxu0 0
        %1227 = vmatpush1.bf16.msra.mxu0 0
        %1228 = vmatprep.subr.bf16.mxu0 0
        %1229 = vmatpush1.bf16.msra.mxu0 0
        %1230 = vmatprep.subr.bf16.mxu0 0
        %1231 = vmatpush1.bf16.msra.mxu0 0
        %1232 = vmatprep.subr.bf16.mxu0 0
        %1233 = vmatpush1.bf16.msra.mxu0 0
        %1234 = vmatprep.subr.bf16.mxu0 0
        %1235 = vmatpush1.bf16.msra.mxu0 0
        %1236 = vmatprep.subr.bf16.mxu0 0
        %1237 = vmatpush1.bf16.msra.mxu0 0
        %1238 = vmatprep.subr.bf16.mxu0 0
        %1239 = vmatpush1.bf16.msra.mxu0 0
        %1240 = vmatprep.subr.bf16.mxu0 0
        %1241 = vmatpush1.bf16.msra.mxu0 0
        %1242 = vmatprep.subr.bf16.mxu0 0
        %1243 = vmatpush1.bf16.msra.mxu0 0
        %1244 = vmatprep.subr.bf16.mxu0 0
        %1245 = vmatpush1.bf16.msra.mxu0 0
        %1246 = vmatprep.subr.bf16.mxu0 0
        %1247 = vmatpush1.bf16.msra.mxu0 0
        %1248 = vmatprep.subr.bf16.mxu0 0
        %1249 = vmatpush1.bf16.msra.mxu0 0
        %1250 = vmatprep.subr.bf16.mxu0 0
        %1251 = vmatpush1.bf16.msra.mxu0 0
        %1252 = vmatprep.mubr.bf16.mxu0 0
        %1253 = vmatmul.mubr.bf16.gmra.mrb[0].mxu0 %v1215
        %v1254 = vpop.f32.mrb[0].mxu0
        %v1255 = vadd.f32 0.0, %v1254
        %v1256 = vpop.f32.mrb[0].mxu0
        %v1257 = vpop.f32.mrb[0].mxu0
        %v1258 = vpop.f32.mrb[0].mxu0
        %1259 = vdwg.mxu0
        %v1260 = vpack.c.bf16 %v1255, %v1255
        %v1262 = vunpack.c.l.b16 %v1260
        %v1263 = vpack.c.b16 %v1262, %v1262
        %1264 = vrot.lane.b32.xlu0 %v1263, 24
        %v1265 = vpop.permute.xlu0 %1264
        %vm1267 = vcmask 257216
        %1268 = vst.msk [vmem:[#allocation2] sm:$0xf] %vm1267, %v1265
        %v1269 = vld [vmem:[#allocation2] sm:$0xf]
        %v1270 = vld [vmem:[%s8] sm:$0xf]
        %v1271 = vld [vmem:[%s8 + $0x4] sm:$0xf]
        %v1272 = vld [vmem:[%s8 + $0x8] sm:$0xf]
        %v1273 = vld [vmem:[%s8 + $0xc] sm:$0xf]
        %v1278 = vunpack.c.l.b16 %v1270
        %v1279 = vunpack.c.l.b16 %v1271
        %v1280 = vunpack.c.l.b16 %v1272
        %v1281 = vunpack.c.l.b16 %v1273
        %v1282 = vpack.c.b16 %v1279, %v1278
        %v1283 = vpack.c.b16 %v1281, %v1280
        %vm1286 = vcmask 261120
        %v1288 = vsel %vm1286, %v1269, 0
        %1290 = vmatprep.subr.bf16.mxu0 0
        %1291 = vmatpush1.bf16.msra.mxu0 %v1282
        %1292 = vmatprep.subr.bf16.mxu0 0
        %1293 = vmatpush1.bf16.msra.mxu0 %v1283
        %1294 = vmatprep.subr.bf16.mxu0 0
        %1295 = vmatpush1.bf16.msra.mxu0 0
        %1296 = vmatprep.subr.bf16.mxu0 0
        %1297 = vmatpush1.bf16.msra.mxu0 0
        %1298 = vmatprep.subr.bf16.mxu0 0
        %1299 = vmatpush1.bf16.msra.mxu0 0
        %1300 = vmatprep.subr.bf16.mxu0 0
        %1301 = vmatpush1.bf16.msra.mxu0 0
        %1302 = vmatprep.subr.bf16.mxu0 0
        %1303 = vmatpush1.bf16.msra.mxu0 0
        %1304 = vmatprep.subr.bf16.mxu0 0
        %1305 = vmatpush1.bf16.msra.mxu0 0
        %1306 = vmatprep.subr.bf16.mxu0 0
        %1307 = vmatpush1.bf16.msra.mxu0 0
        %1308 = vmatprep.subr.bf16.mxu0 0
        %1309 = vmatpush1.bf16.msra.mxu0 0
        %1310 = vmatprep.subr.bf16.mxu0 0
        %1311 = vmatpush1.bf16.msra.mxu0 0
        %1312 = vmatprep.subr.bf16.mxu0 0
        %1313 = vmatpush1.bf16.msra.mxu0 0
        %1314 = vmatprep.subr.bf16.mxu0 0
        %1315 = vmatpush1.bf16.msra.mxu0 0
        %1316 = vmatprep.subr.bf16.mxu0 0
        %1317 = vmatpush1.bf16.msra.mxu0 0
        %1318 = vmatprep.subr.bf16.mxu0 0
        %1319 = vmatpush1.bf16.msra.mxu0 0
        %1320 = vmatprep.subr.bf16.mxu0 0
        %1321 = vmatpush1.bf16.msra.mxu0 0
        %1322 = vmatprep.mubr.bf16.mxu0 0
        %1323 = vmatmul.mubr.bf16.gmra.mrb[0].mxu0 %v1288
        %v1324 = vpop.f32.mrb[0].mxu0
        %v1325 = vadd.f32 0.0, %v1324
        %v1326 = vpop.f32.mrb[0].mxu0
        %v1327 = vpop.f32.mrb[0].mxu0
        %v1328 = vpop.f32.mrb[0].mxu0
        %1329 = vdwg.mxu0
        %v1330 = vadd.f32 %v785, %v1325
        %v1331 = vld [vmem:[%s9] sm:$0x1]
        %v1332 = vld [vmem:[%s10] sm:$0x1]
        %v1333 = vsel %vm1286, %v1330, 0.0
        %1334 = vadd.xlane.f32.xlu0 %v1333
        %v1335 = vpop.xlane.xlu0 %1334
        %v1336 = vrcp.pop 32.0
        %v1337 = vmul.f32 %v1335, %v1336
        %v1338 = vsub.f32 %v1330, %v1337
        %v1339 = vmul.f32 %v1338, %v1338
        %v1340 = vsel %vm1286, %v1339, 0.0
        %1341 = vadd.xlane.f32.xlu0 %v1340
        %v1342 = vpop.xlane.xlu0 %1341
        %v1343 = vmul.f32 %v1342, 0.032258064
        %v1344 = vrsqrt.pop %v1343
        %v1345 = vmul.f32 %v1343, %v1344
        %vm1346 = vcmp.eq.f32.partialorder %v1343, inf
        %v1347 = vsel %vm1346, %v1343, %v1345
        %vm1348 = vcmp.eq.f32.partialorder %v1343, 0.0
        %v1349 = vand.u32 %v1343, 2147483648
        %v1350 = vsel %vm1348, %v1349, %v1347
        %v1351 = vadd.f32 %v1350, 1e-06
        %v1352 = vrcp.pop %v1351
        %v1353 = vmul.f32 %v1338, %v1352
        %v1355 = vlaneseq
        %v1356 = vshrl.u32 %v1355, 7
        %v1357 = vsub.s32 0, %v1356
        %v1358 = vrot.slane %v1331, %v1357
        %v1360 = vmul.f32 %v1358, %v1353
        %v1362 = vlaneseq
        %v1363 = vshrl.u32 %v1362, 7
        %v1364 = vsub.s32 0, %v1363
        %v1365 = vrot.slane %v1332, %v1364
        %v1367 = vadd.f32 %v1360, %v1365
        %v1368 = vpack.c.bf16 %v1367, %v1367
        %v1369 = vld [vmem:[%s11] sm:$0xf]
        %v1370 = vld [vmem:[%s11 + $0x4] sm:$0xf]
        %v1371 = vld [vmem:[%s11 + $0x8] sm:$0xf]
        %v1372 = vld [vmem:[%s11 + $0xc] sm:$0xf]
        %v1377 = vunpack.c.l.b16 %v1369
        %v1378 = vunpack.c.l.b16 %v1370
        %v1379 = vunpack.c.l.b16 %v1371
        %v1380 = vunpack.c.l.b16 %v1372
        %v1381 = vpack.c.b16 %v1378, %v1377
        %v1382 = vpack.c.b16 %v1380, %v1379
        %v1386 = vsel %vm1286, %v1368, 0
        %1388 = vmatprep.subr.bf16.mxu0 0
        %1389 = vmatpush1.bf16.msra.mxu0 %v1381
        %1390 = vmatprep.subr.bf16.mxu0 0
        %1391 = vmatpush1.bf16.msra.mxu0 %v1382
        %1392 = vmatprep.subr.bf16.mxu0 0
        %1393 = vmatpush1.bf16.msra.mxu0 0
        %1394 = vmatprep.subr.bf16.mxu0 0
        %1395 = vmatpush1.bf16.msra.mxu0 0
        %1396 = vmatprep.subr.bf16.mxu0 0
        %1397 = vmatpush1.bf16.msra.mxu0 0
        %1398 = vmatprep.subr.bf16.mxu0 0
        %1399 = vmatpush1.bf16.msra.mxu0 0
        %1400 = vmatprep.subr.bf16.mxu0 0
        %1401 = vmatpush1.bf16.msra.mxu0 0
        %1402 = vmatprep.subr.bf16.mxu0 0
        %1403 = vmatpush1.bf16.msra.mxu0 0
        %1404 = vmatprep.subr.bf16.mxu0 0
        %1405 = vmatpush1.bf16.msra.mxu0 0
        %1406 = vmatprep.subr.bf16.mxu0 0
        %1407 = vmatpush1.bf16.msra.mxu0 0
        %1408 = vmatprep.subr.bf16.mxu0 0
        %1409 = vmatpush1.bf16.msra.mxu0 0
        %1410 = vmatprep.subr.bf16.mxu0 0
        %1411 = vmatpush1.bf16.msra.mxu0 0
        %1412 = vmatprep.subr.bf16.mxu0 0
        %1413 = vmatpush1.bf16.msra.mxu0 0
        %1414 = vmatprep.subr.bf16.mxu0 0
        %1415 = vmatpush1.bf16.msra.mxu0 0
        %1416 = vmatprep.subr.bf16.mxu0 0
        %1417 = vmatpush1.bf16.msra.mxu0 0
        %1418 = vmatprep.subr.bf16.mxu0 0
        %1419 = vmatpush1.bf16.msra.mxu0 0
        %1420 = vmatprep.mubr.bf16.mxu0 0
        %1421 = vmatmul.mubr.bf16.gmra.mrb[0].mxu0 %v1386
        %v1422 = vpop.f32.mrb[0].mxu0
        %v1423 = vadd.f32 0.0, %v1422
        %v1424 = vpop.f32.mrb[0].mxu0
        %v1425 = vpop.f32.mrb[0].mxu0
        %v1426 = vpop.f32.mrb[0].mxu0
        %1427 = vdwg.mxu0
        %v1428 = vmul.f32 %v1423, 0.35355338
        %v1429 = vpack.c.bf16 %v1428, %v1428
        %v1430 = vld [vmem:[%s783] sm:$0xf]
        %v1431 = vunpack.c.l.bf16 %v1430
        %v1432 = vld [vmem:[%s764] sm:$0xf]
        %v1434 = vsel %vm790, %v1429, 0
        %v1437 = vsel %vm794, %v1432, 0
        %1439 = vmatprep.subr.bf16.mxu0 0
        %1440 = vmatpush1.bf16.msra.mxu0 %v1437
        %1441 = vmatprep.subr.bf16.mxu0 0
        %1442 = vmatpush1.bf16.msra.mxu0 0
        %1443 = vmatprep.subr.bf16.mxu0 0
        %1444 = vmatpush1.bf16.msra.mxu0 0
        %1445 = vmatprep.subr.bf16.mxu0 0
        %1446 = vmatpush1.bf16.msra.mxu0 0
        %1447 = vmatprep.subr.bf16.mxu0 0
        %1448 = vmatpush1.bf16.msra.mxu0 0
        %1449 = vmatprep.subr.bf16.mxu0 0
        %1450 = vmatpush1.bf16.msra.mxu0 0
        %1451 = vmatprep.subr.bf16.mxu0 0
        %1452 = vmatpush1.bf16.msra.mxu0 0
        %1453 = vmatprep.subr.bf16.mxu0 0
        %1454 = vmatpush1.bf16.msra.mxu0 0
        %1455 = vmatprep.subr.bf16.mxu0 0
        %1456 = vmatpush1.bf16.msra.mxu0 0
        %1457 = vmatprep.subr.bf16.mxu0 0
        %1458 = vmatpush1.bf16.msra.mxu0 0
        %1459 = vmatprep.subr.bf16.mxu0 0
        %1460 = vmatpush1.bf16.msra.mxu0 0
        %1461 = vmatprep.subr.bf16.mxu0 0
        %1462 = vmatpush1.bf16.msra.mxu0 0
        %1463 = vmatprep.subr.bf16.mxu0 0
        %1464 = vmatpush1.bf16.msra.mxu0 0
        %1465 = vmatprep.subr.bf16.mxu0 0
        %1466 = vmatpush1.bf16.msra.mxu0 0
        %1467 = vmatprep.subr.bf16.mxu0 0
        %1468 = vmatpush1.bf16.msra.mxu0 0
        %1469 = vmatprep.subr.bf16.mxu0 0
        %1470 = vmatpush1.bf16.msra.mxu0 0
        %1471 = vmatprep.mubr.bf16.mxu0 0
        %1472 = vmatmul.mubr.bf16.gmra.mrb[0].mxu0 %v1434
        %v1473 = vpop.f32.mrb[0].mxu0
        %v1474 = vadd.f32 %v1431, %v1473
        %v1475 = vpop.f32.mrb[0].mxu0
        %v1476 = vpop.f32.mrb[0].mxu0
        %v1477 = vpop.f32.mrb[0].mxu0
        %1478 = vdwg.mxu0
        %vm1479 = vcmask 80896
        %v1480 = vsel %vm1479, %v1474, -inf
        %1481 = vmax.xlane.f32.xlu0 %v1480
        %v1482 = vpop.xlane.xlu0 %1481
        %v1483 = vsub.f32 %v1474, %v1482
        %v1484 = vmul.f32 %v1483, 1.442695
        %v1485 = vpow.pop %v1484
        %v1486 = vsel %vm1479, %v1485, 0.0
        %1487 = vadd.xlane.f32.xlu0 %v1486
        %v1488 = vpop.xlane.xlu0 %1487
        %v1489 = vrcp.pop %v1488
        %v1490 = vmul.f32 %v1485, %v1489
        %v1491 = vpack.c.bf16 %v1490, %v1490
        %v1492 = vld [vmem:[%s769] sm:$0xf]
        %v1493 = vld [vmem:[%s769 + $0x4] sm:$0x1]
        %v1496 = vunpack.c.l.b16 %v1492
        %v1497 = vunpack.c.l.b16 %v1493
        %v1498 = vpack.c.b16 %v1497, %v1496
        %v1500 = vsel %vm1479, %v1491, 0
        %vm1502 = vcmask 1044480
        %v1504 = vsel %vm1502, %v1498, 0
        %1506 = vmatprep.subr.bf16.mxu0 0
        %1507 = vmatpush1.bf16.msra.mxu0 %v1504
        %1508 = vmatprep.subr.bf16.mxu0 0
        %1509 = vmatpush1.bf16.msra.mxu0 0
        %1510 = vmatprep.subr.bf16.mxu0 0
        %1511 = vmatpush1.bf16.msra.mxu0 0
        %1512 = vmatprep.subr.bf16.mxu0 0
        %1513 = vmatpush1.bf16.msra.mxu0 0
        %1514 = vmatprep.subr.bf16.mxu0 0
        %1515 = vmatpush1.bf16.msra.mxu0 0
        %1516 = vmatprep.subr.bf16.mxu0 0
        %1517 = vmatpush1.bf16.msra.mxu0 0
        %1518 = vmatprep.subr.bf16.mxu0 0
        %1519 = vmatpush1.bf16.msra.mxu0 0
        %1520 = vmatprep.subr.bf16.mxu0 0
        %1521 = vmatpush1.bf16.msra.mxu0 0
        %1522 = vmatprep.subr.bf16.mxu0 0
        %1523 = vmatpush1.bf16.msra.mxu0 0
        %1524 = vmatprep.subr.bf16.mxu0 0
        %1525 = vmatpush1.bf16.msra.mxu0 0
        %1526 = vmatprep.subr.bf16.mxu0 0
        %1527 = vmatpush1.bf16.msra.mxu0 0
        %1528 = vmatprep.subr.bf16.mxu0 0
        %1529 = vmatpush1.bf16.msra.mxu0 0
        %1530 = vmatprep.subr.bf16.mxu0 0
        %1531 = vmatpush1.bf16.msra.mxu0 0
        %1532 = vmatprep.subr.bf16.mxu0 0
        %1533 = vmatpush1.bf16.msra.mxu0 0
        %1534 = vmatprep.subr.bf16.mxu0 0
        %1535 = vmatpush1.bf16.msra.mxu0 0
        %1536 = vmatprep.subr.bf16.mxu0 0
        %1537 = vmatpush1.bf16.msra.mxu0 0
        %1538 = vmatprep.mubr.bf16.mxu0 0
        %1539 = vmatmul.mubr.bf16.gmra.mrb[0].mxu0 %v1500
        %v1540 = vpop.f32.mrb[0].mxu0
        %v1541 = vadd.f32 0.0, %v1540
        %v1542 = vpop.f32.mrb[0].mxu0
        %v1543 = vpop.f32.mrb[0].mxu0
        %v1544 = vpop.f32.mrb[0].mxu0
        %1545 = vdwg.mxu0
        %v1546 = vpack.c.bf16 %v1541, %v1541
        %1547 = vst.msk [vmem:[#allocation2] sm:$0xf] %vm898, %v1546
        %v1548 = vld [vmem:[%s764 + $0x4] sm:$0xf]
        %1550 = vrot.lane.b32.xlu0 %v1429, 120
        %v1551 = vpop.permute.xlu0 %1550
        %v1553 = vsel %vm790, %v1551, 0
        %v1556 = vsel %vm794, %v1548, 0
        %1558 = vmatprep.subr.bf16.mxu0 0
        %1559 = vmatpush1.bf16.msra.mxu0 %v1556
        %1560 = vmatprep.subr.bf16.mxu0 0
        %1561 = vmatpush1.bf16.msra.mxu0 0
        %1562 = vmatprep.subr.bf16.mxu0 0
        %1563 = vmatpush1.bf16.msra.mxu0 0
        %1564 = vmatprep.subr.bf16.mxu0 0
        %1565 = vmatpush1.bf16.msra.mxu0 0
        %1566 = vmatprep.subr.bf16.mxu0 0
        %1567 = vmatpush1.bf16.msra.mxu0 0
        %1568 = vmatprep.subr.bf16.mxu0 0
        %1569 = vmatpush1.bf16.msra.mxu0 0
        %1570 = vmatprep.subr.bf16.mxu0 0
        %1571 = vmatpush1.bf16.msra.mxu0 0
        %1572 = vmatprep.subr.bf16.mxu0 0
        %1573 = vmatpush1.bf16.msra.mxu0 0
        %1574 = vmatprep.subr.bf16.mxu0 0
        %1575 = vmatpush1.bf16.msra.mxu0 0
        %1576 = vmatprep.subr.bf16.mxu0 0
        %1577 = vmatpush1.bf16.msra.mxu0 0
        %1578 = vmatprep.subr.bf16.mxu0 0
        %1579 = vmatpush1.bf16.msra.mxu0 0
        %1580 = vmatprep.subr.bf16.mxu0 0
        %1581 = vmatpush1.bf16.msra.mxu0 0
        %1582 = vmatprep.subr.bf16.mxu0 0
        %1583 = vmatpush1.bf16.msra.mxu0 0
        %1584 = vmatprep.subr.bf16.mxu0 0
        %1585 = vmatpush1.bf16.msra.mxu0 0
        %1586 = vmatprep.subr.bf16.mxu0 0
        %1587 = vmatpush1.bf16.msra.mxu0 0
        %1588 = vmatprep.subr.bf16.mxu0 0
        %1589 = vmatpush1.bf16.msra.mxu0 0
        %1590 = vmatprep.mubr.bf16.mxu0 0
        %1591 = vmatmul.mubr.bf16.gmra.mrb[0].mxu0 %v1553
        %v1592 = vpop.f32.mrb[0].mxu0
        %v1593 = vadd.f32 %v1431, %v1592
        %v1594 = vpop.f32.mrb[0].mxu0
        %v1595 = vpop.f32.mrb[0].mxu0
        %v1596 = vpop.f32.mrb[0].mxu0
        %1597 = vdwg.mxu0
        %v1598 = vsel %vm1479, %v1593, -inf
        %1599 = vmax.xlane.f32.xlu0 %v1598
        %v1600 = vpop.xlane.xlu0 %1599
        %v1601 = vsub.f32 %v1593, %v1600
        %v1602 = vmul.f32 %v1601, 1.442695
        %v1603 = vpow.pop %v1602
        %v1604 = vsel %vm1479, %v1603, 0.0
        %1605 = vadd.xlane.f32.xlu0 %v1604
        %v1606 = vpop.xlane.xlu0 %1605
        %v1607 = vrcp.pop %v1606
        %v1608 = vmul.f32 %v1603, %v1607
        %v1609 = vpack.c.bf16 %v1608, %v1608
        %v1610 = vld [vmem:[%s769] sm:$0xf]
        %v1611 = vld [vmem:[%s769 + $0x4] sm:$0x1]
        %v1614 = vunpack.c.l.b16 %v1610
        %v1615 = vunpack.c.l.b16 %v1611
        %v1616 = vpack.c.b16 %v1615, %v1614
        %1617 = vrot.lane.b32.xlu0 %v1616, 120
        %v1618 = vpop.permute.xlu0 %1617
        %v1620 = vsel %vm1479, %v1609, 0
        %v1623 = vsel %vm1502, %v1618, 0
        %1625 = vmatprep.subr.bf16.mxu0 0
        %1626 = vmatpush1.bf16.msra.mxu0 %v1623
        %1627 = vmatprep.subr.bf16.mxu0 0
        %1628 = vmatpush1.bf16.msra.mxu0 0
        %1629 = vmatprep.subr.bf16.mxu0 0
        %1630 = vmatpush1.bf16.msra.mxu0 0
        %1631 = vmatprep.subr.bf16.mxu0 0
        %1632 = vmatpush1.bf16.msra.mxu0 0
        %1633 = vmatprep.subr.bf16.mxu0 0
        %1634 = vmatpush1.bf16.msra.mxu0 0
        %1635 = vmatprep.subr.bf16.mxu0 0
        %1636 = vmatpush1.bf16.msra.mxu0 0
        %1637 = vmatprep.subr.bf16.mxu0 0
        %1638 = vmatpush1.bf16.msra.mxu0 0
        %1639 = vmatprep.subr.bf16.mxu0 0
        %1640 = vmatpush1.bf16.msra.mxu0 0
        %1641 = vmatprep.subr.bf16.mxu0 0
        %1642 = vmatpush1.bf16.msra.mxu0 0
        %1643 = vmatprep.subr.bf16.mxu0 0
        %1644 = vmatpush1.bf16.msra.mxu0 0
        %1645 = vmatprep.subr.bf16.mxu0 0
        %1646 = vmatpush1.bf16.msra.mxu0 0
        %1647 = vmatprep.subr.bf16.mxu0 0
        %1648 = vmatpush1.bf16.msra.mxu0 0
        %1649 = vmatprep.subr.bf16.mxu0 0
        %1650 = vmatpush1.bf16.msra.mxu0 0
        %1651 = vmatprep.subr.bf16.mxu0 0
        %1652 = vmatpush1.bf16.msra.mxu0 0
        %1653 = vmatprep.subr.bf16.mxu0 0
        %1654 = vmatpush1.bf16.msra.mxu0 0
        %1655 = vmatprep.subr.bf16.mxu0 0
        %1656 = vmatpush1.bf16.msra.mxu0 0
        %1657 = vmatprep.mubr.bf16.mxu0 0
        %1658 = vmatmul.mubr.bf16.gmra.mrb[0].mxu0 %v1620
        %v1659 = vpop.f32.mrb[0].mxu0
        %v1660 = vadd.f32 0.0, %v1659
        %v1661 = vpop.f32.mrb[0].mxu0
        %v1662 = vpop.f32.mrb[0].mxu0
        %v1663 = vpop.f32.mrb[0].mxu0
        %1664 = vdwg.mxu0
        %v1665 = vpack.c.bf16 %v1660, %v1660
        %v1667 = vunpack.c.l.b16 %v1665
        %v1668 = vpack.c.b16 %v1667, %v1667
        %1669 = vrot.lane.b32.xlu0 %v1668, 8
        %v1670 = vpop.permute.xlu0 %1669
        %1672 = vst.msk [vmem:[#allocation2] sm:$0xf] %vm1023, %v1670
        %v1673 = vld [vmem:[%s764 + $0x8] sm:$0xf]
        %1674 = vrot.lane.b32.xlu0 %v1429, 112
        %v1675 = vpop.permute.xlu0 %1674
        %v1677 = vsel %vm790, %v1675, 0
        %v1680 = vsel %vm794, %v1673, 0
        %1682 = vmatprep.subr.bf16.mxu0 0
        %1683 = vmatpush1.bf16.msra.mxu0 %v1680
        %1684 = vmatprep.subr.bf16.mxu0 0
        %1685 = vmatpush1.bf16.msra.mxu0 0
        %1686 = vmatprep.subr.bf16.mxu0 0
        %1687 = vmatpush1.bf16.msra.mxu0 0
        %1688 = vmatprep.subr.bf16.mxu0 0
        %1689 = vmatpush1.bf16.msra.mxu0 0
        %1690 = vmatprep.subr.bf16.mxu0 0
        %1691 = vmatpush1.bf16.msra.mxu0 0
        %1692 = vmatprep.subr.bf16.mxu0 0
        %1693 = vmatpush1.bf16.msra.mxu0 0
        %1694 = vmatprep.subr.bf16.mxu0 0
        %1695 = vmatpush1.bf16.msra.mxu0 0
        %1696 = vmatprep.subr.bf16.mxu0 0
        %1697 = vmatpush1.bf16.msra.mxu0 0
        %1698 = vmatprep.subr.bf16.mxu0 0
        %1699 = vmatpush1.bf16.msra.mxu0 0
        %1700 = vmatprep.subr.bf16.mxu0 0
        %1701 = vmatpush1.bf16.msra.mxu0 0
        %1702 = vmatprep.subr.bf16.mxu0 0
        %1703 = vmatpush1.bf16.msra.mxu0 0
        %1704 = vmatprep.subr.bf16.mxu0 0
        %1705 = vmatpush1.bf16.msra.mxu0 0
        %1706 = vmatprep.subr.bf16.mxu0 0
        %1707 = vmatpush1.bf16.msra.mxu0 0
        %1708 = vmatprep.subr.bf16.mxu0 0
        %1709 = vmatpush1.bf16.msra.mxu0 0
        %1710 = vmatprep.subr.bf16.mxu0 0
        %1711 = vmatpush1.bf16.msra.mxu0 0
        %1712 = vmatprep.subr.bf16.mxu0 0
        %1713 = vmatpush1.bf16.msra.mxu0 0
        %1714 = vmatprep.mubr.bf16.mxu0 0
        %1715 = vmatmul.mubr.bf16.gmra.mrb[0].mxu0 %v1677
        %v1716 = vpop.f32.mrb[0].mxu0
        %v1717 = vadd.f32 %v1431, %v1716
        %v1718 = vpop.f32.mrb[0].mxu0
        %v1719 = vpop.f32.mrb[0].mxu0
        %v1720 = vpop.f32.mrb[0].mxu0
        %1721 = vdwg.mxu0
        %v1722 = vsel %vm1479, %v1717, -inf
        %1723 = vmax.xlane.f32.xlu0 %v1722
        %v1724 = vpop.xlane.xlu0 %1723
        %v1725 = vsub.f32 %v1717, %v1724
        %v1726 = vmul.f32 %v1725, 1.442695
        %v1727 = vpow.pop %v1726
        %v1728 = vsel %vm1479, %v1727, 0.0
        %1729 = vadd.xlane.f32.xlu0 %v1728
        %v1730 = vpop.xlane.xlu0 %1729
        %v1731 = vrcp.pop %v1730
        %v1732 = vmul.f32 %v1727, %v1731
        %v1733 = vpack.c.bf16 %v1732, %v1732
        %v1734 = vld [vmem:[%s769] sm:$0xf]
        %v1735 = vld [vmem:[%s769 + $0x4] sm:$0x1]
        %v1738 = vunpack.c.l.b16 %v1734
        %v1739 = vunpack.c.l.b16 %v1735
        %v1740 = vpack.c.b16 %v1739, %v1738
        %1741 = vrot.lane.b32.xlu0 %v1740, 112
        %v1742 = vpop.permute.xlu0 %1741
        %v1744 = vsel %vm1479, %v1733, 0
        %v1747 = vsel %vm1502, %v1742, 0
        %1749 = vmatprep.subr.bf16.mxu0 0
        %1750 = vmatpush1.bf16.msra.mxu0 %v1747
        %1751 = vmatprep.subr.bf16.mxu0 0
        %1752 = vmatpush1.bf16.msra.mxu0 0
        %1753 = vmatprep.subr.bf16.mxu0 0
        %1754 = vmatpush1.bf16.msra.mxu0 0
        %1755 = vmatprep.subr.bf16.mxu0 0
        %1756 = vmatpush1.bf16.msra.mxu0 0
        %1757 = vmatprep.subr.bf16.mxu0 0
        %1758 = vmatpush1.bf16.msra.mxu0 0
        %1759 = vmatprep.subr.bf16.mxu0 0
        %1760 = vmatpush1.bf16.msra.mxu0 0
        %1761 = vmatprep.subr.bf16.mxu0 0
        %1762 = vmatpush1.bf16.msra.mxu0 0
        %1763 = vmatprep.subr.bf16.mxu0 0
        %1764 = vmatpush1.bf16.msra.mxu0 0
        %1765 = vmatprep.subr.bf16.mxu0 0
        %1766 = vmatpush1.bf16.msra.mxu0 0
        %1767 = vmatprep.subr.bf16.mxu0 0
        %1768 = vmatpush1.bf16.msra.mxu0 0
        %1769 = vmatprep.subr.bf16.mxu0 0
        %1770 = vmatpush1.bf16.msra.mxu0 0
        %1771 = vmatprep.subr.bf16.mxu0 0
        %1772 = vmatpush1.bf16.msra.mxu0 0
        %1773 = vmatprep.subr.bf16.mxu0 0
        %1774 = vmatpush1.bf16.msra.mxu0 0
        %1775 = vmatprep.subr.bf16.mxu0 0
        %1776 = vmatpush1.bf16.msra.mxu0 0
        %1777 = vmatprep.subr.bf16.mxu0 0
        %1778 = vmatpush1.bf16.msra.mxu0 0
        %1779 = vmatprep.subr.bf16.mxu0 0
        %1780 = vmatpush1.bf16.msra.mxu0 0
        %1781 = vmatprep.mubr.bf16.mxu0 0
        %1782 = vmatmul.mubr.bf16.gmra.mrb[0].mxu0 %v1744
        %v1783 = vpop.f32.mrb[0].mxu0
        %v1784 = vadd.f32 0.0, %v1783
        %v1785 = vpop.f32.mrb[0].mxu0
        %v1786 = vpop.f32.mrb[0].mxu0
        %v1787 = vpop.f32.mrb[0].mxu0
        %1788 = vdwg.mxu0
        %v1789 = vpack.c.bf16 %v1784, %v1784
        %v1791 = vunpack.c.l.b16 %v1789
        %v1792 = vpack.c.b16 %v1791, %v1791
        %1793 = vrot.lane.b32.xlu0 %v1792, 16
        %v1794 = vpop.permute.xlu0 %1793
        %1796 = vst.msk [vmem:[#allocation2] sm:$0xf] %vm1145, %v1794
        %v1797 = vld [vmem:[%s764 + $0xc] sm:$0xf]
        %1798 = vrot.lane.b32.xlu0 %v1429, 104
        %v1799 = vpop.permute.xlu0 %1798
        %v1801 = vsel %vm790, %v1799, 0
        %v1804 = vsel %vm794, %v1797, 0
        %1806 = vmatprep.subr.bf16.mxu0 0
        %1807 = vmatpush1.bf16.msra.mxu0 %v1804
        %1808 = vmatprep.subr.bf16.mxu0 0
        %1809 = vmatpush1.bf16.msra.mxu0 0
        %1810 = vmatprep.subr.bf16.mxu0 0
        %1811 = vmatpush1.bf16.msra.mxu0 0
        %1812 = vmatprep.subr.bf16.mxu0 0
        %1813 = vmatpush1.bf16.msra.mxu0 0
        %1814 = vmatprep.subr.bf16.mxu0 0
        %1815 = vmatpush1.bf16.msra.mxu0 0
        %1816 = vmatprep.subr.bf16.mxu0 0
        %1817 = vmatpush1.bf16.msra.mxu0 0
        %1818 = vmatprep.subr.bf16.mxu0 0
        %1819 = vmatpush1.bf16.msra.mxu0 0
        %1820 = vmatprep.subr.bf16.mxu0 0
        %1821 = vmatpush1.bf16.msra.mxu0 0
        %1822 = vmatprep.subr.bf16.mxu0 0
        %1823 = vmatpush1.bf16.msra.mxu0 0
        %1824 = vmatprep.subr.bf16.mxu0 0
        %1825 = vmatpush1.bf16.msra.mxu0 0
        %1826 = vmatprep.subr.bf16.mxu0 0
        %1827 = vmatpush1.bf16.msra.mxu0 0
        %1828 = vmatprep.subr.bf16.mxu0 0
        %1829 = vmatpush1.bf16.msra.mxu0 0
        %1830 = vmatprep.subr.bf16.mxu0 0
        %1831 = vmatpush1.bf16.msra.mxu0 0
        %1832 = vmatprep.subr.bf16.mxu0 0
        %1833 = vmatpush1.bf16.msra.mxu0 0
        %1834 = vmatprep.subr.bf16.mxu0 0
        %1835 = vmatpush1.bf16.msra.mxu0 0
        %1836 = vmatprep.subr.bf16.mxu0 0
        %1837 = vmatpush1.bf16.msra.mxu0 0
        %1838 = vmatprep.mubr.bf16.mxu0 0
        %1839 = vmatmul.mubr.bf16.gmra.mrb[0].mxu0 %v1801
        %v1840 = vpop.f32.mrb[0].mxu0
        %v1841 = vadd.f32 %v1431, %v1840
        %v1842 = vpop.f32.mrb[0].mxu0
        %v1843 = vpop.f32.mrb[0].mxu0
        %v1844 = vpop.f32.mrb[0].mxu0
        %1845 = vdwg.mxu0
        %v1846 = vsel %vm1479, %v1841, -inf
        %1847 = vmax.xlane.f32.xlu0 %v1846
        %v1848 = vpop.xlane.xlu0 %1847
        %v1849 = vsub.f32 %v1841, %v1848
        %v1850 = vmul.f32 %v1849, 1.442695
        %v1851 = vpow.pop %v1850
        %v1852 = vsel %vm1479, %v1851, 0.0
        %1853 = vadd.xlane.f32.xlu0 %v1852
        %v1854 = vpop.xlane.xlu0 %1853
        %v1855 = vrcp.pop %v1854
        %v1856 = vmul.f32 %v1851, %v1855
        %v1857 = vpack.c.bf16 %v1856, %v1856
        %v1858 = vld [vmem:[%s769] sm:$0xf]
        %v1859 = vld [vmem:[%s769 + $0x4] sm:$0x1]
        %v1862 = vunpack.c.l.b16 %v1858
        %v1863 = vunpack.c.l.b16 %v1859
        %v1864 = vpack.c.b16 %v1863, %v1862
        %1865 = vrot.lane.b32.xlu0 %v1864, 104
        %v1866 = vpop.permute.xlu0 %1865
        %v1868 = vsel %vm1479, %v1857, 0
        %v1871 = vsel %vm1502, %v1866, 0
        %1873 = vmatprep.subr.bf16.mxu0 0
        %1874 = vmatpush1.bf16.msra.mxu0 %v1871
        %1875 = vmatprep.subr.bf16.mxu0 0
        %1876 = vmatpush1.bf16.msra.mxu0 0
        %1877 = vmatprep.subr.bf16.mxu0 0
        %1878 = vmatpush1.bf16.msra.mxu0 0
        %1879 = vmatprep.subr.bf16.mxu0 0
        %1880 = vmatpush1.bf16.msra.mxu0 0
        %1881 = vmatprep.subr.bf16.mxu0 0
        %1882 = vmatpush1.bf16.msra.mxu0 0
        %1883 = vmatprep.subr.bf16.mxu0 0
        %1884 = vmatpush1.bf16.msra.mxu0 0
        %1885 = vmatprep.subr.bf16.mxu0 0
        %1886 = vmatpush1.bf16.msra.mxu0 0
        %1887 = vmatprep.subr.bf16.mxu0 0
        %1888 = vmatpush1.bf16.msra.mxu0 0
        %1889 = vmatprep.subr.bf16.mxu0 0
        %1890 = vmatpush1.bf16.msra.mxu0 0
        %1891 = vmatprep.subr.bf16.mxu0 0
        %1892 = vmatpush1.bf16.msra.mxu0 0
        %1893 = vmatprep.subr.bf16.mxu0 0
        %1894 = vmatpush1.bf16.msra.mxu0 0
        %1895 = vmatprep.subr.bf16.mxu0 0
        %1896 = vmatpush1.bf16.msra.mxu0 0
        %1897 = vmatprep.subr.bf16.mxu0 0
        %1898 = vmatpush1.bf16.msra.mxu0 0
        %1899 = vmatprep.subr.bf16.mxu0 0
        %1900 = vmatpush1.bf16.msra.mxu0 0
        %1901 = vmatprep.subr.bf16.mxu0 0
        %1902 = vmatpush1.bf16.msra.mxu0 0
        %1903 = vmatprep.subr.bf16.mxu0 0
        %1904 = vmatpush1.bf16.msra.mxu0 0
        %1905 = vmatprep.mubr.bf16.mxu0 0
        %1906 = vmatmul.mubr.bf16.gmra.mrb[0].mxu0 %v1868
        %v1907 = vpop.f32.mrb[0].mxu0
        %v1908 = vadd.f32 0.0, %v1907
        %v1909 = vpop.f32.mrb[0].mxu0
        %v1910 = vpop.f32.mrb[0].mxu0
        %v1911 = vpop.f32.mrb[0].mxu0
        %1912 = vdwg.mxu0
        %v1913 = vpack.c.bf16 %v1908, %v1908
        %v1915 = vunpack.c.l.b16 %v1913
        %v1916 = vpack.c.b16 %v1915, %v1915
        %1917 = vrot.lane.b32.xlu0 %v1916, 24
        %v1918 = vpop.permute.xlu0 %1917
        %1920 = vst.msk [vmem:[#allocation2] sm:$0xf] %vm1267, %v1918
        %v1921 = vld [vmem:[#allocation2] sm:$0xf]
        %v1922 = vld [vmem:[%s12] sm:$0xf]
        %v1923 = vld [vmem:[%s12 + $0x4] sm:$0xf]
        %v1924 = vld [vmem:[%s12 + $0x8] sm:$0xf]
        %v1925 = vld [vmem:[%s12 + $0xc] sm:$0xf]
        %v1930 = vunpack.c.l.b16 %v1922
        %v1931 = vunpack.c.l.b16 %v1923
        %v1932 = vunpack.c.l.b16 %v1924
        %v1933 = vunpack.c.l.b16 %v1925
        %v1934 = vpack.c.b16 %v1931, %v1930
        %v1935 = vpack.c.b16 %v1933, %v1932
        %v1939 = vsel %vm1286, %v1921, 0
        %1941 = vmatprep.subr.bf16.mxu0 0
        %1942 = vmatpush1.bf16.msra.mxu0 %v1934
        %1943 = vmatprep.subr.bf16.mxu0 0
        %1944 = vmatpush1.bf16.msra.mxu0 %v1935
        %1945 = vmatprep.subr.bf16.mxu0 0
        %1946 = vmatpush1.bf16.msra.mxu0 0
        %1947 = vmatprep.subr.bf16.mxu0 0
        %1948 = vmatpush1.bf16.msra.mxu0 0
        %1949 = vmatprep.subr.bf16.mxu0 0
        %1950 = vmatpush1.bf16.msra.mxu0 0
        %1951 = vmatprep.subr.bf16.mxu0 0
        %1952 = vmatpush1.bf16.msra.mxu0 0
        %1953 = vmatprep.subr.bf16.mxu0 0
        %1954 = vmatpush1.bf16.msra.mxu0 0
        %1955 = vmatprep.subr.bf16.mxu0 0
        %1956 = vmatpush1.bf16.msra.mxu0 0
        %1957 = vmatprep.subr.bf16.mxu0 0
        %1958 = vmatpush1.bf16.msra.mxu0 0
        %1959 = vmatprep.subr.bf16.mxu0 0
        %1960 = vmatpush1.bf16.msra.mxu0 0
        %1961 = vmatprep.subr.bf16.mxu0 0
        %1962 = vmatpush1.bf16.msra.mxu0 0
        %1963 = vmatprep.subr.bf16.mxu0 0
        %1964 = vmatpush1.bf16.msra.mxu0 0
        %1965 = vmatprep.subr.bf16.mxu0 0
        %1966 = vmatpush1.bf16.msra.mxu0 0
        %1967 = vmatprep.subr.bf16.mxu0 0
        %1968 = vmatpush1.bf16.msra.mxu0 0
        %1969 = vmatprep.subr.bf16.mxu0 0
        %1970 = vmatpush1.bf16.msra.mxu0 0
        %1971 = vmatprep.subr.bf16.mxu0 0
        %1972 = vmatpush1.bf16.msra.mxu0 0
        %1973 = vmatprep.mubr.bf16.mxu0 0
        %1974 = vmatmul.mubr.bf16.gmra.mrb[0].mxu0 %v1939
        %v1975 = vpop.f32.mrb[0].mxu0
        %v1976 = vadd.f32 0.0, %v1975
        %v1977 = vpop.f32.mrb[0].mxu0
        %v1978 = vpop.f32.mrb[0].mxu0
        %v1979 = vpop.f32.mrb[0].mxu0
        %1980 = vdwg.mxu0
        %v1981 = vadd.f32 %v1330, %v1976
        %v1982 = vld [vmem:[%s13] sm:$0x1]
        %v1983 = vld [vmem:[%s14] sm:$0x1]
        %v1984 = vsel %vm1286, %v1981, 0.0
        %1985 = vadd.xlane.f32.xlu0 %v1984
        %v1986 = vpop.xlane.xlu0 %1985
        %v1987 = vmul.f32 %v1986, %v1336
        %v1988 = vsub.f32 %v1981, %v1987
        %v1989 = vmul.f32 %v1988, %v1988
        %v1990 = vsel %vm1286, %v1989, 0.0
        %1991 = vadd.xlane.f32.xlu0 %v1990
        %v1992 = vpop.xlane.xlu0 %1991
        %v1993 = vmul.f32 %v1992, 0.032258064
        %v1994 = vrsqrt.pop %v1993
        %v1995 = vmul.f32 %v1993, %v1994
        %vm1996 = vcmp.eq.f32.partialorder %v1993, inf
        %v1997 = vsel %vm1996, %v1993, %v1995
        %vm1998 = vcmp.eq.f32.partialorder %v1993, 0.0
        %v1999 = vand.u32 %v1993, 2147483648
        %v2000 = vsel %vm1998, %v1999, %v1997
        %v2001 = vadd.f32 %v2000, 1e-06
        %v2002 = vrcp.pop %v2001
        %v2003 = vmul.f32 %v1988, %v2002
        %v2005 = vlaneseq
        %v2006 = vshrl.u32 %v2005, 7
        %v2007 = vsub.s32 0, %v2006
        %v2008 = vrot.slane %v1982, %v2007
        %v2010 = vmul.f32 %v2008, %v2003
        %v2012 = vlaneseq
        %v2013 = vshrl.u32 %v2012, 7
        %v2014 = vsub.s32 0, %v2013
        %v2015 = vrot.slane %v1983, %v2014
        %v2017 = vadd.f32 %v2010, %v2015
        %v2018 = vpack.c.bf16 %v2017, %v2017
        %v2019 = vld [vmem:[%s15] sm:$0xf]
        %v2020 = vld [vmem:[%s15 + $0x4] sm:$0xf]
        %v2021 = vld [vmem:[%s15 + $0x8] sm:$0xf]
        %v2022 = vld [vmem:[%s15 + $0xc] sm:$0xf]
        %v2023 = vld [vmem:[%s16] sm:$0x1]
        %v2025 = vlaneseq
        %v2026 = vshrl.u32 %v2025, 7
        %v2027 = vsub.s32 0, %v2026
        %v2028 = vrot.slane %v2023, %v2027
        %v2034 = vunpack.c.l.b16 %v2019
        %v2035 = vunpack.c.l.b16 %v2020
        %v2036 = vunpack.c.l.b16 %v2021
        %v2037 = vunpack.c.l.b16 %v2022
        %v2038 = vpack.c.b16 %v2035, %v2034
        %v2039 = vpack.c.b16 %v2037, %v2036
        %v2043 = vsel %vm1286, %v2018, 0
        %2045 = vmatprep.subr.bf16.mxu0 0
        %2046 = vmatpush1.bf16.msra.mxu0 %v2038
        %2047 = vmatprep.subr.bf16.mxu0 0
        %2048 = vmatpush1.bf16.msra.mxu0 %v2039
        %2049 = vmatprep.subr.bf16.mxu0 0
        %2050 = vmatpush1.bf16.msra.mxu0 0
        %2051 = vmatprep.subr.bf16.mxu0 0
        %2052 = vmatpush1.bf16.msra.mxu0 0
        %2053 = vmatprep.subr.bf16.mxu0 0
        %2054 = vmatpush1.bf16.msra.mxu0 0
        %2055 = vmatprep.subr.bf16.mxu0 0
        %2056 = vmatpush1.bf16.msra.mxu0 0
        %2057 = vmatprep.subr.bf16.mxu0 0
        %2058 = vmatpush1.bf16.msra.mxu0 0
        %2059 = vmatprep.subr.bf16.mxu0 0
        %2060 = vmatpush1.bf16.msra.mxu0 0
        %2061 = vmatprep.subr.bf16.mxu0 0
        %2062 = vmatpush1.bf16.msra.mxu0 0
        %2063 = vmatprep.subr.bf16.mxu0 0
        %2064 = vmatpush1.bf16.msra.mxu0 0
        %2065 = vmatprep.subr.bf16.mxu0 0
        %2066 = vmatpush1.bf16.msra.mxu0 0
        %2067 = vmatprep.subr.bf16.mxu0 0
        %2068 = vmatpush1.bf16.msra.mxu0 0
        %2069 = vmatprep.subr.bf16.mxu0 0
        %2070 = vmatpush1.bf16.msra.mxu0 0
        %2071 = vmatprep.subr.bf16.mxu0 0
        %2072 = vmatpush1.bf16.msra.mxu0 0
        %2073 = vmatprep.subr.bf16.mxu0 0
        %2074 = vmatpush1.bf16.msra.mxu0 0
        %2075 = vmatprep.subr.bf16.mxu0 0
        %2076 = vmatpush1.bf16.msra.mxu0 0
        %2077 = vmatprep.mubr.bf16.mxu0 0
        %2078 = vmatmul.mubr.bf16.gmra.mrb[0].mxu0 %v2043
        %v2079 = vpop.f32.mrb[0].mxu0
        %v2080 = vadd.f32 %v2028, %v2079
        %v2081 = vpop.f32.mrb[0].mxu0
        %v2082 = vpop.f32.mrb[0].mxu0
        %v2083 = vpop.f32.mrb[0].mxu0
        %2084 = vdwg.mxu0
        %v2085 = vmax.f32 %v2080, 0.0
        %v2086 = vpack.c.bf16 %v2085, %v2085
        %v2087 = vld [vmem:[%s17] sm:$0xf]
        %v2088 = vld [vmem:[%s17 + $0x4] sm:$0xf]
        %v2089 = vld [vmem:[%s17 + $0x8] sm:$0xf]
        %v2090 = vld [vmem:[%s17 + $0xc] sm:$0xf]
        %v2091 = vld [vmem:[%s17 + $0x10] sm:$0xf]
        %v2092 = vld [vmem:[%s17 + $0x14] sm:$0xf]
        %v2093 = vld [vmem:[%s17 + $0x18] sm:$0xf]
        %v2094 = vld [vmem:[%s17 + $0x1c] sm:$0xf]
        %v2095 = vld [vmem:[%s18] sm:$0x1]
        %v2097 = vlaneseq
        %v2098 = vshrl.u32 %v2097, 7
        %v2099 = vsub.s32 0, %v2098
        %v2100 = vrot.slane %v2095, %v2099
        %v2110 = vunpack.c.l.b16 %v2087
        %v2111 = vunpack.c.l.b16 %v2088
        %v2112 = vunpack.c.l.b16 %v2089
        %v2113 = vunpack.c.l.b16 %v2090
        %v2114 = vunpack.c.l.b16 %v2091
        %v2115 = vunpack.c.l.b16 %v2092
        %v2116 = vunpack.c.l.b16 %v2093
        %v2117 = vunpack.c.l.b16 %v2094
        %v2118 = vpack.c.b16 %v2111, %v2110
        %v2119 = vpack.c.b16 %v2113, %v2112
        %v2120 = vpack.c.b16 %v2115, %v2114
        %v2121 = vpack.c.b16 %v2117, %v2116
        %vm2126 = vcmask 523264
        %v2128 = vsel %vm2126, %v2086, 0
        %2130 = vmatprep.subr.bf16.mxu0 0
        %2131 = vmatpush1.bf16.msra.mxu0 %v2118
        %2132 = vmatprep.subr.bf16.mxu0 0
        %2133 = vmatpush1.bf16.msra.mxu0 %v2119
        %2134 = vmatprep.subr.bf16.mxu0 0
        %2135 = vmatpush1.bf16.msra.mxu0 %v2120
        %2136 = vmatprep.subr.bf16.mxu0 0
        %2137 = vmatpush1.bf16.msra.mxu0 %v2121
        %2138 = vmatprep.subr.bf16.mxu0 0
        %2139 = vmatpush1.bf16.msra.mxu0 0
        %2140 = vmatprep.subr.bf16.mxu0 0
        %2141 = vmatpush1.bf16.msra.mxu0 0
        %2142 = vmatprep.subr.bf16.mxu0 0
        %2143 = vmatpush1.bf16.msra.mxu0 0
        %2144 = vmatprep.subr.bf16.mxu0 0
        %2145 = vmatpush1.bf16.msra.mxu0 0
        %2146 = vmatprep.subr.bf16.mxu0 0
        %2147 = vmatpush1.bf16.msra.mxu0 0
        %2148 = vmatprep.subr.bf16.mxu0 0
        %2149 = vmatpush1.bf16.msra.mxu0 0
        %2150 = vmatprep.subr.bf16.mxu0 0
        %2151 = vmatpush1.bf16.msra.mxu0 0
        %2152 = vmatprep.subr.bf16.mxu0 0
        %2153 = vmatpush1.bf16.msra.mxu0 0
        %2154 = vmatprep.subr.bf16.mxu0 0
        %2155 = vmatpush1.bf16.msra.mxu0 0
        %2156 = vmatprep.subr.bf16.mxu0 0
        %2157 = vmatpush1.bf16.msra.mxu0 0
        %2158 = vmatprep.subr.bf16.mxu0 0
        %2159 = vmatpush1.bf16.msra.mxu0 0
        %2160 = vmatprep.subr.bf16.mxu0 0
        %2161 = vmatpush1.bf16.msra.mxu0 0
        %2162 = vmatprep.mubr.bf16.mxu0 0
        %2163 = vmatmul.mubr.bf16.gmra.mrb[0].mxu0 %v2128
        %v2164 = vpop.f32.mrb[0].mxu0
        %v2165 = vadd.f32 %v2100, %v2164
        %v2166 = vpop.f32.mrb[0].mxu0
        %v2167 = vpop.f32.mrb[0].mxu0
        %v2168 = vpop.f32.mrb[0].mxu0
        %2169 = vdwg.mxu0
        %v2170 = vadd.f32 %v1981, %v2165
        %2171 = vst.msk [vmem:[%s736] sm:$0xff] %vm1286, %v2170
        %s2172 = sand.u32 %s502, 1
        %s2173 = scalar_lea.sflag [#allocation4], %s2172
        %s2174 = sand.u32 %s502, 1
        %s2175 = smul.addr %s2174, 8
        %s2176 = scalar_lea.vmem [#allocation3], %s2175
        // Predicated region
        $region97: #{tpu_custom_call.1} parent=95 // pred_check
          %p2177 = pneg %p512
        $region98: #{tpu_custom_call.1} parent=95 // pred_check_branch
          %2179 = sbr.rel (%p2177) target = $region100
        $region99: #{tpu_custom_call.1} parent=95 // pred_region
          %s2181 = ssub.s32 128, 128
          %2182 = vsyncadd %s2173, %s2181
          %s2183 = sadd.s32 %s38, %s37
          %s2184 = smul.addr %s2183, 128
          %s2185 = scalar_lea.hbm %s19, %s2184
          %s2187 = sshll.u32 %s2176, 4
          %s2188 = int_to_ptr.vmem [resolvable:$true] %s2187
          %2190 = dma.vmem_to_hbm [thread:$0]  %s2188, 128, %s2185, %s2173
        $region100: #{tpu_custom_call.1} parent=95 // pred_fallthru
          _
      $region96: #{tpu_custom_call.1} parent=5 // pred_fallthru
        _
      %p2191 = scmp.le.s32.totalorder 2, %s28
      // Predicated region
      $region101: #{tpu_custom_call.1} parent=5 // pred_check
        %p2192 = pneg %p2191
      $region102: #{tpu_custom_call.1} parent=5 // pred_check_branch
        %2194 = sbr.rel (%p2192) target = $region104
      $region103: #{tpu_custom_call.1} parent=5 // pred_region
        %s2195 = ssub.s32 %s28, 2
        // Predicated region
        $region105: #{tpu_custom_call.1} parent=103 // pred_check
          %p2196 = pneg %p518
        $region106: #{tpu_custom_call.1} parent=103 // pred_check_branch
          %2198 = sbr.rel (%p2196) target = $region108
        $region107: #{tpu_custom_call.1} parent=103 // pred_region
          %s2199 = sand.u32 %s503, 1
          %s2200 = scalar_lea.sflag [#allocation4], %s2199
          %s2201 = sand.u32 %s503, 1
          %s2202 = smul.addr %s2201, 8
          %s2203 = scalar_lea.vmem [#allocation3], %s2202
          %2204 = dma.done %s2200, 128
        $region108: #{tpu_custom_call.1} parent=103 // pred_fallthru
          _
      $region104: #{tpu_custom_call.1} parent=5 // pred_fallthru
        _
    $region6: #{tpu_custom_call.1} parent=1 // loop_footer
      %s32 = sadd.s32 1, %s28
    $region7: #{tpu_custom_call.1} parent=1 // loop_footer_branch
      %27 = sbr.rel target = $region3
    $region8: #{tpu_custom_call.1} parent=1 // loop_exit
      _
    %2205 = vsyncpa [#allocation4], 1
    %s2206 = scalar_lea.sflag [#allocation4], 1
    %2207 = vsyncpa %s2206, 1

// kernel: tpu_custom_call.1
$region0: #{tpu_custom_call.1}
  #allocation0 [shape = 'u32[]', space=smem, size = 0x4, offset = 0x4, fixed_abs, tag = 'smem constant byte address 0x4 - core index']
  #allocation1 [shape = 'u32[144,128]{1,0:T(1,128)}', space=vmem, size = 0x12000, scoped, tag = 'internal scratch']
  #allocation2 [shape = 'bf16[8,32]{1,0:T(8,128)(2,1)}', space=vmem, size = 0x800, scoped, tag = 'scratch operand']
  %s0 = inlined_call_operand.vmem [shape: f32[2,8,32], index: 0, kind: input, shape index: {}]
  %s1 = inlined_call_operand.vmem [shape: bf16[2,8,32], index: 1, kind: input, shape index: {}]
  %s2 = inlined_call_operand.vmem [shape: bf16[2,32,8], index: 2, kind: input, shape index: {}]
  %s3 = inlined_call_operand.vmem [shape: bf16[2,8,32], index: 3, kind: input, shape index: {}]
  %s4 = inlined_call_operand.vmem [shape: bf16[2,32,10], index: 4, kind: input, shape index: {}]
  %s5 = inlined_call_operand.vmem [shape: bf16[2,10,32], index: 5, kind: input, shape index: {}]
  %s6 = inlined_call_operand.vmem [shape: bf16[2,8,8], index: 6, kind: input, shape index: {}]
  %s7 = inlined_call_operand.vmem [shape: bf16[2,8,10], index: 7, kind: input, shape index: {}]
  %s8 = inlined_call_operand.vmem [shape: bf16[32,32], index: 8, kind: input, shape index: {}]
  %s9 = inlined_call_operand.vmem [shape: f32[1,32], index: 9, kind: input, shape index: {}]
  %s10 = inlined_call_operand.vmem [shape: f32[1,32], index: 10, kind: input, shape index: {}]
  %s11 = inlined_call_operand.vmem [shape: bf16[32,32], index: 11, kind: input, shape index: {}]
  %s12 = inlined_call_operand.vmem [shape: bf16[32,32], index: 12, kind: input, shape index: {}]
  %s13 = inlined_call_operand.vmem [shape: f32[1,32], index: 13, kind: input, shape index: {}]
  %s14 = inlined_call_operand.vmem [shape: f32[1,32], index: 14, kind: input, shape index: {}]
  %s15 = inlined_call_operand.vmem [shape: bf16[32,64], index: 15, kind: input, shape index: {}]
  %s16 = inlined_call_operand.vmem [shape: f32[1,64], index: 16, kind: input, shape index: {}]
  %s17 = inlined_call_operand.vmem [shape: bf16[64,32], index: 17, kind: input, shape index: {}]
  %s18 = inlined_call_operand.vmem [shape: f32[1,32], index: 18, kind: input, shape index: {}]
  %s19 = inlined_call_operand.hbm [shape: f32[2,8,32], index: 19, kind: output, shape index: {}]
  %s20 = sld [smem:[#allocation0]]
  $region109: #{tpu_custom_call.1} parent=0
    _
  %s22 = ssub.s32 1, %s20
  %s23 = scalar_select 0, %s22, %s20
  $region1: #{tpu_custom_call.1} parent=0
    #allocation3 [shape = 'u8[8192]{0}', space=vmem, size = 0x2000, scoped, tag = 'output window, operand 0']
    #allocation4 [shape = 's32[2]{0}', space=sflag, size = 0x8, scoped, tag = 'scoped memory for tpu_custom_call.1']
    %24 = vsyncpa [#allocation4], 0
    %s25 = scalar_lea.sflag [#allocation4], 1
    %26 = vsyncpa %s25, 0
    loop: start=0, step=1, limit=4
    $region2: #{tpu_custom_call.1} parent=1 // loop_pre_header
      _
    $region3: #{tpu_custom_call.1} parent=1 // loop_header
      %s28 = sphi 0, %s32
      %p29 = scmp.ge.s32.totalorder %s28, 4
      %s35 = sphi 0, %s47
      %s36 = sphi 0, %s43
      %s37 = sphi 0, %s35
      %s38 = sphi 0, %s36
      %s39 = sphi 0, %s37
      %s40 = sphi 0, %s38
      %s52 = sphi 0, %s54
      %s55 = sphi 0, %s52
      %s56 = sphi 0, %s55
      %s72 = sphi 0, %s56
      %s80 = sphi 0, %s82
      %s83 = sphi 0, %s80
      %s84 = sphi 0, %s83
      %s100 = sphi 0, %s84
      %s106 = sphi 0, %s108
      %s109 = sphi 0, %s106
      %s110 = sphi 0, %s109
      %s126 = sphi 0, %s110
      %s132 = sphi 0, %s134
      %s135 = sphi 0, %s132
      %s136 = sphi 0, %s135
      %s152 = sphi 0, %s136
      %s158 = sphi 0, %s160
      %s161 = sphi 0, %s158
      %s162 = sphi 0, %s161
      %s178 = sphi 0, %s162
      %s184 = sphi 0, %s186
      %s187 = sphi 0, %s184
      %s188 = sphi 0, %s187
      %s204 = sphi 0, %s188
      %s212 = sphi 0, %s214
      %s215 = sphi 0, %s212
      %s216 = sphi 0, %s215
      %s232 = sphi 0, %s216
      %s240 = sphi 0, %s242
      %s243 = sphi 0, %s240
      %s244 = sphi 0, %s243
      %s260 = sphi 0, %s244
      %s264 = sphi 0, %s264
      %s266 = sphi 0, %s264
      %s267 = sphi 0, %s266
      %s281 = sphi 0, %s267
      %s285 = sphi 0, %s285
      %s287 = sphi 0, %s285
      %s288 = sphi 0, %s287
      %s302 = sphi 0, %s288
      %s306 = sphi 0, %s306
      %s308 = sphi 0, %s306
      %s309 = sphi 0, %s308
      %s323 = sphi 0, %s309
      %s327 = sphi 0, %s327
      %s329 = sphi 0, %s327
      %s330 = sphi 0, %s329
      %s344 = sphi 0, %s330
      %s348 = sphi 0, %s348
      %s350 = sphi 0, %s348
      %s351 = sphi 0, %s350
      %s365 = sphi 0, %s351
      %s369 = sphi 0, %s369
      %s371 = sphi 0, %s369
      %s372 = sphi 0, %s371
      %s386 = sphi 0, %s372
      %s390 = sphi 0, %s390
      %s392 = sphi 0, %s390
      %s393 = sphi 0, %s392
      %s407 = sphi 0, %s393
      %s411 = sphi 0, %s411
      %s413 = sphi 0, %s411
      %s414 = sphi 0, %s413
      %s428 = sphi 0, %s414
      %s432 = sphi 0, %s432
      %s434 = sphi 0, %s432
      %s435 = sphi 0, %s434
      %s449 = sphi 0, %s435
      %s453 = sphi 0, %s453
      %s455 = sphi 0, %s453
      %s456 = sphi 0, %s455
      %s470 = sphi 0, %s456
      %s474 = sphi 0, %s474
      %s476 = sphi 0, %s474
      %s477 = sphi 0, %s476
      %s491 = sphi 0, %s477
      %s499 = sphi 0, %s501
      %s502 = sphi 0, %s499
      %s503 = sphi 0, %s502
      %s519 = sphi 0, %s503
    $region4: #{tpu_custom_call.1} parent=1 // loop_header_branch
      %31 = sbr.rel (%p29) target = $region8
    $region5: #{tpu_custom_call.1} parent=1 // loop_body
      %s33 = ssub.s32 %s28, 1
      %s34 = ssub.s32 %s28, 2
      %s41 = sadd.s32 1, %s36
      %p42 = scmp.ge.s32.totalorder %s41, 1
      %s43 = scalar_select %p42, 0, %s41
      %s44 = sadd.s32 1, %s35
      %s45 = scalar_select %p42, %s44, %s35
      %p46 = scmp.ge.s32.totalorder %s45, 2
      %s47 = scalar_select %p46, 0, %s45
      %s48 = ssub.s32 %s35, %s47
      %s49 = ssub.s32 %s36, %s43
      %s50 = sor.u32 %s48, %s49
      %p51 = scmp.eq.s32.totalorder %s50, 0
      %s53 = sadd.s32 %s52, 1
      %s54 = scalar_select %p51, %s52, %s53
      %p57 = pneg %p51
      %p58 = scmp.eq.s32.totalorder %s28, 1
      %p59 = por %p57, %p58
      %p60 = scmp.ne.s32.totalorder %s52, %s55
      %p61 = scmp.eq.s32.totalorder %s28, 0
      %p62 = por %p60, %p61
      %p63 = scmp.ne.s32.totalorder %s52, %s55
      %p64 = scmp.eq.s32.totalorder %s33, 1
      %p65 = por %p63, %p64
      %p66 = scmp.ne.s32.totalorder %s55, %s56
      %p67 = scmp.eq.s32.totalorder %s33, 0
      %p68 = por %p66, %p67
      %p69 = scmp.ne.s32.totalorder %s55, %s56
      %p70 = scmp.eq.s32.totalorder %s34, 1
      %p71 = por %p69, %p70
      %p73 = scmp.ne.s32.totalorder %s56, %s72
      %p74 = scmp.eq.s32.totalorder %s34, 0
      %p75 = por %p73, %p74
      %s76 = ssub.s32 %s35, %s47
      %s77 = ssub.s32 %s36, %s43
      %s78 = sor.u32 %s76, %s77
      %p79 = scmp.eq.s32.totalorder %s78, 0
      %s81 = sadd.s32 %s80, 1
      %s82 = scalar_select %p79, %s80, %s81
      %p85 = pneg %p79
      %p86 = scmp.eq.s32.totalorder %s28, 1
      %p87 = por %p85, %p86
      %p88 = scmp.ne.s32.totalorder %s80, %s83
      %p89 = scmp.eq.s32.totalorder %s28, 0
      %p90 = por %p88, %p89
      %p91 = scmp.ne.s32.totalorder %s80, %s83
      %p92 = scmp.eq.s32.totalorder %s33, 1
      %p93 = por %p91, %p92
      %p94 = scmp.ne.s32.totalorder %s83, %s84
      %p95 = scmp.eq.s32.totalorder %s33, 0
      %p96 = por %p94, %p95
      %p97 = scmp.ne.s32.totalorder %s83, %s84
      %p98 = scmp.eq.s32.totalorder %s34, 1
      %p99 = por %p97, %p98
      %p101 = scmp.ne.s32.totalorder %s84, %s100
      %p102 = scmp.eq.s32.totalorder %s34, 0
      %p103 = por %p101, %p102
      %s104 = ssub.s32 %s35, %s47
      %p105 = scmp.eq.s32.totalorder %s104, 0
      %s107 = sadd.s32 %s106, 1
      %s108 = scalar_select %p105, %s106, %s107
      %p111 = pneg %p105
      %p112 = scmp.eq.s32.totalorder %s28, 1
      %p113 = por %p111, %p112
      %p114 = scmp.ne.s32.totalorder %s106, %s109
      %p115 = scmp.eq.s32.totalorder %s28, 0
      %p116 = por %p114, %p115
      %p117 = scmp.ne.s32.totalorder %s106, %s109
      %p118 = scmp.eq.s32.totalorder %s33, 1
      %p119 = por %p117, %p118
      %p120 = scmp.ne.s32.totalorder %s109, %s110
      %p121 = scmp.eq.s32.totalorder %s33, 0
      %p122 = por %p120, %p121
      %p123 = scmp.ne.s32.totalorder %s109, %s110
      %p124 = scmp.eq.s32.totalorder %s34, 1
      %p125 = por %p123, %p124
      %p127 = scmp.ne.s32.totalorder %s110, %s126
      %p128 = scmp.eq.s32.totalorder %s34, 0
      %p129 = por %p127, %p128
      %s130 = ssub.s32 %s35, %s47
      %p131 = scmp.eq.s32.totalorder %s130, 0
      %s133 = sadd.s32 %s132, 1
      %s134 = scalar_select %p131, %s132, %s133
      %p137 = pneg %p131
      %p138 = scmp.eq.s32.totalorder %s28, 1
      %p139 = por %p137, %p138
      %p140 = scmp.ne.s32.totalorder %s132, %s135
      %p141 = scmp.eq.s32.totalorder %s28, 0
      %p142 = por %p140, %p141
      %p143 = scmp.ne.s32.totalorder %s132, %s135
      %p144 = scmp.eq.s32.totalorder %s33, 1
      %p145 = por %p143, %p144
      %p146 = scmp.ne.s32.totalorder %s135, %s136
      %p147 = scmp.eq.s32.totalorder %s33, 0
      %p148 = por %p146, %p147
      %p149 = scmp.ne.s32.totalorder %s135, %s136
      %p150 = scmp.eq.s32.totalorder %s34, 1
      %p151 = por %p149, %p150
      %p153 = scmp.ne.s32.totalorder %s136, %s152
      %p154 = scmp.eq.s32.totalorder %s34, 0
      %p155 = por %p153, %p154
      %s156 = ssub.s32 %s35, %s47
      %p157 = scmp.eq.s32.totalorder %s156, 0
      %s159 = sadd.s32 %s158, 1
      %s160 = scalar_select %p157, %s158, %s159
      %p163 = pneg %p157
      %p164 = scmp.eq.s32.totalorder %s28, 1
      %p165 = por %p163, %p164
      %p166 = scmp.ne.s32.totalorder %s158, %s161
      %p167 = scmp.eq.s32.totalorder %s28, 0
      %p168 = por %p166, %p167
      %p169 = scmp.ne.s32.totalorder %s158, %s161
      %p170 = scmp.eq.s32.totalorder %s33, 1
      %p171 = por %p169, %p170
      %p172 = scmp.ne.s32.totalorder %s161, %s162
      %p173 = scmp.eq.s32.totalorder %s33, 0
      %p174 = por %p172, %p173
      %p175 = scmp.ne.s32.totalorder %s161, %s162
      %p176 = scmp.eq.s32.totalorder %s34, 1
      %p177 = por %p175, %p176
      %p179 = scmp.ne.s32.totalorder %s162, %s178
      %p180 = scmp.eq.s32.totalorder %s34, 0
      %p181 = por %p179, %p180
      %s182 = ssub.s32 %s35, %s47
      %p183 = scmp.eq.s32.totalorder %s182, 0
      %s185 = sadd.s32 %s184, 1
      %s186 = scalar_select %p183, %s184, %s185
      %p189 = pneg %p183
      %p190 = scmp.eq.s32.totalorder %s28, 1
      %p191 = por %p189, %p190
      %p192 = scmp.ne.s32.totalorder %s184, %s187
      %p193 = scmp.eq.s32.totalorder %s28, 0
      %p194 = por %p192, %p193
      %p195 = scmp.ne.s32.totalorder %s184, %s187
      %p196 = scmp.eq.s32.totalorder %s33, 1
      %p197 = por %p195, %p196
      %p198 = scmp.ne.s32.totalorder %s187, %s188
      %p199 = scmp.eq.s32.totalorder %s33, 0
      %p200 = por %p198, %p199
      %p201 = scmp.ne.s32.totalorder %s187, %s188
      %p202 = scmp.eq.s32.totalorder %s34, 1
      %p203 = por %p201, %p202
      %p205 = scmp.ne.s32.totalorder %s188, %s204
      %p206 = scmp.eq.s32.totalorder %s34, 0
      %p207 = por %p205, %p206
      %s208 = ssub.s32 %s35, %s47
      %s209 = ssub.s32 %s36, %s43
      %s210 = sor.u32 %s208, %s209
      %p211 = scmp.eq.s32.totalorder %s210, 0
      %s213 = sadd.s32 %s212, 1
      %s214 = scalar_select %p211, %s212, %s213
      %p217 = pneg %p211
      %p218 = scmp.eq.s32.totalorder %s28, 1
      %p219 = por %p217, %p218
      %p220 = scmp.ne.s32.totalorder %s212, %s215
      %p221 = scmp.eq.s32.totalorder %s28, 0
      %p222 = por %p220, %p221
      %p223 = scmp.ne.s32.totalorder %s212, %s215
      %p224 = scmp.eq.s32.totalorder %s33, 1
      %p225 = por %p223, %p224
      %p226 = scmp.ne.s32.totalorder %s215, %s216
      %p227 = scmp.eq.s32.totalorder %s33, 0
      %p228 = por %p226, %p227
      %p229 = scmp.ne.s32.totalorder %s215, %s216
      %p230 = scmp.eq.s32.totalorder %s34, 1
      %p231 = por %p229, %p230
      %p233 = scmp.ne.s32.totalorder %s216, %s232
      %p234 = scmp.eq.s32.totalorder %s34, 0
      %p235 = por %p233, %p234
      %s236 = ssub.s32 %s35, %s47
      %s237 = ssub.s32 %s36, %s43
      %s238 = sor.u32 %s236, %s237
      %p239 = scmp.eq.s32.totalorder %s238, 0
      %s241 = sadd.s32 %s240, 1
      %s242 = scalar_select %p239, %s240, %s241
      %p245 = pneg %p239
      %p246 = scmp.eq.s32.totalorder %s28, 1
      %p247 = por %p245, %p246
      %p248 = scmp.ne.s32.totalorder %s240, %s243
      %p249 = scmp.eq.s32.totalorder %s28, 0
      %p250 = por %p248, %p249
      %p251 = scmp.ne.s32.totalorder %s240, %s243
      %p252 = scmp.eq.s32.totalorder %s33, 1
      %p253 = por %p251, %p252
      %p254 = scmp.ne.s32.totalorder %s243, %s244
      %p255 = scmp.eq.s32.totalorder %s33, 0
      %p256 = por %p254, %p255
      %p257 = scmp.ne.s32.totalorder %s243, %s244
      %p258 = scmp.eq.s32.totalorder %s34, 1
      %p259 = por %p257, %p258
      %p261 = scmp.ne.s32.totalorder %s244, %s260
      %p262 = scmp.eq.s32.totalorder %s34, 0
      %p263 = por %p261, %p262
      %s265 = sadd.s32 %s264, 1
      %p268 = scmp.eq.s32.totalorder %s28, 1
      %p269 = scmp.ne.s32.totalorder %s264, %s266
      %p270 = scmp.eq.s32.totalorder %s28, 0
      %p271 = por %p269, %p270
      %p272 = scmp.ne.s32.totalorder %s264, %s266
      %p273 = scmp.eq.s32.totalorder %s33, 1
      %p274 = por %p272, %p273
      %p275 = scmp.ne.s32.totalorder %s266, %s267
      %p276 = scmp.eq.s32.totalorder %s33, 0
      %p277 = por %p275, %p276
      %p278 = scmp.ne.s32.totalorder %s266, %s267
      %p279 = scmp.eq.s32.totalorder %s34, 1
      %p280 = por %p278, %p279
      %p282 = scmp.ne.s32.totalorder %s267, %s281
      %p283 = scmp.eq.s32.totalorder %s34, 0
      %p284 = por %p282, %p283
      %s286 = sadd.s32 %s285, 1
      %p289 = scmp.eq.s32.totalorder %s28, 1
      %p290 = scmp.ne.s32.totalorder %s285, %s287
      %p291 = scmp.eq.s32.totalorder %s28, 0
      %p292 = por %p290, %p291
      %p293 = scmp.ne.s32.totalorder %s285, %s287
      %p294 = scmp.eq.s32.totalorder %s33, 1
      %p295 = por %p293, %p294
      %p296 = scmp.ne.s32.totalorder %s287, %s288
      %p297 = scmp.eq.s32.totalorder %s33, 0
      %p298 = por %p296, %p297
      %p299 = scmp.ne.s32.totalorder %s287, %s288
      %p300 = scmp.eq.s32.totalorder %s34, 1
      %p301 = por %p299, %p300
      %p303 = scmp.ne.s32.totalorder %s288, %s302
      %p304 = scmp.eq.s32.totalorder %s34, 0
      %p305 = por %p303, %p304
      %s307 = sadd.s32 %s306, 1
      %p310 = scmp.eq.s32.totalorder %s28, 1
      %p311 = scmp.ne.s32.totalorder %s306, %s308
      %p312 = scmp.eq.s32.totalorder %s28, 0
      %p313 = por %p311, %p312
      %p314 = scmp.ne.s32.totalorder %s306, %s308
      %p315 = scmp.eq.s32.totalorder %s33, 1
      %p316 = por %p314, %p315
      %p317 = scmp.ne.s32.totalorder %s308, %s309
      %p318 = scmp.eq.s32.totalorder %s33, 0
      %p319 = por %p317, %p318
      %p320 = scmp.ne.s32.totalorder %s308, %s309
      %p321 = scmp.eq.s32.totalorder %s34, 1
      %p322 = por %p320, %p321
      %p324 = scmp.ne.s32.totalorder %s309, %s323
      %p325 = scmp.eq.s32.totalorder %s34, 0
      %p326 = por %p324, %p325
      %s328 = sadd.s32 %s327, 1
      %p331 = scmp.eq.s32.totalorder %s28, 1
      %p332 = scmp.ne.s32.totalorder %s327, %s329
      %p333 = scmp.eq.s32.totalorder %s28, 0
      %p334 = por %p332, %p333
      %p335 = scmp.ne.s32.totalorder %s327, %s329
      %p336 = scmp.eq.s32.totalorder %s33, 1
      %p337 = por %p335, %p336
      %p338 = scmp.ne.s32.totalorder %s329, %s330
      %p339 = scmp.eq.s32.totalorder %s33, 0
      %p340 = por %p338, %p339
      %p341 = scmp.ne.s32.totalorder %s329, %s330
      %p342 = scmp.eq.s32.totalorder %s34, 1
      %p343 = por %p341, %p342
      %p345 = scmp.ne.s32.totalorder %s330, %s344
      %p346 = scmp.eq.s32.totalorder %s34, 0
      %p347 = por %p345, %p346
      %s349 = sadd.s32 %s348, 1
      %p352 = scmp.eq.s32.totalorder %s28, 1
      %p353 = scmp.ne.s32.totalorder %s348, %s350
      %p354 = scmp.eq.s32.totalorder %s28, 0
      %p355 = por %p353, %p354
      %p356 = scmp.ne.s32.totalorder %s348, %s350
      %p357 = scmp.eq.s32.totalorder %s33, 1
      %p358 = por %p356, %p357
      %p359 = scmp.ne.s32.totalorder %s350, %s351
      %p360 = scmp.eq.s32.totalorder %s33, 0
      %p361 = por %p359, %p360
      %p362 = scmp.ne.s32.totalorder %s350, %s351
      %p363 = scmp.eq.s32.totalorder %s34, 1
      %p364 = por %p362, %p363
      %p366 = scmp.ne.s32.totalorder %s351, %s365
      %p367 = scmp.eq.s32.totalorder %s34, 0
      %p368 = por %p366, %p367
      %s370 = sadd.s32 %s369, 1
      %p373 = scmp.eq.s32.totalorder %s28, 1
      %p374 = scmp.ne.s32.totalorder %s369, %s371
      %p375 = scmp.eq.s32.totalorder %s28, 0
      %p376 = por %p374, %p375
      %p377 = scmp.ne.s32.totalorder %s369, %s371
      %p378 = scmp.eq.s32.totalorder %s33, 1
      %p379 = por %p377, %p378
      %p380 = scmp.ne.s32.totalorder %s371, %s372
      %p381 = scmp.eq.s32.totalorder %s33, 0
      %p382 = por %p380, %p381
      %p383 = scmp.ne.s32.totalorder %s371, %s372
      %p384 = scmp.eq.s32.totalorder %s34, 1
      %p385 = por %p383, %p384
      %p387 = scmp.ne.s32.totalorder %s372, %s386
      %p388 = scmp.eq.s32.totalorder %s34, 0
      %p389 = por %p387, %p388
      %s391 = sadd.s32 %s390, 1
      %p394 = scmp.eq.s32.totalorder %s28, 1
      %p395 = scmp.ne.s32.totalorder %s390, %s392
      %p396 = scmp.eq.s32.totalorder %s28, 0
      %p397 = por %p395, %p396
      %p398 = scmp.ne.s32.totalorder %s390, %s392
      %p399 = scmp.eq.s32.totalorder %s33, 1
      %p400 = por %p398, %p399
      %p401 = scmp.ne.s32.totalorder %s392, %s393
      %p402 = scmp.eq.s32.totalorder %s33, 0
      %p403 = por %p401, %p402
      %p404 = scmp.ne.s32.totalorder %s392, %s393
      %p405 = scmp.eq.s32.totalorder %s34, 1
      %p406 = por %p404, %p405
      %p408 = scmp.ne.s32.totalorder %s393, %s407
      %p409 = scmp.eq.s32.totalorder %s34, 0
      %p410 = por %p408, %p409
      %s412 = sadd.s32 %s411, 1
      %p415 = scmp.eq.s32.totalorder %s28, 1
      %p416 = scmp.ne.s32.totalorder %s411, %s413
      %p417 = scmp.eq.s32.totalorder %s28, 0
      %p418 = por %p416, %p417
      %p419 = scmp.ne.s32.totalorder %s411, %s413
      %p420 = scmp.eq.s32.totalorder %s33, 1
      %p421 = por %p419, %p420
      %p422 = scmp.ne.s32.totalorder %s413, %s414
      %p423 = scmp.eq.s32.totalorder %s33, 0
      %p424 = por %p422, %p423
      %p425 = scmp.ne.s32.totalorder %s413, %s414
      %p426 = scmp.eq.s32.totalorder %s34, 1
      %p427 = por %p425, %p426
      %p429 = scmp.ne.s32.totalorder %s414, %s428
      %p430 = scmp.eq.s32.totalorder %s34, 0
      %p431 = por %p429, %p430
      %s433 = sadd.s32 %s432, 1
      %p436 = scmp.eq.s32.totalorder %s28, 1
      %p437 = scmp.ne.s32.totalorder %s432, %s434
      %p438 = scmp.eq.s32.totalorder %s28, 0
      %p439 = por %p437, %p438
      %p440 = scmp.ne.s32.totalorder %s432, %s434
      %p441 = scmp.eq.s32.totalorder %s33, 1
      %p442 = por %p440, %p441
      %p443 = scmp.ne.s32.totalorder %s434, %s435
      %p444 = scmp.eq.s32.totalorder %s33, 0
      %p445 = por %p443, %p444
      %p446 = scmp.ne.s32.totalorder %s434, %s435
      %p447 = scmp.eq.s32.totalorder %s34, 1
      %p448 = por %p446, %p447
      %p450 = scmp.ne.s32.totalorder %s435, %s449
      %p451 = scmp.eq.s32.totalorder %s34, 0
      %p452 = por %p450, %p451
      %s454 = sadd.s32 %s453, 1
      %p457 = scmp.eq.s32.totalorder %s28, 1
      %p458 = scmp.ne.s32.totalorder %s453, %s455
      %p459 = scmp.eq.s32.totalorder %s28, 0
      %p460 = por %p458, %p459
      %p461 = scmp.ne.s32.totalorder %s453, %s455
      %p462 = scmp.eq.s32.totalorder %s33, 1
      %p463 = por %p461, %p462
      %p464 = scmp.ne.s32.totalorder %s455, %s456
      %p465 = scmp.eq.s32.totalorder %s33, 0
      %p466 = por %p464, %p465
      %p467 = scmp.ne.s32.totalorder %s455, %s456
      %p468 = scmp.eq.s32.totalorder %s34, 1
      %p469 = por %p467, %p468
      %p471 = scmp.ne.s32.totalorder %s456, %s470
      %p472 = scmp.eq.s32.totalorder %s34, 0
      %p473 = por %p471, %p472
      %s475 = sadd.s32 %s474, 1
      %p478 = scmp.eq.s32.totalorder %s28, 1
      %p479 = scmp.ne.s32.totalorder %s474, %s476
      %p480 = scmp.eq.s32.totalorder %s28, 0
      %p481 = por %p479, %p480
      %p482 = scmp.ne.s32.totalorder %s474, %s476
      %p483 = scmp.eq.s32.totalorder %s33, 1
      %p484 = por %p482, %p483
      %p485 = scmp.ne.s32.totalorder %s476, %s477
      %p486 = scmp.eq.s32.totalorder %s33, 0
      %p487 = por %p485, %p486
      %p488 = scmp.ne.s32.totalorder %s476, %s477
      %p489 = scmp.eq.s32.totalorder %s34, 1
      %p490 = por %p488, %p489
      %p492 = scmp.ne.s32.totalorder %s477, %s491
      %p493 = scmp.eq.s32.totalorder %s34, 0
      %p494 = por %p492, %p493
      %s495 = ssub.s32 %s35, %s47
      %s496 = ssub.s32 %s36, %s43
      %s497 = sor.u32 %s495, %s496
      %p498 = scmp.eq.s32.totalorder %s497, 0
      %s500 = sadd.s32 %s499, 1
      %s501 = scalar_select %p498, %s499, %s500
      %p504 = pneg %p498
      %p505 = scmp.eq.s32.totalorder %s28, 1
      %p506 = por %p504, %p505
      %p507 = scmp.ne.s32.totalorder %s499, %s502
      %p508 = scmp.eq.s32.totalorder %s28, 0
      %p509 = por %p507, %p508
      %p510 = scmp.ne.s32.totalorder %s499, %s502
      %p511 = scmp.eq.s32.totalorder %s33, 1
      %p512 = por %p510, %p511
      %p513 = scmp.ne.s32.totalorder %s502, %s503
      %p514 = scmp.eq.s32.totalorder %s33, 0
      %p515 = por %p513, %p514
      %p516 = scmp.ne.s32.totalorder %s502, %s503
      %p517 = scmp.eq.s32.totalorder %s34, 1
      %p518 = por %p516, %p517
      %p520 = scmp.ne.s32.totalorder %s503, %s519
      %p521 = scmp.eq.s32.totalorder %s34, 0
      %p522 = por %p520, %p521
      %p523 = scmp.le.s32.totalorder 1, %s28
      %p524 = scmp.lt.s32.totalorder %s28, 3
      %p525 = pnand %p523, %p524
      %p526 = pneg %p525
      // Predicated region
      $region9: #{tpu_custom_call.1} parent=5 // pred_check
        _
      $region10: #{tpu_custom_call.1} parent=5 // pred_check_branch
        %528 = sbr.rel (%p525) target = $region12
      $region11: #{tpu_custom_call.1} parent=5 // pred_region
        %s529 = ssub.s32 %s28, 1
        // Predicated region
        $region13: #{tpu_custom_call.1} parent=11 // pred_check
          %p530 = pneg %p277
        $region14: #{tpu_custom_call.1} parent=11 // pred_check_branch
          %532 = sbr.rel (%p530) target = $region16
        $region15: #{tpu_custom_call.1} parent=11 // pred_region
          _
        $region16: #{tpu_custom_call.1} parent=11 // pred_fallthru
          _
        // Predicated region
        $region17: #{tpu_custom_call.1} parent=11 // pred_check
          %p533 = pneg %p298
        $region18: #{tpu_custom_call.1} parent=11 // pred_check_branch
          %535 = sbr.rel (%p533) target = $region20
        $region19: #{tpu_custom_call.1} parent=11 // pred_region
          _
        $region20: #{tpu_custom_call.1} parent=11 // pred_fallthru
          _
        // Predicated region
        $region21: #{tpu_custom_call.1} parent=11 // pred_check
          %p536 = pneg %p319
        $region22: #{tpu_custom_call.1} parent=11 // pred_check_branch
          %538 = sbr.rel (%p536) target = $region24
        $region23: #{tpu_custom_call.1} parent=11 // pred_region
          _
        $region24: #{tpu_custom_call.1} parent=11 // pred_fallthru
          _
        // Predicated region
        $region25: #{tpu_custom_call.1} parent=11 // pred_check
          %p539 = pneg %p340
        $region26: #{tpu_custom_call.1} parent=11 // pred_check_branch
          %541 = sbr.rel (%p539) target = $region28
        $region27: #{tpu_custom_call.1} parent=11 // pred_region
          _
        $region28: #{tpu_custom_call.1} parent=11 // pred_fallthru
          _
        // Predicated region
        $region29: #{tpu_custom_call.1} parent=11 // pred_check
          %p542 = pneg %p361
        $region30: #{tpu_custom_call.1} parent=11 // pred_check_branch
          %544 = sbr.rel (%p542) target = $region32
        $region31: #{tpu_custom_call.1} parent=11 // pred_region
          _
        $region32: #{tpu_custom_call.1} parent=11 // pred_fallthru
          _
        // Predicated region
        $region33: #{tpu_custom_call.1} parent=11 // pred_check
          %p545 = pneg %p382
        $region34: #{tpu_custom_call.1} parent=11 // pred_check_branch
          %547 = sbr.rel (%p545) target = $region36
        $region35: #{tpu_custom_call.1} parent=11 // pred_region
          _
        $region36: #{tpu_custom_call.1} parent=11 // pred_fallthru
          _
        // Predicated region
        $region37: #{tpu_custom_call.1} parent=11 // pred_check
          %p548 = pneg %p403
        $region38: #{tpu_custom_call.1} parent=11 // pred_check_branch
          %550 = sbr.rel (%p548) target = $region40
        $region39: #{tpu_custom_call.1} parent=11 // pred_region
          _
        $region40: #{tpu_custom_call.1} parent=11 // pred_fallthru
          _
        // Predicated region
        $region41: #{tpu_custom_call.1} parent=11 // pred_check
          %p551 = pneg %p424
        $region42: #{tpu_custom_call.1} parent=11 // pred_check_branch
          %553 = sbr.rel (%p551) target = $region44
        $region43: #{tpu_custom_call.1} parent=11 // pred_region
          _
        $region44: #{tpu_custom_call.1} parent=11 // pred_fallthru
          _
        // Predicated region
        $region45: #{tpu_custom_call.1} parent=11 // pred_check
          %p554 = pneg %p445
        $region46: #{tpu_custom_call.1} parent=11 // pred_check_branch
          %556 = sbr.rel (%p554) target = $region48
        $region47: #{tpu_custom_call.1} parent=11 // pred_region
          _
        $region48: #{tpu_custom_call.1} parent=11 // pred_fallthru
          _
        // Predicated region
        $region49: #{tpu_custom_call.1} parent=11 // pred_check
          %p557 = pneg %p466
        $region50: #{tpu_custom_call.1} parent=11 // pred_check_branch
          %559 = sbr.rel (%p557) target = $region52
        $region51: #{tpu_custom_call.1} parent=11 // pred_region
          _
        $region52: #{tpu_custom_call.1} parent=11 // pred_fallthru
          _
        // Predicated region
        $region53: #{tpu_custom_call.1} parent=11 // pred_check
          %p560 = pneg %p487
        $region54: #{tpu_custom_call.1} parent=11 // pred_check_branch
          %562 = sbr.rel (%p560) target = $region56
        $region55: #{tpu_custom_call.1} parent=11 // pred_region
          _
        $region56: #{tpu_custom_call.1} parent=11 // pred_fallthru
          _
      $region12: #{tpu_custom_call.1} parent=5 // pred_fallthru
        _
      %p563 = scmp.lt.s32.totalorder %s28, 2
      // Predicated region
      $region57: #{tpu_custom_call.1} parent=5 // pred_check
        %p564 = pneg %p563
      $region58: #{tpu_custom_call.1} parent=5 // pred_check_branch
        %566 = sbr.rel (%p564) target = $region60
      $region59: #{tpu_custom_call.1} parent=5 // pred_region
        // Predicated region
        $region61: #{tpu_custom_call.1} parent=59 // pred_check
          %p567 = pneg %p62
        $region62: #{tpu_custom_call.1} parent=59 // pred_check_branch
          %569 = sbr.rel (%p567) target = $region64
        $region63: #{tpu_custom_call.1} parent=59 // pred_region
          %p570 = scmp.lt.s32.totalorder %s35, 1
          %s571 = scalar_select %p570, %s35, 1
          %p572 = scmp.lt.s32.totalorder %s36, 0
          %s573 = scalar_select %p572, %s36, 0
          %s574 = sadd.s32 %s573, %s571
          %s575 = smul.addr %s574, 8
          %s576 = scalar_lea.vmem %s0, %s575
        $region64: #{tpu_custom_call.1} parent=59 // pred_fallthru
          _
        // Predicated region
        $region65: #{tpu_custom_call.1} parent=59 // pred_check
          %p577 = pneg %p90
        $region66: #{tpu_custom_call.1} parent=59 // pred_check_branch
          %579 = sbr.rel (%p577) target = $region68
        $region67: #{tpu_custom_call.1} parent=59 // pred_region
          %p580 = scmp.lt.s32.totalorder %s35, 1
          %s581 = scalar_select %p580, %s35, 1
          %p582 = scmp.lt.s32.totalorder %s36, 0
          %s583 = scalar_select %p582, %s36, 0
          %s584 = sadd.s32 %s583, %s581
          %s585 = smul.addr %s584, 4
          %s586 = scalar_lea.vmem %s1, %s585
        $region68: #{tpu_custom_call.1} parent=59 // pred_fallthru
          _
        // Predicated region
        $region69: #{tpu_custom_call.1} parent=59 // pred_check
          %p587 = pneg %p116
        $region70: #{tpu_custom_call.1} parent=59 // pred_check_branch
          %589 = sbr.rel (%p587) target = $region72
        $region71: #{tpu_custom_call.1} parent=59 // pred_region
          %p590 = scmp.lt.s32.totalorder %s35, 1
          %s591 = scalar_select %p590, %s35, 1
          %s592 = smul.addr %s591, 4
          %s593 = smul.addr %s592, 4
          %s594 = scalar_lea.vmem %s2, %s593
        $region72: #{tpu_custom_call.1} parent=59 // pred_fallthru
          _
        // Predicated region
        $region73: #{tpu_custom_call.1} parent=59 // pred_check
          %p595 = pneg %p142
        $region74: #{tpu_custom_call.1} parent=59 // pred_check_branch
          %597 = sbr.rel (%p595) target = $region76
        $region75: #{tpu_custom_call.1} parent=59 // pred_region
          %p598 = scmp.lt.s32.totalorder %s35, 1
          %s599 = scalar_select %p598, %s35, 1
          %s600 = smul.addr %s599, 4
          %s601 = scalar_lea.vmem %s3, %s600
        $region76: #{tpu_custom_call.1} parent=59 // pred_fallthru
          _
        // Predicated region
        $region77: #{tpu_custom_call.1} parent=59 // pred_check
          %p602 = pneg %p168
        $region78: #{tpu_custom_call.1} parent=59 // pred_check_branch
          %604 = sbr.rel (%p602) target = $region80
        $region79: #{tpu_custom_call.1} parent=59 // pred_region
          %p605 = scmp.lt.s32.totalorder %s35, 1
          %s606 = scalar_select %p605, %s35, 1
          %s607 = smul.addr %s606, 4
          %s608 = smul.addr %s607, 4
          %s609 = scalar_lea.vmem %s4, %s608
        $region80: #{tpu_custom_call.1} parent=59 // pred_fallthru
          _
        // Predicated region
        $region81: #{tpu_custom_call.1} parent=59 // pred_check
          %p610 = pneg %p194
        $region82: #{tpu_custom_call.1} parent=59 // pred_check_branch
          %612 = sbr.rel (%p610) target = $region84
        $region83: #{tpu_custom_call.1} parent=59 // pred_region
          %p613 = scmp.lt.s32.totalorder %s35, 1
          %s614 = scalar_select %p613, %s35, 1
          %s615 = smul.addr %s614, 2
          %s616 = smul.addr %s615, 4
          %s617 = scalar_lea.vmem %s5, %s616
        $region84: #{tpu_custom_call.1} parent=59 // pred_fallthru
          _
        // Predicated region
        $region85: #{tpu_custom_call.1} parent=59 // pred_check
          %p618 = pneg %p222
        $region86: #{tpu_custom_call.1} parent=59 // pred_check_branch
          %620 = sbr.rel (%p618) target = $region88
        $region87: #{tpu_custom_call.1} parent=59 // pred_region
          %p621 = scmp.lt.s32.totalorder %s35, 1
          %s622 = scalar_select %p621, %s35, 1
          %p623 = scmp.lt.s32.totalorder %s36, 0
          %s624 = scalar_select %p623, %s36, 0
          %s625 = sadd.s32 %s624, %s622
          %s626 = smul.addr %s625, 4
          %s627 = scalar_lea.vmem %s6, %s626
        $region88: #{tpu_custom_call.1} parent=59 // pred_fallthru
          _
        // Predicated region
        $region89: #{tpu_custom_call.1} parent=59 // pred_check
          %p628 = pneg %p250
        $region90: #{tpu_custom_call.1} parent=59 // pred_check_branch
          %630 = sbr.rel (%p628) target = $region92
        $region91: #{tpu_custom_call.1} parent=59 // pred_region
          %p631 = scmp.lt.s32.totalorder %s35, 1
          %s632 = scalar_select %p631, %s35, 1
          %p633 = scmp.lt.s32.totalorder %s36, 0
          %s634 = scalar_select %p633, %s36, 0
          %s635 = sadd.s32 %s634, %s632
          %s636 = smul.addr %s635, 4
          %s637 = scalar_lea.vmem %s7, %s636
        $region92: #{tpu_custom_call.1} parent=59 // pred_fallthru
          _
      $region60: #{tpu_custom_call.1} parent=5 // pred_fallthru
        _
      %p638 = scmp.le.s32.totalorder 1, %s28
      %p639 = scmp.lt.s32.totalorder %s28, 3
      %p640 = pnand %p638, %p639
      %p641 = pneg %p640
      // Predicated region
      $region93: #{tpu_custom_call.1} parent=5 // pred_check
        _
      $region94: #{tpu_custom_call.1} parent=5 // pred_check_branch
        %643 = sbr.rel (%p640) target = $region96
      $region95: #{tpu_custom_call.1} parent=5 // pred_region
        %s644 = ssub.s32 %s28, 1
        %p645 = scmp.lt.s32.totalorder %s37, 1
        %s646 = scalar_select %p645, %s37, 1
        %p647 = scmp.lt.s32.totalorder %s38, 0
        %s648 = scalar_select %p647, %s38, 0
        %s649 = sadd.s32 %s648, %s646
        %s650 = smul.addr %s649, 8
        %s651 = scalar_lea.vmem %s0, %s650
        %p652 = pneg %p68
        %p653 = pneg %p65
        %p654 = scmp.lt.s32.totalorder %s37, 1
        %s655 = scalar_select %p654, %s37, 1
        %p656 = scmp.lt.s32.totalorder %s38, 0
        %s657 = scalar_select %p656, %s38, 0
        %s658 = sadd.s32 %s657, %s655
        %s659 = smul.addr %s658, 4
        %s660 = scalar_lea.vmem %s1, %s659
        %p661 = pneg %p96
        %p662 = pneg %p93
        %p663 = scmp.lt.s32.totalorder %s37, 1
        %s664 = scalar_select %p663, %s37, 1
        %s665 = smul.addr %s664, 4
        %s666 = smul.addr %s665, 4
        %s667 = scalar_lea.vmem %s2, %s666
        %p668 = pneg %p122
        %p669 = pneg %p119
        %p670 = scmp.lt.s32.totalorder %s37, 1
        %s671 = scalar_select %p670, %s37, 1
        %s672 = smul.addr %s671, 4
        %s673 = scalar_lea.vmem %s3, %s672
        %p674 = pneg %p148
        %p675 = pneg %p145
        %p676 = scmp.lt.s32.totalorder %s37, 1
        %s677 = scalar_select %p676, %s37, 1
        %s678 = smul.addr %s677, 4
        %s679 = smul.addr %s678, 4
        %s680 = scalar_lea.vmem %s4, %s679
        %p681 = pneg %p174
        %p682 = pneg %p171
        %p683 = scmp.lt.s32.totalorder %s37, 1
        %s684 = scalar_select %p683, %s37, 1
        %s685 = smul.addr %s684, 2
        %s686 = smul.addr %s685, 4
        %s687 = scalar_lea.vmem %s5, %s686
        %p688 = pneg %p200
        %p689 = pneg %p197
        %p690 = scmp.lt.s32.totalorder %s37, 1
        %s691 = scalar_select %p690, %s37, 1
        %p692 = scmp.lt.s32.totalorder %s38, 0
        %s693 = scalar_select %p692, %s38, 0
        %s694 = sadd.s32 %s693, %s691
        %s695 = smul.addr %s694, 4
        %s696 = scalar_lea.vmem %s6, %s695
        %p697 = pneg %p228
        %p698 = pneg %p225
        %p699 = scmp.lt.s32.totalorder %s37, 1
        %s700 = scalar_select %p699, %s37, 1
        %p701 = scmp.lt.s32.totalorder %s38, 0
        %s702 = scalar_select %p701, %s38, 0
        %s703 = sadd.s32 %s702, %s700
        %s704 = smul.addr %s703, 4
        %s705 = scalar_lea.vmem %s7, %s704
        %p706 = pneg %p256
        %p707 = pneg %p253
        %p708 = pneg %p277
        %p709 = pneg %p274
        %p710 = pneg %p298
        %p711 = pneg %p295
        %p712 = pneg %p319
        %p713 = pneg %p316
        %p714 = pneg %p340
        %p715 = pneg %p337
        %p716 = pneg %p361
        %p717 = pneg %p358
        %p718 = pneg %p382
        %p719 = pneg %p379
        %p720 = pneg %p403
        %p721 = pneg %p400
        %p722 = pneg %p424
        %p723 = pneg %p421
        %p724 = pneg %p445
        %p725 = pneg %p442
        %p726 = pneg %p466
        %p727 = pneg %p463
        %p728 = pneg %p487
        %p729 = pneg %p484
        %p730 = pneg %p515
        %p731 = pneg %p512
        %s732 = sand.u32 %s502, 1
        %s733 = scalar_lea.sflag [#allocation4], %s732
        %s734 = sand.u32 %s502, 1
        %s735 = smul.addr %s734, 8
        %s736 = scalar_lea.vmem [#allocation3], %s735
        %p737 = scmp.lt.s32.totalorder %s37, 1
        %s738 = scalar_select %p737, %s37, 1
        %p739 = scmp.lt.s32.totalorder %s38, 0
        %s740 = scalar_select %p739, %s38, 0
        %s741 = sadd.s32 %s740, %s738
        %s742 = smul.addr %s741, 8
        %s743 = scalar_lea.vmem %s0, %s742
        %p744 = scmp.lt.s32.totalorder %s37, 1
        %s745 = scalar_select %p744, %s37, 1
        %p746 = scmp.lt.s32.totalorder %s38, 0
        %s747 = scalar_select %p746, %s38, 0
        %s748 = sadd.s32 %s747, %s745
        %s749 = smul.addr %s748, 4
        %s750 = scalar_lea.vmem %s1, %s749
        %p751 = scmp.lt.s32.totalorder %s37, 1
        %s752 = scalar_select %p751, %s37, 1
        %s753 = smul.addr %s752, 4
        %s754 = smul.addr %s753, 4
        %s755 = scalar_lea.vmem %s2, %s754
        %p756 = scmp.lt.s32.totalorder %s37, 1
        %s757 = scalar_select %p756, %s37, 1
        %s758 = smul.addr %s757, 4
        %s759 = scalar_lea.vmem %s3, %s758
        %p760 = scmp.lt.s32.totalorder %s37, 1
        %s761 = scalar_select %p760, %s37, 1
        %s762 = smul.addr %s761, 4
        %s763 = smul.addr %s762, 4
        %s764 = scalar_lea.vmem %s4, %s763
        %p765 = scmp.lt.s32.totalorder %s37, 1
        %s766 = scalar_select %p765, %s37, 1
        %s767 = smul.addr %s766, 2
        %s768 = smul.addr %s767, 4
        %s769 = scalar_lea.vmem %s5, %s768
        %p770 = scmp.lt.s32.totalorder %s37, 1
        %s771 = scalar_select %p770, %s37, 1
        %p772 = scmp.lt.s32.totalorder %s38, 0
        %s773 = scalar_select %p772, %s38, 0
        %s774 = sadd.s32 %s773, %s771
        %s775 = smul.addr %s774, 4
        %s776 = scalar_lea.vmem %s6, %s775
        %p777 = scmp.lt.s32.totalorder %s37, 1
        %s778 = scalar_select %p777, %s37, 1
        %p779 = scmp.lt.s32.totalorder %s38, 0
        %s780 = scalar_select %p779, %s38, 0
        %s781 = sadd.s32 %s780, %s778
        %s782 = smul.addr %s781, 4
        %s783 = scalar_lea.vmem %s7, %s782
        %v785 = vld [vmem:[%s743] sm:$0xff]
        %v786 = vld [vmem:[%s750] sm:$0xf]
        %v787 = vld [vmem:[%s776] sm:$0xf]
        %v788 = vunpack.c.l.bf16 %v787
        %v789 = vld [vmem:[%s755] sm:$0xf]
        %vm790 = vcmask 64512
        %v792 = vsel %vm790, %v786, 0
        %vm794 = vcmask 1043456
        %v796 = vsel %vm794, %v789, 0
        %798 = vmatprep.subr.bf16.mxu0 0
        %799 = vmatpush1.bf16.msra.mxu0 %v796
        %800 = vmatprep.subr.bf16.mxu0 0
        %801 = vmatpush1.bf16.msra.mxu0 0
        %802 = vmatprep.subr.bf16.mxu0 0
        %803 = vmatpush1.bf16.msra.mxu0 0
        %804 = vmatprep.subr.bf16.mxu0 0
        %805 = vmatpush1.bf16.msra.mxu0 0
        %806 = vmatprep.subr.bf16.mxu0 0
        %807 = vmatpush1.bf16.msra.mxu0 0
        %808 = vmatprep.subr.bf16.mxu0 0
        %809 = vmatpush1.bf16.msra.mxu0 0
        %810 = vmatprep.subr.bf16.mxu0 0
        %811 = vmatpush1.bf16.msra.mxu0 0
        %812 = vmatprep.subr.bf16.mxu0 0
        %813 = vmatpush1.bf16.msra.mxu0 0
        %814 = vmatprep.subr.bf16.mxu0 0
        %815 = vmatpush1.bf16.msra.mxu0 0
        %816 = vmatprep.subr.bf16.mxu0 0
        %817 = vmatpush1.bf16.msra.mxu0 0
        %818 = vmatprep.subr.bf16.mxu0 0
        %819 = vmatpush1.bf16.msra.mxu0 0
        %820 = vmatprep.subr.bf16.mxu0 0
        %821 = vmatpush1.bf16.msra.mxu0 0
        %822 = vmatprep.subr.bf16.mxu0 0
        %823 = vmatpush1.bf16.msra.mxu0 0
        %824 = vmatprep.subr.bf16.mxu0 0
        %825 = vmatpush1.bf16.msra.mxu0 0
        %826 = vmatprep.subr.bf16.mxu0 0
        %827 = vmatpush1.bf16.msra.mxu0 0
        %828 = vmatprep.subr.bf16.mxu0 0
        %829 = vmatpush1.bf16.msra.mxu0 0
        %830 = vmatprep.mubr.bf16.mxu0 0
        %831 = vmatmul.mubr.bf16.gmra.mrb[0].mxu0 %v792
        %v832 = vpop.f32.mrb[0].mxu0
        %v833 = vadd.f32 %v788, %v832
        %v834 = vpop.f32.mrb[0].mxu0
        %v835 = vpop.f32.mrb[0].mxu0
        %v836 = vpop.f32.mrb[0].mxu0
        %837 = vdwg.mxu0
        %v838 = vsel %vm790, %v833, -inf
        %839 = vmax.xlane.f32.xlu0 %v838
        %v840 = vpop.xlane.xlu0 %839
        %v841 = vsub.f32 %v833, %v840
        %v842 = vmul.f32 %v841, 1.442695
        %v843 = vpow.pop %v842
        %v844 = vsel %vm790, %v843, 0.0
        %845 = vadd.xlane.f32.xlu0 %v844
        %v846 = vpop.xlane.xlu0 %845
        %v847 = vrcp.pop %v846
        %v848 = vmul.f32 %v843, %v847
        %v849 = vpack.c.bf16 %v848, %v848
        %v850 = vld [vmem:[%s759] sm:$0xf]
        %v852 = vsel %vm790, %v849, 0
        %v855 = vsel %vm794, %v850, 0
        %857 = vmatprep.subr.bf16.mxu0 0
        %858 = vmatpush1.bf16.msra.mxu0 %v855
        %859 = vmatprep.subr.bf16.mxu0 0
        %860 = vmatpush1.bf16.msra.mxu0 0
        %861 = vmatprep.subr.bf16.mxu0 0
        %862 = vmatpush1.bf16.msra.mxu0 0
        %863 = vmatprep.subr.bf16.mxu0 0
        %864 = vmatpush1.bf16.msra.mxu0 0
        %865 = vmatprep.subr.bf16.mxu0 0
        %866 = vmatpush1.bf16.msra.mxu0 0
        %867 = vmatprep.subr.bf16.mxu0 0
        %868 = vmatpush1.bf16.msra.mxu0 0
        %869 = vmatprep.subr.bf16.mxu0 0
        %870 = vmatpush1.bf16.msra.mxu0 0
        %871 = vmatprep.subr.bf16.mxu0 0
        %872 = vmatpush1.bf16.msra.mxu0 0
        %873 = vmatprep.subr.bf16.mxu0 0
        %874 = vmatpush1.bf16.msra.mxu0 0
        %875 = vmatprep.subr.bf16.mxu0 0
        %876 = vmatpush1.bf16.msra.mxu0 0
        %877 = vmatprep.subr.bf16.mxu0 0
        %878 = vmatpush1.bf16.msra.mxu0 0
        %879 = vmatprep.subr.bf16.mxu0 0
        %880 = vmatpush1.bf16.msra.mxu0 0
        %881 = vmatprep.subr.bf16.mxu0 0
        %882 = vmatpush1.bf16.msra.mxu0 0
        %883 = vmatprep.subr.bf16.mxu0 0
        %884 = vmatpush1.bf16.msra.mxu0 0
        %885 = vmatprep.subr.bf16.mxu0 0
        %886 = vmatpush1.bf16.msra.mxu0 0
        %887 = vmatprep.subr.bf16.mxu0 0
        %888 = vmatpush1.bf16.msra.mxu0 0
        %889 = vmatprep.mubr.bf16.mxu0 0
        %890 = vmatmul.mubr.bf16.gmra.mrb[0].mxu0 %v852
        %v891 = vpop.f32.mrb[0].mxu0
        %v892 = vadd.f32 0.0, %v891
        %v893 = vpop.f32.mrb[0].mxu0
        %v894 = vpop.f32.mrb[0].mxu0
        %v895 = vpop.f32.mrb[0].mxu0
        %896 = vdwg.mxu0
        %v897 = vpack.c.bf16 %v892, %v892
        %vm898 = vcmask 60416
        %899 = vst.msk [vmem:[#allocation2] sm:$0xf] %vm898, %v897
        %v900 = vld [vmem:[%s755 + $0x4] sm:$0xf]
        %v902 = vunpack.c.l.b16 %v786
        %v903 = vpack.c.b16 %v902, %v902
        %904 = vrot.lane.b32.xlu0 %v903, 120
        %v905 = vpop.permute.xlu0 %904
        %v907 = vsel %vm790, %v905, 0
        %v910 = vsel %vm794, %v900, 0
        %912 = vmatprep.subr.bf16.mxu0 0
        %913 = vmatpush1.bf16.msra.mxu0 %v910
        %914 = vmatprep.subr.bf16.mxu0 0
        %915 = vmatpush1.bf16.msra.mxu0 0
        %916 = vmatprep.subr.bf16.mxu0 0
        %917 = vmatpush1.bf16.msra.mxu0 0
        %918 = vmatprep.subr.bf16.mxu0 0
        %919 = vmatpush1.bf16.msra.mxu0 0
        %920 = vmatprep.subr.bf16.mxu0 0
        %921 = vmatpush1.bf16.msra.mxu0 0
        %922 = vmatprep.subr.bf16.mxu0 0
        %923 = vmatpush1.bf16.msra.mxu0 0
        %924 = vmatprep.subr.bf16.mxu0 0
        %925 = vmatpush1.bf16.msra.mxu0 0
        %926 = vmatprep.subr.bf16.mxu0 0
        %927 = vmatpush1.bf16.msra.mxu0 0
        %928 = vmatprep.subr.bf16.mxu0 0
        %929 = vmatpush1.bf16.msra.mxu0 0
        %930 = vmatprep.subr.bf16.mxu0 0
        %931 = vmatpush1.bf16.msra.mxu0 0
        %932 = vmatprep.subr.bf16.mxu0 0
        %933 = vmatpush1.bf16.msra.mxu0 0
        %934 = vmatprep.subr.bf16.mxu0 0
        %935 = vmatpush1.bf16.msra.mxu0 0
        %936 = vmatprep.subr.bf16.mxu0 0
        %937 = vmatpush1.bf16.msra.mxu0 0
        %938 = vmatprep.subr.bf16.mxu0 0
        %939 = vmatpush1.bf16.msra.mxu0 0
        %940 = vmatprep.subr.bf16.mxu0 0
        %941 = vmatpush1.bf16.msra.mxu0 0
        %942 = vmatprep.subr.bf16.mxu0 0
        %943 = vmatpush1.bf16.msra.mxu0 0
        %944 = vmatprep.mubr.bf16.mxu0 0
        %945 = vmatmul.mubr.bf16.gmra.mrb[0].mxu0 %v907
        %v946 = vpop.f32.mrb[0].mxu0
        %v947 = vadd.f32 %v788, %v946
        %v948 = vpop.f32.mrb[0].mxu0
        %v949 = vpop.f32.mrb[0].mxu0
        %v950 = vpop.f32.mrb[0].mxu0
        %951 = vdwg.mxu0
        %v952 = vsel %vm790, %v947, -inf
        %953 = vmax.xlane.f32.xlu0 %v952
        %v954 = vpop.xlane.xlu0 %953
        %v955 = vsub.f32 %v947, %v954
        %v956 = vmul.f32 %v955, 1.442695
        %v957 = vpow.pop %v956
        %v958 = vsel %vm790, %v957, 0.0
        %959 = vadd.xlane.f32.xlu0 %v958
        %v960 = vpop.xlane.xlu0 %959
        %v961 = vrcp.pop %v960
        %v962 = vmul.f32 %v957, %v961
        %v963 = vpack.c.bf16 %v962, %v962
        %v964 = vld [vmem:[%s759] sm:$0xf]
        %v966 = vunpack.c.l.b16 %v964
        %v967 = vpack.c.b16 %v966, %v966
        %968 = vrot.lane.b32.xlu0 %v967, 120
        %v969 = vpop.permute.xlu0 %968
        %v971 = vsel %vm790, %v963, 0
        %v974 = vsel %vm794, %v969, 0
        %976 = vmatprep.subr.bf16.mxu0 0
        %977 = vmatpush1.bf16.msra.mxu0 %v974
        %978 = vmatprep.subr.bf16.mxu0 0
        %979 = vmatpush1.bf16.msra.mxu0 0
        %980 = vmatprep.subr.bf16.mxu0 0
        %981 = vmatpush1.bf16.msra.mxu0 0
        %982 = vmatprep.subr.bf16.mxu0 0
        %983 = vmatpush1.bf16.msra.mxu0 0
        %984 = vmatprep.subr.bf16.mxu0 0
        %985 = vmatpush1.bf16.msra.mxu0 0
        %986 = vmatprep.subr.bf16.mxu0 0
        %987 = vmatpush1.bf16.msra.mxu0 0
        %988 = vmatprep.subr.bf16.mxu0 0
        %989 = vmatpush1.bf16.msra.mxu0 0
        %990 = vmatprep.subr.bf16.mxu0 0
        %991 = vmatpush1.bf16.msra.mxu0 0
        %992 = vmatprep.subr.bf16.mxu0 0
        %993 = vmatpush1.bf16.msra.mxu0 0
        %994 = vmatprep.subr.bf16.mxu0 0
        %995 = vmatpush1.bf16.msra.mxu0 0
        %996 = vmatprep.subr.bf16.mxu0 0
        %997 = vmatpush1.bf16.msra.mxu0 0
        %998 = vmatprep.subr.bf16.mxu0 0
        %999 = vmatpush1.bf16.msra.mxu0 0
        %1000 = vmatprep.subr.bf16.mxu0 0
        %1001 = vmatpush1.bf16.msra.mxu0 0
        %1002 = vmatprep.subr.bf16.mxu0 0
        %1003 = vmatpush1.bf16.msra.mxu0 0
        %1004 = vmatprep.subr.bf16.mxu0 0
        %1005 = vmatpush1.bf16.msra.mxu0 0
        %1006 = vmatprep.subr.bf16.mxu0 0
        %1007 = vmatpush1.bf16.msra.mxu0 0
        %1008 = vmatprep.mubr.bf16.mxu0 0
        %1009 = vmatmul.mubr.bf16.gmra.mrb[0].mxu0 %v971
        %v1010 = vpop.f32.mrb[0].mxu0
        %v1011 = vadd.f32 0.0, %v1010
        %v1012 = vpop.f32.mrb[0].mxu0
        %v1013 = vpop.f32.mrb[0].mxu0
        %v1014 = vpop.f32.mrb[0].mxu0
        %1015 = vdwg.mxu0
        %v1016 = vpack.c.bf16 %v1011, %v1011
        %v1018 = vunpack.c.l.b16 %v1016
        %v1019 = vpack.c.b16 %v1018, %v1018
        %1020 = vrot.lane.b32.xlu0 %v1019, 8
        %v1021 = vpop.permute.xlu0 %1020
        %vm1023 = vcmask 126016
        %1024 = vst.msk [vmem:[#allocation2] sm:$0xf] %vm1023, %v1021
        %v1025 = vld [vmem:[%s755 + $0x8] sm:$0xf]
        %1026 = vrot.lane.b32.xlu0 %v903, 112
        %v1027 = vpop.permute.xlu0 %1026
        %v1029 = vsel %vm790, %v1027, 0
        %v1032 = vsel %vm794, %v1025, 0
        %1034 = vmatprep.subr.bf16.mxu0 0
        %1035 = vmatpush1.bf16.msra.mxu0 %v1032
        %1036 = vmatprep.subr.bf16.mxu0 0
        %1037 = vmatpush1.bf16.msra.mxu0 0
        %1038 = vmatprep.subr.bf16.mxu0 0
        %1039 = vmatpush1.bf16.msra.mxu0 0
        %1040 = vmatprep.subr.bf16.mxu0 0
        %1041 = vmatpush1.bf16.msra.mxu0 0
        %1042 = vmatprep.subr.bf16.mxu0 0
        %1043 = vmatpush1.bf16.msra.mxu0 0
        %1044 = vmatprep.subr.bf16.mxu0 0
        %1045 = vmatpush1.bf16.msra.mxu0 0
        %1046 = vmatprep.subr.bf16.mxu0 0
        %1047 = vmatpush1.bf16.msra.mxu0 0
        %1048 = vmatprep.subr.bf16.mxu0 0
        %1049 = vmatpush1.bf16.msra.mxu0 0
        %1050 = vmatprep.subr.bf16.mxu0 0
        %1051 = vmatpush1.bf16.msra.mxu0 0
        %1052 = vmatprep.subr.bf16.mxu0 0
        %1053 = vmatpush1.bf16.msra.mxu0 0
        %1054 = vmatprep.subr.bf16.mxu0 0
        %1055 = vmatpush1.bf16.msra.mxu0 0
        %1056 = vmatprep.subr.bf16.mxu0 0
        %1057 = vmatpush1.bf16.msra.mxu0 0
        %1058 = vmatprep.subr.bf16.mxu0 0
        %1059 = vmatpush1.bf16.msra.mxu0 0
        %1060 = vmatprep.subr.bf16.mxu0 0
        %1061 = vmatpush1.bf16.msra.mxu0 0
        %1062 = vmatprep.subr.bf16.mxu0 0
        %1063 = vmatpush1.bf16.msra.mxu0 0
        %1064 = vmatprep.subr.bf16.mxu0 0
        %1065 = vmatpush1.bf16.msra.mxu0 0
        %1066 = vmatprep.mubr.bf16.mxu0 0
        %1067 = vmatmul.mubr.bf16.gmra.mrb[0].mxu0 %v1029
        %v1068 = vpop.f32.mrb[0].mxu0
        %v1069 = vadd.f32 %v788, %v1068
        %v1070 = vpop.f32.mrb[0].mxu0
        %v1071 = vpop.f32.mrb[0].mxu0
        %v1072 = vpop.f32.mrb[0].mxu0
        %1073 = vdwg.mxu0
        %v1074 = vsel %vm790, %v1069, -inf
        %1075 = vmax.xlane.f32.xlu0 %v1074
        %v1076 = vpop.xlane.xlu0 %1075
        %v1077 = vsub.f32 %v1069, %v1076
        %v1078 = vmul.f32 %v1077, 1.442695
        %v1079 = vpow.pop %v1078
        %v1080 = vsel %vm790, %v1079, 0.0
        %1081 = vadd.xlane.f32.xlu0 %v1080
        %v1082 = vpop.xlane.xlu0 %1081
        %v1083 = vrcp.pop %v1082
        %v1084 = vmul.f32 %v1079, %v1083
        %v1085 = vpack.c.bf16 %v1084, %v1084
        %v1086 = vld [vmem:[%s759] sm:$0xf]
        %v1088 = vunpack.c.l.b16 %v1086
        %v1089 = vpack.c.b16 %v1088, %v1088
        %1090 = vrot.lane.b32.xlu0 %v1089, 112
        %v1091 = vpop.permute.xlu0 %1090
        %v1093 = vsel %vm790, %v1085, 0
        %v1096 = vsel %vm794, %v1091, 0
        %1098 = vmatprep.subr.bf16.mxu0 0
        %1099 = vmatpush1.bf16.msra.mxu0 %v1096
        %1100 = vmatprep.subr.bf16.mxu0 0
        %1101 = vmatpush1.bf16.msra.mxu0 0
        %1102 = vmatprep.subr.bf16.mxu0 0
        %1103 = vmatpush1.bf16.msra.mxu0 0
        %1104 = vmatprep.subr.bf16.mxu0 0
        %1105 = vmatpush1.bf16.msra.mxu0 0
        %1106 = vmatprep.subr.bf16.mxu0 0
        %1107 = vmatpush1.bf16.msra.mxu0 0
        %1108 = vmatprep.subr.bf16.mxu0 0
        %1109 = vmatpush1.bf16.msra.mxu0 0
        %1110 = vmatprep.subr.bf16.mxu0 0
        %1111 = vmatpush1.bf16.msra.mxu0 0
        %1112 = vmatprep.subr.bf16.mxu0 0
        %1113 = vmatpush1.bf16.msra.mxu0 0
        %1114 = vmatprep.subr.bf16.mxu0 0
        %1115 = vmatpush1.bf16.msra.mxu0 0
        %1116 = vmatprep.subr.bf16.mxu0 0
        %1117 = vmatpush1.bf16.msra.mxu0 0
        %1118 = vmatprep.subr.bf16.mxu0 0
        %1119 = vmatpush1.bf16.msra.mxu0 0
        %1120 = vmatprep.subr.bf16.mxu0 0
        %1121 = vmatpush1.bf16.msra.mxu0 0
        %1122 = vmatprep.subr.bf16.mxu0 0
        %1123 = vmatpush1.bf16.msra.mxu0 0
        %1124 = vmatprep.subr.bf16.mxu0 0
        %1125 = vmatpush1.bf16.msra.mxu0 0
        %1126 = vmatprep.subr.bf16.mxu0 0
        %1127 = vmatpush1.bf16.msra.mxu0 0
        %1128 = vmatprep.subr.bf16.mxu0 0
        %1129 = vmatpush1.bf16.msra.mxu0 0
        %1130 = vmatprep.mubr.bf16.mxu0 0
        %1131 = vmatmul.mubr.bf16.gmra.mrb[0].mxu0 %v1093
        %v1132 = vpop.f32.mrb[0].mxu0
        %v1133 = vadd.f32 0.0, %v1132
        %v1134 = vpop.f32.mrb[0].mxu0
        %v1135 = vpop.f32.mrb[0].mxu0
        %v1136 = vpop.f32.mrb[0].mxu0
        %1137 = vdwg.mxu0
        %v1138 = vpack.c.bf16 %v1133, %v1133
        %v1140 = vunpack.c.l.b16 %v1138
        %v1141 = vpack.c.b16 %v1140, %v1140
        %1142 = vrot.lane.b32.xlu0 %v1141, 16
        %v1143 = vpop.permute.xlu0 %1142
        %vm1145 = vcmask 191616
        %1146 = vst.msk [vmem:[#allocation2] sm:$0xf] %vm1145, %v1143
        %v1147 = vld [vmem:[%s755 + $0xc] sm:$0xf]
        %1148 = vrot.lane.b32.xlu0 %v903, 104
        %v1149 = vpop.permute.xlu0 %1148
        %v1151 = vsel %vm790, %v1149, 0
        %v1154 = vsel %vm794, %v1147, 0
        %1156 = vmatprep.subr.bf16.mxu0 0
        %1157 = vmatpush1.bf16.msra.mxu0 %v1154
        %1158 = vmatprep.subr.bf16.mxu0 0
        %1159 = vmatpush1.bf16.msra.mxu0 0
        %1160 = vmatprep.subr.bf16.mxu0 0
        %1161 = vmatpush1.bf16.msra.mxu0 0
        %1162 = vmatprep.subr.bf16.mxu0 0
        %1163 = vmatpush1.bf16.msra.mxu0 0
        %1164 = vmatprep.subr.bf16.mxu0 0
        %1165 = vmatpush1.bf16.msra.mxu0 0
        %1166 = vmatprep.subr.bf16.mxu0 0
        %1167 = vmatpush1.bf16.msra.mxu0 0
        %1168 = vmatprep.subr.bf16.mxu0 0
        %1169 = vmatpush1.bf16.msra.mxu0 0
        %1170 = vmatprep.subr.bf16.mxu0 0
        %1171 = vmatpush1.bf16.msra.mxu0 0
        %1172 = vmatprep.subr.bf16.mxu0 0
        %1173 = vmatpush1.bf16.msra.mxu0 0
        %1174 = vmatprep.subr.bf16.mxu0 0
        %1175 = vmatpush1.bf16.msra.mxu0 0
        %1176 = vmatprep.subr.bf16.mxu0 0
        %1177 = vmatpush1.bf16.msra.mxu0 0
        %1178 = vmatprep.subr.bf16.mxu0 0
        %1179 = vmatpush1.bf16.msra.mxu0 0
        %1180 = vmatprep.subr.bf16.mxu0 0
        %1181 = vmatpush1.bf16.msra.mxu0 0
        %1182 = vmatprep.subr.bf16.mxu0 0
        %1183 = vmatpush1.bf16.msra.mxu0 0
        %1184 = vmatprep.subr.bf16.mxu0 0
        %1185 = vmatpush1.bf16.msra.mxu0 0
        %1186 = vmatprep.subr.bf16.mxu0 0
        %1187 = vmatpush1.bf16.msra.mxu0 0
        %1188 = vmatprep.mubr.bf16.mxu0 0
        %1189 = vmatmul.mubr.bf16.gmra.mrb[0].mxu0 %v1151
        %v1190 = vpop.f32.mrb[0].mxu0
        %v1191 = vadd.f32 %v788, %v1190
        %v1192 = vpop.f32.mrb[0].mxu0
        %v1193 = vpop.f32.mrb[0].mxu0
        %v1194 = vpop.f32.mrb[0].mxu0
        %1195 = vdwg.mxu0
        %v1196 = vsel %vm790, %v1191, -inf
        %1197 = vmax.xlane.f32.xlu0 %v1196
        %v1198 = vpop.xlane.xlu0 %1197
        %v1199 = vsub.f32 %v1191, %v1198
        %v1200 = vmul.f32 %v1199, 1.442695
        %v1201 = vpow.pop %v1200
        %v1202 = vsel %vm790, %v1201, 0.0
        %1203 = vadd.xlane.f32.xlu0 %v1202
        %v1204 = vpop.xlane.xlu0 %1203
        %v1205 = vrcp.pop %v1204
        %v1206 = vmul.f32 %v1201, %v1205
        %v1207 = vpack.c.bf16 %v1206, %v1206
        %v1208 = vld [vmem:[%s759] sm:$0xf]
        %v1210 = vunpack.c.l.b16 %v1208
        %v1211 = vpack.c.b16 %v1210, %v1210
        %1212 = vrot.lane.b32.xlu0 %v1211, 104
        %v1213 = vpop.permute.xlu0 %1212
        %v1215 = vsel %vm790, %v1207, 0
        %v1218 = vsel %vm794, %v1213, 0
        %1220 = vmatprep.subr.bf16.mxu0 0
        %1221 = vmatpush1.bf16.msra.mxu0 %v1218
        %1222 = vmatprep.subr.bf16.mxu0 0
        %1223 = vmatpush1.bf16.msra.mxu0 0
        %1224 = vmatprep.subr.bf16.mxu0 0
        %1225 = vmatpush1.bf16.msra.mxu0 0
        %1226 = vmatprep.subr.bf16.mxu0 0
        %1227 = vmatpush1.bf16.msra.mxu0 0
        %1228 = vmatprep.subr.bf16.mxu0 0
        %1229 = vmatpush1.bf16.msra.mxu0 0
        %1230 = vmatprep.subr.bf16.mxu0 0
        %1231 = vmatpush1.bf16.msra.mxu0 0
        %1232 = vmatprep.subr.bf16.mxu0 0
        %1233 = vmatpush1.bf16.msra.mxu0 0
        %1234 = vmatprep.subr.bf16.mxu0 0
        %1235 = vmatpush1.bf16.msra.mxu0 0
        %1236 = vmatprep.subr.bf16.mxu0 0
        %1237 = vmatpush1.bf16.msra.mxu0 0
        %1238 = vmatprep.subr.bf16.mxu0 0
        %1239 = vmatpush1.bf16.msra.mxu0 0
        %1240 = vmatprep.subr.bf16.mxu0 0
        %1241 = vmatpush1.bf16.msra.mxu0 0
        %1242 = vmatprep.subr.bf16.mxu0 0
        %1243 = vmatpush1.bf16.msra.mxu0 0
        %1244 = vmatprep.subr.bf16.mxu0 0
        %1245 = vmatpush1.bf16.msra.mxu0 0
        %1246 = vmatprep.subr.bf16.mxu0 0
        %1247 = vmatpush1.bf16.msra.mxu0 0
        %1248 = vmatprep.subr.bf16.mxu0 0
        %1249 = vmatpush1.bf16.msra.mxu0 0
        %1250 = vmatprep.subr.bf16.mxu0 0
        %1251 = vmatpush1.bf16.msra.mxu0 0
        %1252 = vmatprep.mubr.bf16.mxu0 0
        %1253 = vmatmul.mubr.bf16.gmra.mrb[0].mxu0 %v1215
        %v1254 = vpop.f32.mrb[0].mxu0
        %v1255 = vadd.f32 0.0, %v1254
        %v1256 = vpop.f32.mrb[0].mxu0
        %v1257 = vpop.f32.mrb[0].mxu0
        %v1258 = vpop.f32.mrb[0].mxu0
        %1259 = vdwg.mxu0
        %v1260 = vpack.c.bf16 %v1255, %v1255
        %v1262 = vunpack.c.l.b16 %v1260
        %v1263 = vpack.c.b16 %v1262, %v1262
        %1264 = vrot.lane.b32.xlu0 %v1263, 24
        %v1265 = vpop.permute.xlu0 %1264
        %vm1267 = vcmask 257216
        %1268 = vst.msk [vmem:[#allocation2] sm:$0xf] %vm1267, %v1265
        %v1269 = vld [vmem:[#allocation2] sm:$0xf]
        %v1270 = vld [vmem:[%s8] sm:$0xf]
        %v1271 = vld [vmem:[%s8 + $0x4] sm:$0xf]
        %v1272 = vld [vmem:[%s8 + $0x8] sm:$0xf]
        %v1273 = vld [vmem:[%s8 + $0xc] sm:$0xf]
        %v1278 = vunpack.c.l.b16 %v1270
        %v1279 = vunpack.c.l.b16 %v1271
        %v1280 = vunpack.c.l.b16 %v1272
        %v1281 = vunpack.c.l.b16 %v1273
        %v1282 = vpack.c.b16 %v1279, %v1278
        %v1283 = vpack.c.b16 %v1281, %v1280
        %vm1286 = vcmask 261120
        %v1288 = vsel %vm1286, %v1269, 0
        %1290 = vmatprep.subr.bf16.mxu0 0
        %1291 = vmatpush1.bf16.msra.mxu0 %v1282
        %1292 = vmatprep.subr.bf16.mxu0 0
        %1293 = vmatpush1.bf16.msra.mxu0 %v1283
        %1294 = vmatprep.subr.bf16.mxu0 0
        %1295 = vmatpush1.bf16.msra.mxu0 0
        %1296 = vmatprep.subr.bf16.mxu0 0
        %1297 = vmatpush1.bf16.msra.mxu0 0
        %1298 = vmatprep.subr.bf16.mxu0 0
        %1299 = vmatpush1.bf16.msra.mxu0 0
        %1300 = vmatprep.subr.bf16.mxu0 0
        %1301 = vmatpush1.bf16.msra.mxu0 0
        %1302 = vmatprep.subr.bf16.mxu0 0
        %1303 = vmatpush1.bf16.msra.mxu0 0
        %1304 = vmatprep.subr.bf16.mxu0 0
        %1305 = vmatpush1.bf16.msra.mxu0 0
        %1306 = vmatprep.subr.bf16.mxu0 0
        %1307 = vmatpush1.bf16.msra.mxu0 0
        %1308 = vmatprep.subr.bf16.mxu0 0
        %1309 = vmatpush1.bf16.msra.mxu0 0
        %1310 = vmatprep.subr.bf16.mxu0 0
        %1311 = vmatpush1.bf16.msra.mxu0 0
        %1312 = vmatprep.subr.bf16.mxu0 0
        %1313 = vmatpush1.bf16.msra.mxu0 0
        %1314 = vmatprep.subr.bf16.mxu0 0
        %1315 = vmatpush1.bf16.msra.mxu0 0
        %1316 = vmatprep.subr.bf16.mxu0 0
        %1317 = vmatpush1.bf16.msra.mxu0 0
        %1318 = vmatprep.subr.bf16.mxu0 0
        %1319 = vmatpush1.bf16.msra.mxu0 0
        %1320 = vmatprep.subr.bf16.mxu0 0
        %1321 = vmatpush1.bf16.msra.mxu0 0
        %1322 = vmatprep.mubr.bf16.mxu0 0
        %1323 = vmatmul.mubr.bf16.gmra.mrb[0].mxu0 %v1288
        %v1324 = vpop.f32.mrb[0].mxu0
        %v1325 = vadd.f32 0.0, %v1324
        %v1326 = vpop.f32.mrb[0].mxu0
        %v1327 = vpop.f32.mrb[0].mxu0
        %v1328 = vpop.f32.mrb[0].mxu0
        %1329 = vdwg.mxu0
        %v1330 = vadd.f32 %v785, %v1325
        %v1331 = vld [vmem:[%s9] sm:$0x1]
        %v1332 = vld [vmem:[%s10] sm:$0x1]
        %v1333 = vsel %vm1286, %v1330, 0.0
        %1334 = vadd.xlane.f32.xlu0 %v1333
        %v1335 = vpop.xlane.xlu0 %1334
        %v1336 = vrcp.pop 32.0
        %v1337 = vmul.f32 %v1335, %v1336
        %v1338 = vsub.f32 %v1330, %v1337
        %v1339 = vmul.f32 %v1338, %v1338
        %v1340 = vsel %vm1286, %v1339, 0.0
        %1341 = vadd.xlane.f32.xlu0 %v1340
        %v1342 = vpop.xlane.xlu0 %1341
        %v1343 = vmul.f32 %v1342, 0.032258064
        %v1344 = vrsqrt.pop %v1343
        %v1345 = vmul.f32 %v1343, %v1344
        %vm1346 = vcmp.eq.f32.partialorder %v1343, inf
        %v1347 = vsel %vm1346, %v1343, %v1345
        %vm1348 = vcmp.eq.f32.partialorder %v1343, 0.0
        %v1349 = vand.u32 %v1343, 2147483648
        %v1350 = vsel %vm1348, %v1349, %v1347
        %v1351 = vadd.f32 %v1350, 1e-06
        %v1352 = vrcp.pop %v1351
        %v1353 = vmul.f32 %v1338, %v1352
        %v1355 = vlaneseq
        %v1356 = vshrl.u32 %v1355, 7
        %v1357 = vsub.s32 0, %v1356
        %v1358 = vrot.slane %v1331, %v1357
        %v1360 = vmul.f32 %v1358, %v1353
        %v1362 = vlaneseq
        %v1363 = vshrl.u32 %v1362, 7
        %v1364 = vsub.s32 0, %v1363
        %v1365 = vrot.slane %v1332, %v1364
        %v1367 = vadd.f32 %v1360, %v1365
        %v1368 = vpack.c.bf16 %v1367, %v1367
        %v1369 = vld [vmem:[%s11] sm:$0xf]
        %v1370 = vld [vmem:[%s11 + $0x4] sm:$0xf]
        %v1371 = vld [vmem:[%s11 + $0x8] sm:$0xf]
        %v1372 = vld [vmem:[%s11 + $0xc] sm:$0xf]
        %v1377 = vunpack.c.l.b16 %v1369
        %v1378 = vunpack.c.l.b16 %v1370
        %v1379 = vunpack.c.l.b16 %v1371
        %v1380 = vunpack.c.l.b16 %v1372
        %v1381 = vpack.c.b16 %v1378, %v1377
        %v1382 = vpack.c.b16 %v1380, %v1379
        %v1386 = vsel %vm1286, %v1368, 0
        %1388 = vmatprep.subr.bf16.mxu0 0
        %1389 = vmatpush1.bf16.msra.mxu0 %v1381
        %1390 = vmatprep.subr.bf16.mxu0 0
        %1391 = vmatpush1.bf16.msra.mxu0 %v1382
        %1392 = vmatprep.subr.bf16.mxu0 0
        %1393 = vmatpush1.bf16.msra.mxu0 0
        %1394 = vmatprep.subr.bf16.mxu0 0
        %1395 = vmatpush1.bf16.msra.mxu0 0
        %1396 = vmatprep.subr.bf16.mxu0 0
        %1397 = vmatpush1.bf16.msra.mxu0 0
        %1398 = vmatprep.subr.bf16.mxu0 0
        %1399 = vmatpush1.bf16.msra.mxu0 0
        %1400 = vmatprep.subr.bf16.mxu0 0
        %1401 = vmatpush1.bf16.msra.mxu0 0
        %1402 = vmatprep.subr.bf16.mxu0 0
        %1403 = vmatpush1.bf16.msra.mxu0 0
        %1404 = vmatprep.subr.bf16.mxu0 0
        %1405 = vmatpush1.bf16.msra.mxu0 0
        %1406 = vmatprep.subr.bf16.mxu0 0
        %1407 = vmatpush1.bf16.msra.mxu0 0
        %1408 = vmatprep.subr.bf16.mxu0 0
        %1409 = vmatpush1.bf16.msra.mxu0 0
        %1410 = vmatprep.subr.bf16.mxu0 0
        %1411 = vmatpush1.bf16.msra.mxu0 0
        %1412 = vmatprep.subr.bf16.mxu0 0
        %1413 = vmatpush1.bf16.msra.mxu0 0
        %1414 = vmatprep.subr.bf16.mxu0 0
        %1415 = vmatpush1.bf16.msra.mxu0 0
        %1416 = vmatprep.subr.bf16.mxu0 0
        %1417 = vmatpush1.bf16.msra.mxu0 0
        %1418 = vmatprep.subr.bf16.mxu0 0
        %1419 = vmatpush1.bf16.msra.mxu0 0
        %1420 = vmatprep.mubr.bf16.mxu0 0
        %1421 = vmatmul.mubr.bf16.gmra.mrb[0].mxu0 %v1386
        %v1422 = vpop.f32.mrb[0].mxu0
        %v1423 = vadd.f32 0.0, %v1422
        %v1424 = vpop.f32.mrb[0].mxu0
        %v1425 = vpop.f32.mrb[0].mxu0
        %v1426 = vpop.f32.mrb[0].mxu0
        %1427 = vdwg.mxu0
        %v1428 = vmul.f32 %v1423, 0.35355338
        %v1429 = vpack.c.bf16 %v1428, %v1428
        %v1430 = vld [vmem:[%s783] sm:$0xf]
        %v1431 = vunpack.c.l.bf16 %v1430
        %v1432 = vld [vmem:[%s764] sm:$0xf]
        %v1434 = vsel %vm790, %v1429, 0
        %v1437 = vsel %vm794, %v1432, 0
        %1439 = vmatprep.subr.bf16.mxu0 0
        %1440 = vmatpush1.bf16.msra.mxu0 %v1437
        %1441 = vmatprep.subr.bf16.mxu0 0
        %1442 = vmatpush1.bf16.msra.mxu0 0
        %1443 = vmatprep.subr.bf16.mxu0 0
        %1444 = vmatpush1.bf16.msra.mxu0 0
        %1445 = vmatprep.subr.bf16.mxu0 0
        %1446 = vmatpush1.bf16.msra.mxu0 0
        %1447 = vmatprep.subr.bf16.mxu0 0
        %1448 = vmatpush1.bf16.msra.mxu0 0
        %1449 = vmatprep.subr.bf16.mxu0 0
        %1450 = vmatpush1.bf16.msra.mxu0 0
        %1451 = vmatprep.subr.bf16.mxu0 0
        %1452 = vmatpush1.bf16.msra.mxu0 0
        %1453 = vmatprep.subr.bf16.mxu0 0
        %1454 = vmatpush1.bf16.msra.mxu0 0
        %1455 = vmatprep.subr.bf16.mxu0 0
        %1456 = vmatpush1.bf16.msra.mxu0 0
        %1457 = vmatprep.subr.bf16.mxu0 0
        %1458 = vmatpush1.bf16.msra.mxu0 0
        %1459 = vmatprep.subr.bf16.mxu0 0
        %1460 = vmatpush1.bf16.msra.mxu0 0
        %1461 = vmatprep.subr.bf16.mxu0 0
        %1462 = vmatpush1.bf16.msra.mxu0 0
        %1463 = vmatprep.subr.bf16.mxu0 0
        %1464 = vmatpush1.bf16.msra.mxu0 0
        %1465 = vmatprep.subr.bf16.mxu0 0
        %1466 = vmatpush1.bf16.msra.mxu0 0
        %1467 = vmatprep.subr.bf16.mxu0 0
        %1468 = vmatpush1.bf16.msra.mxu0 0
        %1469 = vmatprep.subr.bf16.mxu0 0
        %1470 = vmatpush1.bf16.msra.mxu0 0
        %1471 = vmatprep.mubr.bf16.mxu0 0
        %1472 = vmatmul.mubr.bf16.gmra.mrb[0].mxu0 %v1434
        %v1473 = vpop.f32.mrb[0].mxu0
        %v1474 = vadd.f32 %v1431, %v1473
        %v1475 = vpop.f32.mrb[0].mxu0
        %v1476 = vpop.f32.mrb[0].mxu0
        %v1477 = vpop.f32.mrb[0].mxu0
        %1478 = vdwg.mxu0
        %vm1479 = vcmask 80896
        %v1480 = vsel %vm1479, %v1474, -inf
        %1481 = vmax.xlane.f32.xlu0 %v1480
        %v1482 = vpop.xlane.xlu0 %1481
        %v1483 = vsub.f32 %v1474, %v1482
        %v1484 = vmul.f32 %v1483, 1.442695
        %v1485 = vpow.pop %v1484
        %v1486 = vsel %vm1479, %v1485, 0.0
        %1487 = vadd.xlane.f32.xlu0 %v1486
        %v1488 = vpop.xlane.xlu0 %1487
        %v1489 = vrcp.pop %v1488
        %v1490 = vmul.f32 %v1485, %v1489
        %v1491 = vpack.c.bf16 %v1490, %v1490
        %v1492 = vld [vmem:[%s769] sm:$0xf]
        %v1493 = vld [vmem:[%s769 + $0x4] sm:$0x1]
        %v1496 = vunpack.c.l.b16 %v1492
        %v1497 = vunpack.c.l.b16 %v1493
        %v1498 = vpack.c.b16 %v1497, %v1496
        %v1500 = vsel %vm1479, %v1491, 0
        %vm1502 = vcmask 1044480
        %v1504 = vsel %vm1502, %v1498, 0
        %1506 = vmatprep.subr.bf16.mxu0 0
        %1507 = vmatpush1.bf16.msra.mxu0 %v1504
        %1508 = vmatprep.subr.bf16.mxu0 0
        %1509 = vmatpush1.bf16.msra.mxu0 0
        %1510 = vmatprep.subr.bf16.mxu0 0
        %1511 = vmatpush1.bf16.msra.mxu0 0
        %1512 = vmatprep.subr.bf16.mxu0 0
        %1513 = vmatpush1.bf16.msra.mxu0 0
        %1514 = vmatprep.subr.bf16.mxu0 0
        %1515 = vmatpush1.bf16.msra.mxu0 0
        %1516 = vmatprep.subr.bf16.mxu0 0
        %1517 = vmatpush1.bf16.msra.mxu0 0
        %1518 = vmatprep.subr.bf16.mxu0 0
        %1519 = vmatpush1.bf16.msra.mxu0 0
        %1520 = vmatprep.subr.bf16.mxu0 0
        %1521 = vmatpush1.bf16.msra.mxu0 0
        %1522 = vmatprep.subr.bf16.mxu0 0
        %1523 = vmatpush1.bf16.msra.mxu0 0
        %1524 = vmatprep.subr.bf16.mxu0 0
        %1525 = vmatpush1.bf16.msra.mxu0 0
        %1526 = vmatprep.subr.bf16.mxu0 0
        %1527 = vmatpush1.bf16.msra.mxu0 0
        %1528 = vmatprep.subr.bf16.mxu0 0
        %1529 = vmatpush1.bf16.msra.mxu0 0
        %1530 = vmatprep.subr.bf16.mxu0 0
        %1531 = vmatpush1.bf16.msra.mxu0 0
        %1532 = vmatprep.subr.bf16.mxu0 0
        %1533 = vmatpush1.bf16.msra.mxu0 0
        %1534 = vmatprep.subr.bf16.mxu0 0
        %1535 = vmatpush1.bf16.msra.mxu0 0
        %1536 = vmatprep.subr.bf16.mxu0 0
        %1537 = vmatpush1.bf16.msra.mxu0 0
        %1538 = vmatprep.mubr.bf16.mxu0 0
        %1539 = vmatmul.mubr.bf16.gmra.mrb[0].mxu0 %v1500
        %v1540 = vpop.f32.mrb[0].mxu0
        %v1541 = vadd.f32 0.0, %v1540
        %v1542 = vpop.f32.mrb[0].mxu0
        %v1543 = vpop.f32.mrb[0].mxu0
        %v1544 = vpop.f32.mrb[0].mxu0
        %1545 = vdwg.mxu0
        %v1546 = vpack.c.bf16 %v1541, %v1541
        %1547 = vst.msk [vmem:[#allocation2] sm:$0xf] %vm898, %v1546
        %v1548 = vld [vmem:[%s764 + $0x4] sm:$0xf]
        %1550 = vrot.lane.b32.xlu0 %v1429, 120
        %v1551 = vpop.permute.xlu0 %1550
        %v1553 = vsel %vm790, %v1551, 0
        %v1556 = vsel %vm794, %v1548, 0
        %1558 = vmatprep.subr.bf16.mxu0 0
        %1559 = vmatpush1.bf16.msra.mxu0 %v1556
        %1560 = vmatprep.subr.bf16.mxu0 0
        %1561 = vmatpush1.bf16.msra.mxu0 0
        %1562 = vmatprep.subr.bf16.mxu0 0
        %1563 = vmatpush1.bf16.msra.mxu0 0
        %1564 = vmatprep.subr.bf16.mxu0 0
        %1565 = vmatpush1.bf16.msra.mxu0 0
        %1566 = vmatprep.subr.bf16.mxu0 0
        %1567 = vmatpush1.bf16.msra.mxu0 0
        %1568 = vmatprep.subr.bf16.mxu0 0
        %1569 = vmatpush1.bf16.msra.mxu0 0
        %1570 = vmatprep.subr.bf16.mxu0 0
        %1571 = vmatpush1.bf16.msra.mxu0 0
        %1572 = vmatprep.subr.bf16.mxu0 0
        %1573 = vmatpush1.bf16.msra.mxu0 0
        %1574 = vmatprep.subr.bf16.mxu0 0
        %1575 = vmatpush1.bf16.msra.mxu0 0
        %1576 = vmatprep.subr.bf16.mxu0 0
        %1577 = vmatpush1.bf16.msra.mxu0 0
        %1578 = vmatprep.subr.bf16.mxu0 0
        %1579 = vmatpush1.bf16.msra.mxu0 0
        %1580 = vmatprep.subr.bf16.mxu0 0
        %1581 = vmatpush1.bf16.msra.mxu0 0
        %1582 = vmatprep.subr.bf16.mxu0 0
        %1583 = vmatpush1.bf16.msra.mxu0 0
        %1584 = vmatprep.subr.bf16.mxu0 0
        %1585 = vmatpush1.bf16.msra.mxu0 0
        %1586 = vmatprep.subr.bf16.mxu0 0
        %1587 = vmatpush1.bf16.msra.mxu0 0
        %1588 = vmatprep.subr.bf16.mxu0 0
        %1589 = vmatpush1.bf16.msra.mxu0 0
        %1590 = vmatprep.mubr.bf16.mxu0 0
        %1591 = vmatmul.mubr.bf16.gmra.mrb[0].mxu0 %v1553
        %v1592 = vpop.f32.mrb[0].mxu0
        %v1593 = vadd.f32 %v1431, %v1592
        %v1594 = vpop.f32.mrb[0].mxu0
        %v1595 = vpop.f32.mrb[0].mxu0
        %v1596 = vpop.f32.mrb[0].mxu0
        %1597 = vdwg.mxu0
        %v1598 = vsel %vm1479, %v1593, -inf
        %1599 = vmax.xlane.f32.xlu0 %v1598
        %v1600 = vpop.xlane.xlu0 %1599
        %v1601 = vsub.f32 %v1593, %v1600
        %v1602 = vmul.f32 %v1601, 1.442695
        %v1603 = vpow.pop %v1602
        %v1604 = vsel %vm1479, %v1603, 0.0
        %1605 = vadd.xlane.f32.xlu0 %v1604
        %v1606 = vpop.xlane.xlu0 %1605
        %v1607 = vrcp.pop %v1606
        %v1608 = vmul.f32 %v1603, %v1607
        %v1609 = vpack.c.bf16 %v1608, %v1608
        %v1610 = vld [vmem:[%s769] sm:$0xf]
        %v1611 = vld [vmem:[%s769 + $0x4] sm:$0x1]
        %v1614 = vunpack.c.l.b16 %v1610
        %v1615 = vunpack.c.l.b16 %v1611
        %v1616 = vpack.c.b16 %v1615, %v1614
        %1617 = vrot.lane.b32.xlu0 %v1616, 120
        %v1618 = vpop.permute.xlu0 %1617
        %v1620 = vsel %vm1479, %v1609, 0
        %v1623 = vsel %vm1502, %v1618, 0
        %1625 = vmatprep.subr.bf16.mxu0 0
        %1626 = vmatpush1.bf16.msra.mxu0 %v1623
        %1627 = vmatprep.subr.bf16.mxu0 0
        %1628 = vmatpush1.bf16.msra.mxu0 0
        %1629 = vmatprep.subr.bf16.mxu0 0
        %1630 = vmatpush1.bf16.msra.mxu0 0
        %1631 = vmatprep.subr.bf16.mxu0 0
        %1632 = vmatpush1.bf16.msra.mxu0 0
        %1633 = vmatprep.subr.bf16.mxu0 0
        %1634 = vmatpush1.bf16.msra.mxu0 0
        %1635 = vmatprep.subr.bf16.mxu0 0
        %1636 = vmatpush1.bf16.msra.mxu0 0
        %1637 = vmatprep.subr.bf16.mxu0 0
        %1638 = vmatpush1.bf16.msra.mxu0 0
        %1639 = vmatprep.subr.bf16.mxu0 0
        %1640 = vmatpush1.bf16.msra.mxu0 0
        %1641 = vmatprep.subr.bf16.mxu0 0
        %1642 = vmatpush1.bf16.msra.mxu0 0
        %1643 = vmatprep.subr.bf16.mxu0 0
        %1644 = vmatpush1.bf16.msra.mxu0 0
        %1645 = vmatprep.subr.bf16.mxu0 0
        %1646 = vmatpush1.bf16.msra.mxu0 0
        %1647 = vmatprep.subr.bf16.mxu0 0
        %1648 = vmatpush1.bf16.msra.mxu0 0
        %1649 = vmatprep.subr.bf16.mxu0 0
        %1650 = vmatpush1.bf16.msra.mxu0 0
        %1651 = vmatprep.subr.bf16.mxu0 0
        %1652 = vmatpush1.bf16.msra.mxu0 0
        %1653 = vmatprep.subr.bf16.mxu0 0
        %1654 = vmatpush1.bf16.msra.mxu0 0
        %1655 = vmatprep.subr.bf16.mxu0 0
        %1656 = vmatpush1.bf16.msra.mxu0 0
        %1657 = vmatprep.mubr.bf16.mxu0 0
        %1658 = vmatmul.mubr.bf16.gmra.mrb[0].mxu0 %v1620
        %v1659 = vpop.f32.mrb[0].mxu0
        %v1660 = vadd.f32 0.0, %v1659
        %v1661 = vpop.f32.mrb[0].mxu0
        %v1662 = vpop.f32.mrb[0].mxu0
        %v1663 = vpop.f32.mrb[0].mxu0
        %1664 = vdwg.mxu0
        %v1665 = vpack.c.bf16 %v1660, %v1660
        %v1667 = vunpack.c.l.b16 %v1665
        %v1668 = vpack.c.b16 %v1667, %v1667
        %1669 = vrot.lane.b32.xlu0 %v1668, 8
        %v1670 = vpop.permute.xlu0 %1669
        %1672 = vst.msk [vmem:[#allocation2] sm:$0xf] %vm1023, %v1670
        %v1673 = vld [vmem:[%s764 + $0x8] sm:$0xf]
        %1674 = vrot.lane.b32.xlu0 %v1429, 112
        %v1675 = vpop.permute.xlu0 %1674
        %v1677 = vsel %vm790, %v1675, 0
        %v1680 = vsel %vm794, %v1673, 0
        %1682 = vmatprep.subr.bf16.mxu0 0
        %1683 = vmatpush1.bf16.msra.mxu0 %v1680
        %1684 = vmatprep.subr.bf16.mxu0 0
        %1685 = vmatpush1.bf16.msra.mxu0 0
        %1686 = vmatprep.subr.bf16.mxu0 0
        %1687 = vmatpush1.bf16.msra.mxu0 0
        %1688 = vmatprep.subr.bf16.mxu0 0
        %1689 = vmatpush1.bf16.msra.mxu0 0
        %1690 = vmatprep.subr.bf16.mxu0 0
        %1691 = vmatpush1.bf16.msra.mxu0 0
        %1692 = vmatprep.subr.bf16.mxu0 0
        %1693 = vmatpush1.bf16.msra.mxu0 0
        %1694 = vmatprep.subr.bf16.mxu0 0
        %1695 = vmatpush1.bf16.msra.mxu0 0
        %1696 = vmatprep.subr.bf16.mxu0 0
        %1697 = vmatpush1.bf16.msra.mxu0 0
        %1698 = vmatprep.subr.bf16.mxu0 0
        %1699 = vmatpush1.bf16.msra.mxu0 0
        %1700 = vmatprep.subr.bf16.mxu0 0
        %1701 = vmatpush1.bf16.msra.mxu0 0
        %1702 = vmatprep.subr.bf16.mxu0 0
        %1703 = vmatpush1.bf16.msra.mxu0 0
        %1704 = vmatprep.subr.bf16.mxu0 0
        %1705 = vmatpush1.bf16.msra.mxu0 0
        %1706 = vmatprep.subr.bf16.mxu0 0
        %1707 = vmatpush1.bf16.msra.mxu0 0
        %1708 = vmatprep.subr.bf16.mxu0 0
        %1709 = vmatpush1.bf16.msra.mxu0 0
        %1710 = vmatprep.subr.bf16.mxu0 0
        %1711 = vmatpush1.bf16.msra.mxu0 0
        %1712 = vmatprep.subr.bf16.mxu0 0
        %1713 = vmatpush1.bf16.msra.mxu0 0
        %1714 = vmatprep.mubr.bf16.mxu0 0
        %1715 = vmatmul.mubr.bf16.gmra.mrb[0].mxu0 %v1677
        %v1716 = vpop.f32.mrb[0].mxu0
        %v1717 = vadd.f32 %v1431, %v1716
        %v1718 = vpop.f32.mrb[0].mxu0
        %v1719 = vpop.f32.mrb[0].mxu0
        %v1720 = vpop.f32.mrb[0].mxu0
        %1721 = vdwg.mxu0
        %v1722 = vsel %vm1479, %v1717, -inf
        %1723 = vmax.xlane.f32.xlu0 %v1722
        %v1724 = vpop.xlane.xlu0 %1723
        %v1725 = vsub.f32 %v1717, %v1724
        %v1726 = vmul.f32 %v1725, 1.442695
        %v1727 = vpow.pop %v1726
        %v1728 = vsel %vm1479, %v1727, 0.0
        %1729 = vadd.xlane.f32.xlu0 %v1728
        %v1730 = vpop.xlane.xlu0 %1729
        %v1731 = vrcp.pop %v1730
        %v1732 = vmul.f32 %v1727, %v1731
        %v1733 = vpack.c.bf16 %v1732, %v1732
        %v1734 = vld [vmem:[%s769] sm:$0xf]
        %v1735 = vld [vmem:[%s769 + $0x4] sm:$0x1]
        %v1738 = vunpack.c.l.b16 %v1734
        %v1739 = vunpack.c.l.b16 %v1735
        %v1740 = vpack.c.b16 %v1739, %v1738
        %1741 = vrot.lane.b32.xlu0 %v1740, 112
        %v1742 = vpop.permute.xlu0 %1741
        %v1744 = vsel %vm1479, %v1733, 0
        %v1747 = vsel %vm1502, %v1742, 0
        %1749 = vmatprep.subr.bf16.mxu0 0
        %1750 = vmatpush1.bf16.msra.mxu0 %v1747
        %1751 = vmatprep.subr.bf16.mxu0 0
        %1752 = vmatpush1.bf16.msra.mxu0 0
        %1753 = vmatprep.subr.bf16.mxu0 0
        %1754 = vmatpush1.bf16.msra.mxu0 0
        %1755 = vmatprep.subr.bf16.mxu0 0
        %1756 = vmatpush1.bf16.msra.mxu0 0
        %1757 = vmatprep.subr.bf16.mxu0 0
        %1758 = vmatpush1.bf16.msra.mxu0 0
        %1759 = vmatprep.subr.bf16.mxu0 0
        %1760 = vmatpush1.bf16.msra.mxu0 0
        %1761 = vmatprep.subr.bf16.mxu0 0
        %1762 = vmatpush1.bf16.msra.mxu0 0
        %1763 = vmatprep.subr.bf16.mxu0 0
        %1764 = vmatpush1.bf16.msra.mxu0 0
        %1765 = vmatprep.subr.bf16.mxu0 0
        %1766 = vmatpush1.bf16.msra.mxu0 0
        %1767 = vmatprep.subr.bf16.mxu0 0
        %1768 = vmatpush1.bf16.msra.mxu0 0
        %1769 = vmatprep.subr.bf16.mxu0 0
        %1770 = vmatpush1.bf16.msra.mxu0 0
        %1771 = vmatprep.subr.bf16.mxu0 0
        %1772 = vmatpush1.bf16.msra.mxu0 0
        %1773 = vmatprep.subr.bf16.mxu0 0
        %1774 = vmatpush1.bf16.msra.mxu0 0
        %1775 = vmatprep.subr.bf16.mxu0 0
        %1776 = vmatpush1.bf16.msra.mxu0 0
        %1777 = vmatprep.subr.bf16.mxu0 0
        %1778 = vmatpush1.bf16.msra.mxu0 0
        %1779 = vmatprep.subr.bf16.mxu0 0
        %1780 = vmatpush1.bf16.msra.mxu0 0
        %1781 = vmatprep.mubr.bf16.mxu0 0
        %1782 = vmatmul.mubr.bf16.gmra.mrb[0].mxu0 %v1744
        %v1783 = vpop.f32.mrb[0].mxu0
        %v1784 = vadd.f32 0.0, %v1783
        %v1785 = vpop.f32.mrb[0].mxu0
        %v1786 = vpop.f32.mrb[0].mxu0
        %v1787 = vpop.f32.mrb[0].mxu0
        %1788 = vdwg.mxu0
        %v1789 = vpack.c.bf16 %v1784, %v1784
        %v1791 = vunpack.c.l.b16 %v1789
        %v1792 = vpack.c.b16 %v1791, %v1791
        %1793 = vrot.lane.b32.xlu0 %v1792, 16
        %v1794 = vpop.permute.xlu0 %1793
        %1796 = vst.msk [vmem:[#allocation2] sm:$0xf] %vm1145, %v1794
        %v1797 = vld [vmem:[%s764 + $0xc] sm:$0xf]
        %1798 = vrot.lane.b32.xlu0 %v1429, 104
        %v1799 = vpop.permute.xlu0 %1798
        %v1801 = vsel %vm790, %v1799, 0
        %v1804 = vsel %vm794, %v1797, 0
        %1806 = vmatprep.subr.bf16.mxu0 0
        %1807 = vmatpush1.bf16.msra.mxu0 %v1804
        %1808 = vmatprep.subr.bf16.mxu0 0
        %1809 = vmatpush1.bf16.msra.mxu0 0
        %1810 = vmatprep.subr.bf16.mxu0 0
        %1811 = vmatpush1.bf16.msra.mxu0 0
        %1812 = vmatprep.subr.bf16.mxu0 0
        %1813 = vmatpush1.bf16.msra.mxu0 0
        %1814 = vmatprep.subr.bf16.mxu0 0
        %1815 = vmatpush1.bf16.msra.mxu0 0
        %1816 = vmatprep.subr.bf16.mxu0 0
        %1817 = vmatpush1.bf16.msra.mxu0 0
        %1818 = vmatprep.subr.bf16.mxu0 0
        %1819 = vmatpush1.bf16.msra.mxu0 0
        %1820 = vmatprep.subr.bf16.mxu0 0
        %1821 = vmatpush1.bf16.msra.mxu0 0
        %1822 = vmatprep.subr.bf16.mxu0 0
        %1823 = vmatpush1.bf16.msra.mxu0 0
        %1824 = vmatprep.subr.bf16.mxu0 0
        %1825 = vmatpush1.bf16.msra.mxu0 0
        %1826 = vmatprep.subr.bf16.mxu0 0
        %1827 = vmatpush1.bf16.msra.mxu0 0
        %1828 = vmatprep.subr.bf16.mxu0 0
        %1829 = vmatpush1.bf16.msra.mxu0 0
        %1830 = vmatprep.subr.bf16.mxu0 0
        %1831 = vmatpush1.bf16.msra.mxu0 0
        %1832 = vmatprep.subr.bf16.mxu0 0
        %1833 = vmatpush1.bf16.msra.mxu0 0
        %1834 = vmatprep.subr.bf16.mxu0 0
        %1835 = vmatpush1.bf16.msra.mxu0 0
        %1836 = vmatprep.subr.bf16.mxu0 0
        %1837 = vmatpush1.bf16.msra.mxu0 0
        %1838 = vmatprep.mubr.bf16.mxu0 0
        %1839 = vmatmul.mubr.bf16.gmra.mrb[0].mxu0 %v1801
        %v1840 = vpop.f32.mrb[0].mxu0
        %v1841 = vadd.f32 %v1431, %v1840
        %v1842 = vpop.f32.mrb[0].mxu0
        %v1843 = vpop.f32.mrb[0].mxu0
        %v1844 = vpop.f32.mrb[0].mxu0
        %1845 = vdwg.mxu0
        %v1846 = vsel %vm1479, %v1841, -inf
        %1847 = vmax.xlane.f32.xlu0 %v1846
        %v1848 = vpop.xlane.xlu0 %1847
        %v1849 = vsub.f32 %v1841, %v1848
        %v1850 = vmul.f32 %v1849, 1.442695
        %v1851 = vpow.pop %v1850
        %v1852 = vsel %vm1479, %v1851, 0.0
        %1853 = vadd.xlane.f32.xlu0 %v1852
        %v1854 = vpop.xlane.xlu0 %1853
        %v1855 = vrcp.pop %v1854
        %v1856 = vmul.f32 %v1851, %v1855
        %v1857 = vpack.c.bf16 %v1856, %v1856
        %v1858 = vld [vmem:[%s769] sm:$0xf]
        %v1859 = vld [vmem:[%s769 + $0x4] sm:$0x1]
        %v1862 = vunpack.c.l.b16 %v1858
        %v1863 = vunpack.c.l.b16 %v1859
        %v1864 = vpack.c.b16 %v1863, %v1862
        %1865 = vrot.lane.b32.xlu0 %v1864, 104
        %v1866 = vpop.permute.xlu0 %1865
        %v1868 = vsel %vm1479, %v1857, 0
        %v1871 = vsel %vm1502, %v1866, 0
        %1873 = vmatprep.subr.bf16.mxu0 0
        %1874 = vmatpush1.bf16.msra.mxu0 %v1871
        %1875 = vmatprep.subr.bf16.mxu0 0
        %1876 = vmatpush1.bf16.msra.mxu0 0
        %1877 = vmatprep.subr.bf16.mxu0 0
        %1878 = vmatpush1.bf16.msra.mxu0 0
        %1879 = vmatprep.subr.bf16.mxu0 0
        %1880 = vmatpush1.bf16.msra.mxu0 0
        %1881 = vmatprep.subr.bf16.mxu0 0
        %1882 = vmatpush1.bf16.msra.mxu0 0
        %1883 = vmatprep.subr.bf16.mxu0 0
        %1884 = vmatpush1.bf16.msra.mxu0 0
        %1885 = vmatprep.subr.bf16.mxu0 0
        %1886 = vmatpush1.bf16.msra.mxu0 0
        %1887 = vmatprep.subr.bf16.mxu0 0
        %1888 = vmatpush1.bf16.msra.mxu0 0
        %1889 = vmatprep.subr.bf16.mxu0 0
        %1890 = vmatpush1.bf16.msra.mxu0 0
        %1891 = vmatprep.subr.bf16.mxu0 0
        %1892 = vmatpush1.bf16.msra.mxu0 0
        %1893 = vmatprep.subr.bf16.mxu0 0
        %1894 = vmatpush1.bf16.msra.mxu0 0
        %1895 = vmatprep.subr.bf16.mxu0 0
        %1896 = vmatpush1.bf16.msra.mxu0 0
        %1897 = vmatprep.subr.bf16.mxu0 0
        %1898 = vmatpush1.bf16.msra.mxu0 0
        %1899 = vmatprep.subr.bf16.mxu0 0
        %1900 = vmatpush1.bf16.msra.mxu0 0
        %1901 = vmatprep.subr.bf16.mxu0 0
        %1902 = vmatpush1.bf16.msra.mxu0 0
        %1903 = vmatprep.subr.bf16.mxu0 0
        %1904 = vmatpush1.bf16.msra.mxu0 0
        %1905 = vmatprep.mubr.bf16.mxu0 0
        %1906 = vmatmul.mubr.bf16.gmra.mrb[0].mxu0 %v1868
        %v1907 = vpop.f32.mrb[0].mxu0
        %v1908 = vadd.f32 0.0, %v1907
        %v1909 = vpop.f32.mrb[0].mxu0
        %v1910 = vpop.f32.mrb[0].mxu0
        %v1911 = vpop.f32.mrb[0].mxu0
        %1912 = vdwg.mxu0
        %v1913 = vpack.c.bf16 %v1908, %v1908
        %v1915 = vunpack.c.l.b16 %v1913
        %v1916 = vpack.c.b16 %v1915, %v1915
        %1917 = vrot.lane.b32.xlu0 %v1916, 24
        %v1918 = vpop.permute.xlu0 %1917
        %1920 = vst.msk [vmem:[#allocation2] sm:$0xf] %vm1267, %v1918
        %v1921 = vld [vmem:[#allocation2] sm:$0xf]
        %v1922 = vld [vmem:[%s12] sm:$0xf]
        %v1923 = vld [vmem:[%s12 + $0x4] sm:$0xf]
        %v1924 = vld [vmem:[%s12 + $0x8] sm:$0xf]
        %v1925 = vld [vmem:[%s12 + $0xc] sm:$0xf]
        %v1930 = vunpack.c.l.b16 %v1922
        %v1931 = vunpack.c.l.b16 %v1923
        %v1932 = vunpack.c.l.b16 %v1924
        %v1933 = vunpack.c.l.b16 %v1925
        %v1934 = vpack.c.b16 %v1931, %v1930
        %v1935 = vpack.c.b16 %v1933, %v1932
        %v1939 = vsel %vm1286, %v1921, 0
        %1941 = vmatprep.subr.bf16.mxu0 0
        %1942 = vmatpush1.bf16.msra.mxu0 %v1934
        %1943 = vmatprep.subr.bf16.mxu0 0
        %1944 = vmatpush1.bf16.msra.mxu0 %v1935
        %1945 = vmatprep.subr.bf16.mxu0 0
        %1946 = vmatpush1.bf16.msra.mxu0 0
        %1947 = vmatprep.subr.bf16.mxu0 0
        %1948 = vmatpush1.bf16.msra.mxu0 0
        %1949 = vmatprep.subr.bf16.mxu0 0
        %1950 = vmatpush1.bf16.msra.mxu0 0
        %1951 = vmatprep.subr.bf16.mxu0 0
        %1952 = vmatpush1.bf16.msra.mxu0 0
        %1953 = vmatprep.subr.bf16.mxu0 0
        %1954 = vmatpush1.bf16.msra.mxu0 0
        %1955 = vmatprep.subr.bf16.mxu0 0
        %1956 = vmatpush1.bf16.msra.mxu0 0
        %1957 = vmatprep.subr.bf16.mxu0 0
        %1958 = vmatpush1.bf16.msra.mxu0 0
        %1959 = vmatprep.subr.bf16.mxu0 0
        %1960 = vmatpush1.bf16.msra.mxu0 0
        %1961 = vmatprep.subr.bf16.mxu0 0
        %1962 = vmatpush1.bf16.msra.mxu0 0
        %1963 = vmatprep.subr.bf16.mxu0 0
        %1964 = vmatpush1.bf16.msra.mxu0 0
        %1965 = vmatprep.subr.bf16.mxu0 0
        %1966 = vmatpush1.bf16.msra.mxu0 0
        %1967 = vmatprep.subr.bf16.mxu0 0
        %1968 = vmatpush1.bf16.msra.mxu0 0
        %1969 = vmatprep.subr.bf16.mxu0 0
        %1970 = vmatpush1.bf16.msra.mxu0 0
        %1971 = vmatprep.subr.bf16.mxu0 0
        %1972 = vmatpush1.bf16.msra.mxu0 0
        %1973 = vmatprep.mubr.bf16.mxu0 0
        %1974 = vmatmul.mubr.bf16.gmra.mrb[0].mxu0 %v1939
        %v1975 = vpop.f32.mrb[0].mxu0
        %v1976 = vadd.f32 0.0, %v1975
        %v1977 = vpop.f32.mrb[0].mxu0
        %v1978 = vpop.f32.mrb[0].mxu0
        %v1979 = vpop.f32.mrb[0].mxu0
        %1980 = vdwg.mxu0
        %v1981 = vadd.f32 %v1330, %v1976
        %v1982 = vld [vmem:[%s13] sm:$0x1]
        %v1983 = vld [vmem:[%s14] sm:$0x1]
        %v1984 = vsel %vm1286, %v1981, 0.0
        %1985 = vadd.xlane.f32.xlu0 %v1984
        %v1986 = vpop.xlane.xlu0 %1985
        %v1987 = vmul.f32 %v1986, %v1336
        %v1988 = vsub.f32 %v1981, %v1987
        %v1989 = vmul.f32 %v1988, %v1988
        %v1990 = vsel %vm1286, %v1989, 0.0
        %1991 = vadd.xlane.f32.xlu0 %v1990
        %v1992 = vpop.xlane.xlu0 %1991
        %v1993 = vmul.f32 %v1992, 0.032258064
        %v1994 = vrsqrt.pop %v1993
        %v1995 = vmul.f32 %v1993, %v1994
        %vm1996 = vcmp.eq.f32.partialorder %v1993, inf
        %v1997 = vsel %vm1996, %v1993, %v1995
        %vm1998 = vcmp.eq.f32.partialorder %v1993, 0.0
        %v1999 = vand.u32 %v1993, 2147483648
        %v2000 = vsel %vm1998, %v1999, %v1997
        %v2001 = vadd.f32 %v2000, 1e-06
        %v2002 = vrcp.pop %v2001
        %v2003 = vmul.f32 %v1988, %v2002
        %v2005 = vlaneseq
        %v2006 = vshrl.u32 %v2005, 7
        %v2007 = vsub.s32 0, %v2006
        %v2008 = vrot.slane %v1982, %v2007
        %v2010 = vmul.f32 %v2008, %v2003
        %v2012 = vlaneseq
        %v2013 = vshrl.u32 %v2012, 7
        %v2014 = vsub.s32 0, %v2013
        %v2015 = vrot.slane %v1983, %v2014
        %v2017 = vadd.f32 %v2010, %v2015
        %v2018 = vpack.c.bf16 %v2017, %v2017
        %v2019 = vld [vmem:[%s15] sm:$0xf]
        %v2020 = vld [vmem:[%s15 + $0x4] sm:$0xf]
        %v2021 = vld [vmem:[%s15 + $0x8] sm:$0xf]
        %v2022 = vld [vmem:[%s15 + $0xc] sm:$0xf]
        %v2023 = vld [vmem:[%s16] sm:$0x1]
        %v2025 = vlaneseq
        %v2026 = vshrl.u32 %v2025, 7
        %v2027 = vsub.s32 0, %v2026
        %v2028 = vrot.slane %v2023, %v2027
        %v2034 = vunpack.c.l.b16 %v2019
        %v2035 = vunpack.c.l.b16 %v2020
        %v2036 = vunpack.c.l.b16 %v2021
        %v2037 = vunpack.c.l.b16 %v2022
        %v2038 = vpack.c.b16 %v2035, %v2034
        %v2039 = vpack.c.b16 %v2037, %v2036
        %v2043 = vsel %vm1286, %v2018, 0
        %2045 = vmatprep.subr.bf16.mxu0 0
        %2046 = vmatpush1.bf16.msra.mxu0 %v2038
        %2047 = vmatprep.subr.bf16.mxu0 0
        %2048 = vmatpush1.bf16.msra.mxu0 %v2039
        %2049 = vmatprep.subr.bf16.mxu0 0
        %2050 = vmatpush1.bf16.msra.mxu0 0
        %2051 = vmatprep.subr.bf16.mxu0 0
        %2052 = vmatpush1.bf16.msra.mxu0 0
        %2053 = vmatprep.subr.bf16.mxu0 0
        %2054 = vmatpush1.bf16.msra.mxu0 0
        %2055 = vmatprep.subr.bf16.mxu0 0
        %2056 = vmatpush1.bf16.msra.mxu0 0
        %2057 = vmatprep.subr.bf16.mxu0 0
        %2058 = vmatpush1.bf16.msra.mxu0 0
        %2059 = vmatprep.subr.bf16.mxu0 0
        %2060 = vmatpush1.bf16.msra.mxu0 0
        %2061 = vmatprep.subr.bf16.mxu0 0
        %2062 = vmatpush1.bf16.msra.mxu0 0
        %2063 = vmatprep.subr.bf16.mxu0 0
        %2064 = vmatpush1.bf16.msra.mxu0 0
        %2065 = vmatprep.subr.bf16.mxu0 0
        %2066 = vmatpush1.bf16.msra.mxu0 0
        %2067 = vmatprep.subr.bf16.mxu0 0
        %2068 = vmatpush1.bf16.msra.mxu0 0
        %2069 = vmatprep.subr.bf16.mxu0 0
        %2070 = vmatpush1.bf16.msra.mxu0 0
        %2071 = vmatprep.subr.bf16.mxu0 0
        %2072 = vmatpush1.bf16.msra.mxu0 0
        %2073 = vmatprep.subr.bf16.mxu0 0
        %2074 = vmatpush1.bf16.msra.mxu0 0
        %2075 = vmatprep.subr.bf16.mxu0 0
        %2076 = vmatpush1.bf16.msra.mxu0 0
        %2077 = vmatprep.mubr.bf16.mxu0 0
        %2078 = vmatmul.mubr.bf16.gmra.mrb[0].mxu0 %v2043
        %v2079 = vpop.f32.mrb[0].mxu0
        %v2080 = vadd.f32 %v2028, %v2079
        %v2081 = vpop.f32.mrb[0].mxu0
        %v2082 = vpop.f32.mrb[0].mxu0
        %v2083 = vpop.f32.mrb[0].mxu0
        %2084 = vdwg.mxu0
        %v2085 = vmax.f32 %v2080, 0.0
        %v2086 = vpack.c.bf16 %v2085, %v2085
        %v2087 = vld [vmem:[%s17] sm:$0xf]
        %v2088 = vld [vmem:[%s17 + $0x4] sm:$0xf]
        %v2089 = vld [vmem:[%s17 + $0x8] sm:$0xf]
        %v2090 = vld [vmem:[%s17 + $0xc] sm:$0xf]
        %v2091 = vld [vmem:[%s17 + $0x10] sm:$0xf]
        %v2092 = vld [vmem:[%s17 + $0x14] sm:$0xf]
        %v2093 = vld [vmem:[%s17 + $0x18] sm:$0xf]
        %v2094 = vld [vmem:[%s17 + $0x1c] sm:$0xf]
        %v2095 = vld [vmem:[%s18] sm:$0x1]
        %v2097 = vlaneseq
        %v2098 = vshrl.u32 %v2097, 7
        %v2099 = vsub.s32 0, %v2098
        %v2100 = vrot.slane %v2095, %v2099
        %v2110 = vunpack.c.l.b16 %v2087
        %v2111 = vunpack.c.l.b16 %v2088
        %v2112 = vunpack.c.l.b16 %v2089
        %v2113 = vunpack.c.l.b16 %v2090
        %v2114 = vunpack.c.l.b16 %v2091
        %v2115 = vunpack.c.l.b16 %v2092
        %v2116 = vunpack.c.l.b16 %v2093
        %v2117 = vunpack.c.l.b16 %v2094
        %v2118 = vpack.c.b16 %v2111, %v2110
        %v2119 = vpack.c.b16 %v2113, %v2112
        %v2120 = vpack.c.b16 %v2115, %v2114
        %v2121 = vpack.c.b16 %v2117, %v2116
        %vm2126 = vcmask 523264
        %v2128 = vsel %vm2126, %v2086, 0
        %2130 = vmatprep.subr.bf16.mxu0 0
        %2131 = vmatpush1.bf16.msra.mxu0 %v2118
        %2132 = vmatprep.subr.bf16.mxu0 0
        %2133 = vmatpush1.bf16.msra.mxu0 %v2119
        %2134 = vmatprep.subr.bf16.mxu0 0
        %2135 = vmatpush1.bf16.msra.mxu0 %v2120
        %2136 = vmatprep.subr.bf16.mxu0 0
        %2137 = vmatpush1.bf16.msra.mxu0 %v2121
        %2138 = vmatprep.subr.bf16.mxu0 0
        %2139 = vmatpush1.bf16.msra.mxu0 0
        %2140 = vmatprep.subr.bf16.mxu0 0
        %2141 = vmatpush1.bf16.msra.mxu0 0
        %2142 = vmatprep.subr.bf16.mxu0 0
        %2143 = vmatpush1.bf16.msra.mxu0 0
        %2144 = vmatprep.subr.bf16.mxu0 0
        %2145 = vmatpush1.bf16.msra.mxu0 0
        %2146 = vmatprep.subr.bf16.mxu0 0
        %2147 = vmatpush1.bf16.msra.mxu0 0
        %2148 = vmatprep.subr.bf16.mxu0 0
        %2149 = vmatpush1.bf16.msra.mxu0 0
        %2150 = vmatprep.subr.bf16.mxu0 0
        %2151 = vmatpush1.bf16.msra.mxu0 0
        %2152 = vmatprep.subr.bf16.mxu0 0
        %2153 = vmatpush1.bf16.msra.mxu0 0
        %2154 = vmatprep.subr.bf16.mxu0 0
        %2155 = vmatpush1.bf16.msra.mxu0 0
        %2156 = vmatprep.subr.bf16.mxu0 0
        %2157 = vmatpush1.bf16.msra.mxu0 0
        %2158 = vmatprep.subr.bf16.mxu0 0
        %2159 = vmatpush1.bf16.msra.mxu0 0
        %2160 = vmatprep.subr.bf16.mxu0 0
        %2161 = vmatpush1.bf16.msra.mxu0 0
        %2162 = vmatprep.mubr.bf16.mxu0 0
        %2163 = vmatmul.mubr.bf16.gmra.mrb[0].mxu0 %v2128
        %v2164 = vpop.f32.mrb[0].mxu0
        %v2165 = vadd.f32 %v2100, %v2164
        %v2166 = vpop.f32.mrb[0].mxu0
        %v2167 = vpop.f32.mrb[0].mxu0
        %v2168 = vpop.f32.mrb[0].mxu0
        %2169 = vdwg.mxu0
        %v2170 = vadd.f32 %v1981, %v2165
        %2171 = vst.msk [vmem:[%s736] sm:$0xff] %vm1286, %v2170
        %s2172 = sand.u32 %s502, 1
        %s2173 = scalar_lea.sflag [#allocation4], %s2172
        %s2174 = sand.u32 %s502, 1
        %s2175 = smul.addr %s2174, 8
        %s2176 = scalar_lea.vmem [#allocation3], %s2175
        // Predicated region
        $region97: #{tpu_custom_call.1} parent=95 // pred_check
          %p2177 = pneg %p512
        $region98: #{tpu_custom_call.1} parent=95 // pred_check_branch
          %2179 = sbr.rel (%p2177) target = $region100
        $region99: #{tpu_custom_call.1} parent=95 // pred_region
          %s2181 = ssub.s32 128, 128
          %2182 = vsyncadd %s2173, %s2181
          %s2183 = sadd.s32 %s38, %s37
          %s2184 = smul.addr %s2183, 128
          %s2185 = scalar_lea.hbm %s19, %s2184
          %s2187 = sshll.u32 %s2176, 4
          %s2188 = int_to_ptr.vmem [resolvable:$true] %s2187
          %2190 = dma.vmem_to_hbm [thread:$0]  %s2188, 128, %s2185, %s2173
        $region100: #{tpu_custom_call.1} parent=95 // pred_fallthru
          _
      $region96: #{tpu_custom_call.1} parent=5 // pred_fallthru
        _
      %p2191 = scmp.le.s32.totalorder 2, %s28
      // Predicated region
      $region101: #{tpu_custom_call.1} parent=5 // pred_check
        %p2192 = pneg %p2191
      $region102: #{tpu_custom_call.1} parent=5 // pred_check_branch
        %2194 = sbr.rel (%p2192) target = $region104
      $region103: #{tpu_custom_call.1} parent=5 // pred_region
        %s2195 = ssub.s32 %s28, 2
        // Predicated region
        $region105: #{tpu_custom_call.1} parent=103 // pred_check
          %p2196 = pneg %p518
        $region106: #{tpu_custom_call.1} parent=103 // pred_check_branch
          %2198 = sbr.rel (%p2196) target = $region108
        $region107: #{tpu_custom_call.1} parent=103 // pred_region
          %s2199 = sand.u32 %s503, 1
          %s2200 = scalar_lea.sflag [#allocation4], %s2199
          %s2201 = sand.u32 %s503, 1
          %s2202 = smul.addr %s2201, 8
          %s2203 = scalar_lea.vmem [#allocation3], %s2202
          %2204 = dma.done %s2200, 128
        $region108: #{tpu_custom_call.1} parent=103 // pred_fallthru
          _
      $region104: #{tpu_custom_call.1} parent=5 // pred_fallthru
        _
    $region6: #{tpu_custom_call.1} parent=1 // loop_footer
      %s32 = sadd.s32 1, %s28
    $region7: #{tpu_custom_call.1} parent=1 // loop_footer_branch
      %27 = sbr.rel target = $region3
    $region8: #{tpu_custom_call.1} parent=1 // loop_exit
      _
    %2205 = vsyncpa [#allocation4], 1
    %s2206 = scalar_lea.sflag [#allocation4], 1
    %2207 = vsyncpa %s2206, 1

</llo_original>
